<compile_context>
chip_gen: v6e
topology: v6e:2x2x1
jax: 0.10.0
libtpu: 0.0.40
codegen_flags: <defaults>
</compile_context>

<pallas_src>
import functools
import math

import jax
import jax.numpy as jnp
from jax import lax
from jax.experimental import pallas as pl
from jax.experimental.pallas import tpu as pltpu

# ---------------------------------------------------------------------------
# Static problem geometry (16x16x2 interaction-pattern input).
# ---------------------------------------------------------------------------
H_IN, W_IN, C_IN = 16, 16, 2
K = 5                                   # conv kernel size
C1 = 64                                 # conv1 out channels
C2 = 32                                 # conv2 out channels
OH1, OW1 = H_IN - K + 1, W_IN - K + 1   # 12, 12
PH1, PW1 = OH1 // 2, OW1 // 2           # 6, 6
SPA_FEAT_DIM = C2                       # 32  (2x2 conv2 output max-pooled to 1x1)
HIDDEN = 1024
LANE = 128
WIDE = W_IN * C_IN                      # 32    lanes of one image row, order (x, c)
K1 = K * WIDE                           # 160   conv1 contraction (ky, x, c)
N1 = PW1 * C1                           # 384   conv1 banded output (x', c1)
K2 = K * N1                             # 1920  conv2 contraction (ky, x', c1)
N2 = 2 * C2                             # 64    conv2 banded output (qx, c2)


def _round_up(x, m):
    return (x + m - 1) // m * m


# ---------------------------------------------------------------------------
# Fused kernel: conv1 -> pool1 -> conv2 -> pool2 -> three MLP heads -> hoi_prob
# ---------------------------------------------------------------------------
def spalan_kernel(xmap_ref, obj_ref, pose_ref,
                  w1b_ref, b1_ref, w2b_ref, b2_ref,
                  wsh_ref, bsh_ref, woh_ref, boh_ref, wph_ref, bph_ref,
                  wsc_ref, bsc_ref, wpc_ref, bpc_ref,
                  hoi_ref, *, tb):
    f32 = jnp.float32
    bf16 = jnp.bfloat16

    # ---- conv1 + maxpool1 ------------------------------------------------
    # xmap_ref: (H_IN, tb, W_IN*C_IN) bf16, lanes = (x, c).  In-kernel im2col along y only
    # (5 free leading-dim slices, lane-concatenated); the x-direction sliding window is
    # folded into the banded RHS weights w1b (2, 160, 384).
    xb = xmap_ref[...]
    lhs1 = jnp.concatenate(
        [xb[ky:ky + OH1].reshape(OH1 * tb, WIDE) for ky in range(K)], axis=-1)  # (12*tb, 160)

    ce = jnp.dot(lhs1, w1b_ref[0], preferred_element_type=f32)   # conv1 at ox = 2x'    (12*tb, 384)
    co = jnp.dot(lhs1, w1b_ref[1], preferred_element_type=f32)   # conv1 at ox = 2x'+1
    cx = jnp.maximum(ce, co)                                     # pool over xp (elementwise)
    cxr = cx.reshape(PH1, 2, tb, N1)                             # rows were oy*tb+s, oy = 2y'+yp
    p1 = jnp.maximum(cxr[:, 0], cxr[:, 1]).reshape(PH1 * tb, N1) + b1_ref[...]
    # p1: rows (y', s), lanes (x', c1); bias added once after the max (spatially constant).

    # ---- conv2 + maxpool2 --------------------------------------------------
    # Big-K formulation: lane-concat 5 aligned row slabs of p1 -> (2*tb, 1920), one bf16 dot
    # against the banded conv2 weight (rows (ky,x',c1), cols (qx,c2)); rows of q are qy.
    p1b = p1.astype(bf16)
    lhs2 = jnp.concatenate(
        [p1b[ky * tb:(ky + 2) * tb] for ky in range(K)], axis=-1)      # (2*tb, 1920)
    q = jnp.dot(lhs2, w2b_ref[...], preferred_element_type=f32)        # (2*tb, 64)
    spa = jnp.maximum(jnp.maximum(q[:tb, :C2], q[:tb, C2:]),
                      jnp.maximum(q[tb:, :C2], q[tb:, C2:])) + b2_ref[...]   # (tb, 32)

    # ---- MLP heads: bf16 MXU matmuls, f32 accumulation + elementwise -------
    def lrelu(v):                       # LeakyReLU(0.01); Dropout(p=0.5) = identity (eval)
        return jnp.maximum(v, 0.01 * v)

    def sig(v):                         # exp + approx reciprocal -> both live on the EUP
        return pl.reciprocal(1.0 + jnp.exp(-v), approx=True)

    def lin(x, w_ref, b_ref):
        return jnp.dot(x.astype(bf16), w_ref[...], preferred_element_type=f32) + b_ref[...]

    spa_h = lin(lrelu(spa), wsh_ref, bsh_ref)                 # (tb, 1024)
    obj_h = lin(obj_ref[...], woh_ref, boh_ref)               # (tb, 1024)
    pose_h = lin(pose_ref[...], wph_ref, bph_ref)             # (tb, 1024)

    spa_s = lin(lrelu(spa_h), wsc_ref, bsc_ref)               # spa & obj share spa_classifier
    obj_s = lin(lrelu(obj_h), wsc_ref, bsc_ref)
    pose_s = lin(lrelu(pose_h), wpc_ref, bpc_ref)

    hoi_ref[...] = sig(spa_s) * sig(obj_s) * sig(pose_s)


# ---------------------------------------------------------------------------
# Full SpaLan forward (inference path)
# ---------------------------------------------------------------------------
def _block_size(b):
    # multiple of 16 (bf16 sublane tile); aim for >=2 grid steps so both v7x TCs get work
    return max(16, min(128, _round_up(-(-b // 2), 16)))


def _spalan_forward_impl(params, spa_map_nchw, obj_vec, pose_feat, num_hoi_class):
    b = spa_map_nchw.shape[0]
    tb = _block_size(b)
    nblk = -(-b // tb)
    bp = nblk * tb
    nhp = params["w_spa_cls"].shape[1]    # class dim padded to a multiple of 128 (lane-dense store)
    no = obj_vec.shape[1]
    nkp = pose_feat.shape[1]

    # NCHW -> (H, B, W*C) bf16: the only spa-map tensor streamed from HBM (no im2col blowup).
    xmap = jnp.transpose(spa_map_nchw, (2, 0, 3, 1)).reshape(H_IN, b, WIDE)
    if bp != b:
        xmap = jnp.pad(xmap, ((0, 0), (0, bp - b), (0, 0)))
        obj_vec = jnp.pad(obj_vec, ((0, bp - b), (0, 0)))
        pose_feat = jnp.pad(pose_feat, ((0, bp - b), (0, 0)))
    xmap = xmap.astype(jnp.bfloat16)

    def resident(shape):                 # full-array weight block, constant index map -> stays in VMEM
        zero = (0,) * len(shape)
        return pl.BlockSpec(shape, lambda i, z=zero: z)

    grid_spec = pltpu.PrefetchScalarGridSpec(
        num_scalar_prefetch=0,
        grid=(nblk,),
        in_specs=[
            pl.BlockSpec((H_IN, tb, WIDE), lambda i: (0, i, 0)),
            pl.BlockSpec((tb, no), lambda i: (i, 0)),
            pl.BlockSpec((tb, nkp), lambda i: (i, 0)),
            resident((2, K1, N1)), resident((1, N1)),
            resident((K2, N2)), resident((1, C2)),
            resident((SPA_FEAT_DIM, HIDDEN)), resident((1, HIDDEN)),
            resident((no, HIDDEN)), resident((1, HIDDEN)),
            resident((nkp, HIDDEN)), resident((1, HIDDEN)),
            resident((HIDDEN, nhp)), resident((1, nhp)),
            resident((HIDDEN, nhp)), resident((1, nhp)),
        ],
        out_specs=pl.BlockSpec((tb, nhp), lambda i: (i, 0)),
    )

    hoi_padded = pl.pallas_call(
        functools.partial(spalan_kernel, tb=tb),
        out_shape=jax.ShapeDtypeStruct((bp, nhp), jnp.float32),
        grid_spec=grid_spec,
        compiler_params=pltpu.CompilerParams(
            dimension_semantics=("parallel",),
            vmem_limit_bytes=40 * 1024 * 1024),
    )(xmap, obj_vec, pose_feat,
      params["w1_band"], params["b1_tiled"], params["w2_band"], params["b2"],
      params["w_spa_h"], params["b_spa_h"],
      params["w_obj_h"], params["b_obj_h"],
      params["w_pose_h"], params["b_pose_h"],
      params["w_spa_cls"], params["b_spa_cls"],
      params["w_pose_cls"], params["b_pose_cls"])

    hoi_prob = hoi_padded[:b, :num_hoi_class]
    bin_prob = jnp.zeros((b,), jnp.float32)
    zeros1 = jnp.zeros((1,), jnp.float32)
    # (bin_prob, hoi_prob, loss_bin, loss_cls, bin_error, hoi_error)
    return bin_prob, hoi_prob, zeros1, zeros1, zeros1, zeros1


spalan_forward = jax.jit(_spalan_forward_impl, static_argnames=("num_hoi_class",))


# ---------------------------------------------------------------------------
# Deterministic parameter initialization (matches _initialize_weights statistics).
# Conv & linear weights stored bf16 (MXU path); biases stay f32.  The conv weights are
# additionally pre-baked into "banded" matrices that fold the x-direction sliding window
# into the matmul RHS (zero-padded outside the band), and the classifier weights/biases
# are zero-padded on the class dim to a multiple of 128.
# ---------------------------------------------------------------------------
def init_params(key, *, num_hoi_class, num_obj_class, num_key_point):
    ks = jax.random.split(key, 7)
    nhp = _round_up(num_hoi_class, LANE)

    # Conv2d: N(0, sqrt(2 / (kh*kw*out_channels))), bias 0.
    w1 = (jax.random.normal(ks[0], (K, K, C_IN, C1), jnp.float32)
          * math.sqrt(2.0 / (K * K * C1))).astype(jnp.bfloat16)
    w2 = (jax.random.normal(ks[1], (K, K, C1, C2), jnp.float32)
          * math.sqrt(2.0 / (K * K * C2))).astype(jnp.bfloat16)
    b1 = jnp.zeros((1, C1), jnp.float32)
    b2 = jnp.zeros((1, C2), jnp.float32)

    # Banded conv1 RHS (2, 160, 384): rows (ky, x, c), cols (x', c1); band 0 -> ox=2x', band 1 -> ox=2x'+1.
    w1f = w1.astype(jnp.float32)
    w1band = jnp.zeros((2, K, W_IN, C_IN, PW1, C1), jnp.float32)
    for par in range(2):
        for xp in range(PW1):
            ox = 2 * xp + par
            w1band = w1band.at[par, :, ox:ox + K, :, xp, :].set(w1f)
    w1band = w1band.reshape(2, K1, N1).astype(jnp.bfloat16)

    # Banded conv2 RHS (1920, 64): rows (ky, x', c1), cols (qx, c2).
    w2f = w2.astype(jnp.float32)
    w2band = jnp.zeros((K, PW1, C1, 2, C2), jnp.float32)
    for qx in range(2):
        w2band = w2band.at[:, qx:qx + K, :, qx, :].set(w2f)
    w2band = w2band.reshape(K2, N2).astype(jnp.bfloat16)

    # Linear: N(0, 0.01), bias 0.  Stored (in, out) bf16.
    lin = lambda k, i, o: (jax.random.normal(k, (i, o), jnp.float32) * 0.01).astype(jnp.bfloat16)
    pad_cls = lambda w: jnp.pad(w, ((0, 0), (0, nhp - num_hoi_class)))

    return dict(
        w1=w1, w2=w2, b1=b1, b2=b2,
        w1_band=w1band, b1_tiled=jnp.tile(b1, (1, PW1)),      # (1, 384) bias tiled over x'
        w2_band=w2band,
        w_spa_h=lin(ks[2], SPA_FEAT_DIM, HIDDEN), b_spa_h=jnp.zeros((1, HIDDEN), jnp.float32),
        w_spa_cls=pad_cls(lin(ks[3], HIDDEN, num_hoi_class)), b_spa_cls=jnp.zeros((1, nhp), jnp.float32),
        w_obj_h=lin(ks[4], num_obj_class, HIDDEN), b_obj_h=jnp.zeros((1, HIDDEN), jnp.float32),
        w_pose_h=lin(ks[5], num_key_point, HIDDEN), b_pose_h=jnp.zeros((1, HIDDEN), jnp.float32),
        w_pose_cls=pad_cls(lin(ks[6], HIDDEN, num_hoi_class)), b_pose_cls=jnp.zeros((1, nhp), jnp.float32),
    )


# ---------------------------------------------------------------------------
# Pure-JAX reference (correctness check of hoi_prob)
# ---------------------------------------------------------------------------
def reference_hoi_prob(params, spa_map_nchw, obj_vec, pose_feat, num_hoi_class):
    lrelu = lambda v: jnp.maximum(v, 0.01 * v)
    sig = lambda v: 1.0 / (1.0 + jnp.exp(-v))
    f32 = lambda w: w.astype(jnp.float32)
    x = jnp.transpose(spa_map_nchw, (0, 2, 3, 1))
    c1 = lax.conv_general_dilated(x, f32(params["w1"]), (1, 1), "VALID",
                                  dimension_numbers=("NHWC", "HWIO", "NHWC")) \
        + params["b1"].reshape(1, 1, 1, C1)
    p1 = lax.reduce_window(c1, -jnp.inf, lax.max, (1, 2, 2, 1), (1, 2, 2, 1), "VALID")
    c2 = lax.conv_general_dilated(p1, f32(params["w2"]), (1, 1), "VALID",
                                  dimension_numbers=("NHWC", "HWIO", "NHWC")) \
        + params["b2"].reshape(1, 1, 1, C2)
    p2 = lax.reduce_window(c2, -jnp.inf, lax.max, (1, 2, 2, 1), (1, 2, 2, 1), "VALID")
    spa_vec = p2.reshape(p2.shape[0], -1)

    spa_h = lrelu(spa_vec) @ f32(params["w_spa_h"]) + params["b_spa_h"]
    spa_prob = sig(lrelu(spa_h) @ f32(params["w_spa_cls"]) + params["b_spa_cls"])
    obj_h = obj_vec @ f32(params["w_obj_h"]) + params["b_obj_h"]
    obj_prob = sig(lrelu(obj_h) @ f32(params["w_spa_cls"]) + params["b_spa_cls"])
    pose_h = pose_feat @ f32(params["w_pose_h"]) + params["b_pose_h"]
    pose_prob = sig(lrelu(pose_h) @ f32(params["w_pose_cls"]) + params["b_pose_cls"])
    return (spa_prob * obj_prob * pose_prob)[:, :num_hoi_class]


if __name__ == "__main__":
    B = 2
    NUM_HOI_CLASS = 24
    NUM_OBJ_CLASS = 16
    NUM_KEY_POINT = 8

    root = jax.random.PRNGKey(0)
    k_params, k_spa, k_obj, k_pose = jax.random.split(root, 4)

    params = init_params(k_params, num_hoi_class=NUM_HOI_CLASS,
                         num_obj_class=NUM_OBJ_CLASS, num_key_point=NUM_KEY_POINT)

    spa_map = jax.random.normal(k_spa, (B, C_IN, H_IN, W_IN), jnp.float32)  # NCHW like PyTorch
    obj_vec = jax.random.normal(k_obj, (B, NUM_OBJ_CLASS), jnp.float32)
    pose_feat = jax.random.normal(k_pose, (B, NUM_KEY_POINT), jnp.float32)

    bin_prob, hoi_prob, loss_bin, loss_cls, bin_error, hoi_error = spalan_forward(
        params, spa_map, obj_vec, pose_feat, NUM_HOI_CLASS)
    jax.block_until_ready(hoi_prob)

    ref = reference_hoi_prob(params, spa_map, obj_vec, pose_feat, NUM_HOI_CLASS)
    assert hoi_prob.shape == (B, NUM_HOI_CLASS)
    assert bin_prob.shape == (B,)
    assert jnp.allclose(hoi_prob, ref, atol=2e-3, rtol=2e-2), "mismatch vs pure-JAX reference"

    print("KERNEL_OK")
</pallas_src>

<mosaic_0001>
module attributes {stable_mosaic.version = 11 : i64} {
  func.func @spalan_kernel(%arg0: i32, %arg1: memref<16x16x32xbf16, #tpu.memory_space<vmem>>, %arg2: memref<16x16xf32, #tpu.memory_space<vmem>>, %arg3: memref<16x8xf32, #tpu.memory_space<vmem>>, %arg4: memref<2x160x384xbf16, #tpu.memory_space<vmem>>, %arg5: memref<1x384xf32, #tpu.memory_space<vmem>>, %arg6: memref<1920x64xbf16, #tpu.memory_space<vmem>>, %arg7: memref<1x32xf32, #tpu.memory_space<vmem>>, %arg8: memref<32x1024xbf16, #tpu.memory_space<vmem>>, %arg9: memref<1x1024xf32, #tpu.memory_space<vmem>>, %arg10: memref<16x1024xbf16, #tpu.memory_space<vmem>>, %arg11: memref<1x1024xf32, #tpu.memory_space<vmem>>, %arg12: memref<8x1024xbf16, #tpu.memory_space<vmem>>, %arg13: memref<1x1024xf32, #tpu.memory_space<vmem>>, %arg14: memref<1024x128xbf16, #tpu.memory_space<vmem>>, %arg15: memref<1x128xf32, #tpu.memory_space<vmem>>, %arg16: memref<1024x128xbf16, #tpu.memory_space<vmem>>, %arg17: memref<1x128xf32, #tpu.memory_space<vmem>>, %arg18: memref<16x128xf32, #tpu.memory_space<vmem>>) attributes {dimension_semantics = [#tpu.dimension_semantics<parallel>], iteration_bounds = array<i64: 1>, scalar_prefetch = 0 : i64, scratch_operands = 0 : i64, tpu.core_type = #tpu.core_type<tc>, window_params = [{transform_indices = @transform_0, window_bounds = array<i64: 16, 16, 32>}, {transform_indices = @transform_1, window_bounds = array<i64: 16, 16>}, {transform_indices = @transform_2, window_bounds = array<i64: 16, 8>}, {pipeline_mode = #tpu.pipeline_mode<synchronous>, transform_indices = @transform_3, window_bounds = array<i64: 2, 160, 384>}, {pipeline_mode = #tpu.pipeline_mode<synchronous>, transform_indices = @transform_4, window_bounds = array<i64: 1, 384>}, {pipeline_mode = #tpu.pipeline_mode<synchronous>, transform_indices = @transform_5, window_bounds = array<i64: 1920, 64>}, {pipeline_mode = #tpu.pipeline_mode<synchronous>, transform_indices = @transform_6, window_bounds = array<i64: 1, 32>}, {pipeline_mode = #tpu.pipeline_mode<synchronous>, transform_indices = @transform_7, window_bounds = array<i64: 32, 1024>}, {pipeline_mode = #tpu.pipeline_mode<synchronous>, transform_indices = @transform_8, window_bounds = array<i64: 1, 1024>}, {pipeline_mode = #tpu.pipeline_mode<synchronous>, transform_indices = @transform_9, window_bounds = array<i64: 16, 1024>}, {pipeline_mode = #tpu.pipeline_mode<synchronous>, transform_indices = @transform_10, window_bounds = array<i64: 1, 1024>}, {pipeline_mode = #tpu.pipeline_mode<synchronous>, transform_indices = @transform_11, window_bounds = array<i64: 8, 1024>}, {pipeline_mode = #tpu.pipeline_mode<synchronous>, transform_indices = @transform_12, window_bounds = array<i64: 1, 1024>}, {pipeline_mode = #tpu.pipeline_mode<synchronous>, transform_indices = @transform_13, window_bounds = array<i64: 1024, 128>}, {pipeline_mode = #tpu.pipeline_mode<synchronous>, transform_indices = @transform_14, window_bounds = array<i64: 1, 128>}, {pipeline_mode = #tpu.pipeline_mode<synchronous>, transform_indices = @transform_15, window_bounds = array<i64: 1024, 128>}, {pipeline_mode = #tpu.pipeline_mode<synchronous>, transform_indices = @transform_16, window_bounds = array<i64: 1, 128>}, {transform_indices = @transform_17, window_bounds = array<i64: 16, 128>}]} {
    %c0 = arith.constant 0 : index
    %c0_0 = arith.constant 0 : index
    %c0_1 = arith.constant 0 : index
    %0 = vector.load %arg1[%c0, %c0_0, %c0_1] : memref<16x16x32xbf16, #tpu.memory_space<vmem>>, vector<16x16x32xbf16>
    %1 = vector.extract_strided_slice %0 {offsets = [0, 0, 0], sizes = [12, 16, 32], strides = [1, 1, 1]} : vector<16x16x32xbf16> to vector<12x16x32xbf16>
    %2 = vector.shape_cast %1 : vector<12x16x32xbf16> to vector<192x32xbf16>
    %3 = vector.extract_strided_slice %0 {offsets = [1, 0, 0], sizes = [12, 16, 32], strides = [1, 1, 1]} : vector<16x16x32xbf16> to vector<12x16x32xbf16>
    %4 = vector.shape_cast %3 : vector<12x16x32xbf16> to vector<192x32xbf16>
    %5 = vector.extract_strided_slice %0 {offsets = [2, 0, 0], sizes = [12, 16, 32], strides = [1, 1, 1]} : vector<16x16x32xbf16> to vector<12x16x32xbf16>
    %6 = vector.shape_cast %5 : vector<12x16x32xbf16> to vector<192x32xbf16>
    %7 = vector.extract_strided_slice %0 {offsets = [3, 0, 0], sizes = [12, 16, 32], strides = [1, 1, 1]} : vector<16x16x32xbf16> to vector<12x16x32xbf16>
    %8 = vector.shape_cast %7 : vector<12x16x32xbf16> to vector<192x32xbf16>
    %9 = vector.extract_strided_slice %0 {offsets = [4, 0, 0], sizes = [12, 16, 32], strides = [1, 1, 1]} : vector<16x16x32xbf16> to vector<12x16x32xbf16>
    %10 = vector.shape_cast %9 : vector<12x16x32xbf16> to vector<192x32xbf16>
    %11 = tpu.concatenate %2, %4, %6, %8, %10 in 1 : vector<192x32xbf16>, vector<192x32xbf16>, vector<192x32xbf16>, vector<192x32xbf16>, vector<192x32xbf16> -> vector<192x160xbf16>
    %c0_2 = arith.constant 0 : index
    %c0_3 = arith.constant 0 : index
    %c0_4 = arith.constant 0 : index
    %12 = vector.load %arg4[%c0_2, %c0_3, %c0_4] : memref<2x160x384xbf16, #tpu.memory_space<vmem>>, vector<1x160x384xbf16>
    %13 = vector.shape_cast %12 : vector<1x160x384xbf16> to vector<160x384xbf16>
    %cst = arith.constant dense<0.000000e+00> : vector<192x384xf32>
    %14 = tpu.matmul %11, %13, %cst {dimension_numbers = #tpu.dot_dimension_numbers<[1], [0], [0], [1], [0, 0, 1, 1], [], []>} : vector<192x160xbf16>, vector<160x384xbf16>, vector<192x384xf32> -> vector<192x384xf32>
    %c1 = arith.constant 1 : index
    %c0_5 = arith.constant 0 : index
    %c0_6 = arith.constant 0 : index
    %15 = vector.load %arg4[%c1, %c0_5, %c0_6] : memref<2x160x384xbf16, #tpu.memory_space<vmem>>, vector<1x160x384xbf16>
    %16 = vector.shape_cast %15 : vector<1x160x384xbf16> to vector<160x384xbf16>
    %cst_7 = arith.constant dense<0.000000e+00> : vector<192x384xf32>
    %17 = tpu.matmul %11, %16, %cst_7 {dimension_numbers = #tpu.dot_dimension_numbers<[1], [0], [0], [1], [0, 0, 1, 1], [], []>} : vector<192x160xbf16>, vector<160x384xbf16>, vector<192x384xf32> -> vector<192x384xf32>
    %18 = arith.maximumf %14, %17 : vector<192x384xf32>
    %19 = vector.shape_cast %18 : vector<192x384xf32> to vector<6x2x16x384xf32>
    %20 = vector.extract_strided_slice %19 {offsets = [0, 0, 0, 0], sizes = [6, 1, 16, 384], strides = [1, 1, 1, 1]} : vector<6x2x16x384xf32> to vector<6x1x16x384xf32>
    %21 = vector.shape_cast %20 : vector<6x1x16x384xf32> to vector<6x16x384xf32>
    %22 = vector.extract_strided_slice %19 {offsets = [0, 1, 0, 0], sizes = [6, 1, 16, 384], strides = [1, 1, 1, 1]} : vector<6x2x16x384xf32> to vector<6x1x16x384xf32>
    %23 = vector.shape_cast %22 : vector<6x1x16x384xf32> to vector<6x16x384xf32>
    %24 = arith.maximumf %21, %23 : vector<6x16x384xf32>
    %25 = vector.shape_cast %24 : vector<6x16x384xf32> to vector<96x384xf32>
    %c0_8 = arith.constant 0 : index
    %c0_9 = arith.constant 0 : index
    %26 = vector.load %arg5[%c0_8, %c0_9] : memref<1x384xf32, #tpu.memory_space<vmem>>, vector<1x384xf32>
    %27 = vector.broadcast %26 : vector<1x384xf32> to vector<96x384xf32>
    %28 = arith.addf %25, %27 : vector<96x384xf32>
    %29 = arith.truncf %28 : vector<96x384xf32> to vector<96x384xbf16>
    %30 = vector.extract_strided_slice %29 {offsets = [0, 0], sizes = [32, 384], strides = [1, 1]} : vector<96x384xbf16> to vector<32x384xbf16>
    %31 = vector.extract_strided_slice %29 {offsets = [16, 0], sizes = [32, 384], strides = [1, 1]} : vector<96x384xbf16> to vector<32x384xbf16>
    %32 = vector.extract_strided_slice %29 {offsets = [32, 0], sizes = [32, 384], strides = [1, 1]} : vector<96x384xbf16> to vector<32x384xbf16>
    %33 = vector.extract_strided_slice %29 {offsets = [48, 0], sizes = [32, 384], strides = [1, 1]} : vector<96x384xbf16> to vector<32x384xbf16>
    %34 = vector.extract_strided_slice %29 {offsets = [64, 0], sizes = [32, 384], strides = [1, 1]} : vector<96x384xbf16> to vector<32x384xbf16>
    %35 = tpu.concatenate %30, %31, %32, %33, %34 in 1 : vector<32x384xbf16>, vector<32x384xbf16>, vector<32x384xbf16>, vector<32x384xbf16>, vector<32x384xbf16> -> vector<32x1920xbf16>
    %c0_10 = arith.constant 0 : index
    %c0_11 = arith.constant 0 : index
    %36 = vector.load %arg6[%c0_10, %c0_11] : memref<1920x64xbf16, #tpu.memory_space<vmem>>, vector<1920x64xbf16>
    %cst_12 = arith.constant dense<0.000000e+00> : vector<32x64xf32>
    %37 = tpu.matmul %35, %36, %cst_12 {dimension_numbers = #tpu.dot_dimension_numbers<[1], [0], [0], [1], [0, 0, 1, 1], [], []>} : vector<32x1920xbf16>, vector<1920x64xbf16>, vector<32x64xf32> -> vector<32x64xf32>
    %38 = vector.extract_strided_slice %37 {offsets = [0, 0], sizes = [16, 32], strides = [1, 1]} : vector<32x64xf32> to vector<16x32xf32>
    %39 = vector.extract_strided_slice %37 {offsets = [0, 32], sizes = [16, 32], strides = [1, 1]} : vector<32x64xf32> to vector<16x32xf32>
    %40 = arith.maximumf %38, %39 : vector<16x32xf32>
    %41 = vector.extract_strided_slice %37 {offsets = [16, 0], sizes = [16, 32], strides = [1, 1]} : vector<32x64xf32> to vector<16x32xf32>
    %42 = vector.extract_strided_slice %37 {offsets = [16, 32], sizes = [16, 32], strides = [1, 1]} : vector<32x64xf32> to vector<16x32xf32>
    %43 = arith.maximumf %41, %42 : vector<16x32xf32>
    %44 = arith.maximumf %40, %43 : vector<16x32xf32>
    %c0_13 = arith.constant 0 : index
    %c0_14 = arith.constant 0 : index
    %45 = vector.load %arg7[%c0_13, %c0_14] : memref<1x32xf32, #tpu.memory_space<vmem>>, vector<1x32xf32>
    %46 = vector.broadcast %45 : vector<1x32xf32> to vector<16x32xf32>
    %47 = arith.addf %44, %46 : vector<16x32xf32>
    %cst_15 = arith.constant 0.00999999977 : f32
    %48 = vector.broadcast %cst_15 : f32 to vector<16x32xf32>
    %49 = arith.mulf %48, %47 : vector<16x32xf32>
    %50 = arith.maximumf %47, %49 : vector<16x32xf32>
    %51 = arith.truncf %50 : vector<16x32xf32> to vector<16x32xbf16>
    %c0_16 = arith.constant 0 : index
    %c0_17 = arith.constant 0 : index
    %52 = vector.load %arg8[%c0_16, %c0_17] : memref<32x1024xbf16, #tpu.memory_space<vmem>>, vector<32x1024xbf16>
    %cst_18 = arith.constant dense<0.000000e+00> : vector<16x1024xf32>
    %53 = tpu.matmul %51, %52, %cst_18 {dimension_numbers = #tpu.dot_dimension_numbers<[1], [0], [0], [1], [0, 0, 1, 1], [], []>} : vector<16x32xbf16>, vector<32x1024xbf16>, vector<16x1024xf32> -> vector<16x1024xf32>
    %c0_19 = arith.constant 0 : index
    %c0_20 = arith.constant 0 : index
    %54 = vector.load %arg9[%c0_19, %c0_20] : memref<1x1024xf32, #tpu.memory_space<vmem>>, vector<1x1024xf32>
    %55 = vector.broadcast %54 : vector<1x1024xf32> to vector<16x1024xf32>
    %56 = arith.addf %53, %55 : vector<16x1024xf32>
    %c0_21 = arith.constant 0 : index
    %c0_22 = arith.constant 0 : index
    %57 = vector.load %arg2[%c0_21, %c0_22] : memref<16x16xf32, #tpu.memory_space<vmem>>, vector<16x16xf32>
    %58 = arith.truncf %57 : vector<16x16xf32> to vector<16x16xbf16>
    %c0_23 = arith.constant 0 : index
    %c0_24 = arith.constant 0 : index
    %59 = vector.load %arg10[%c0_23, %c0_24] : memref<16x1024xbf16, #tpu.memory_space<vmem>>, vector<16x1024xbf16>
    %cst_25 = arith.constant dense<0.000000e+00> : vector<16x1024xf32>
    %60 = tpu.matmul %58, %59, %cst_25 {dimension_numbers = #tpu.dot_dimension_numbers<[1], [0], [0], [1], [0, 0, 1, 1], [], []>} : vector<16x16xbf16>, vector<16x1024xbf16>, vector<16x1024xf32> -> vector<16x1024xf32>
    %c0_26 = arith.constant 0 : index
    %c0_27 = arith.constant 0 : index
    %61 = vector.load %arg11[%c0_26, %c0_27] : memref<1x1024xf32, #tpu.memory_space<vmem>>, vector<1x1024xf32>
    %62 = vector.broadcast %61 : vector<1x1024xf32> to vector<16x1024xf32>
    %63 = arith.addf %60, %62 : vector<16x1024xf32>
    %c0_28 = arith.constant 0 : index
    %c0_29 = arith.constant 0 : index
    %64 = vector.load %arg3[%c0_28, %c0_29] : memref<16x8xf32, #tpu.memory_space<vmem>>, vector<16x8xf32>
    %65 = arith.truncf %64 : vector<16x8xf32> to vector<16x8xbf16>
    %c0_30 = arith.constant 0 : index
    %c0_31 = arith.constant 0 : index
    %66 = vector.load %arg12[%c0_30, %c0_31] : memref<8x1024xbf16, #tpu.memory_space<vmem>>, vector<8x1024xbf16>
    %cst_32 = arith.constant dense<0.000000e+00> : vector<16x1024xf32>
    %67 = tpu.matmul %65, %66, %cst_32 {dimension_numbers = #tpu.dot_dimension_numbers<[1], [0], [0], [1], [0, 0, 1, 1], [], []>} : vector<16x8xbf16>, vector<8x1024xbf16>, vector<16x1024xf32> -> vector<16x1024xf32>
    %c0_33 = arith.constant 0 : index
    %c0_34 = arith.constant 0 : index
    %68 = vector.load %arg13[%c0_33, %c0_34] : memref<1x1024xf32, #tpu.memory_space<vmem>>, vector<1x1024xf32>
    %69 = vector.broadcast %68 : vector<1x1024xf32> to vector<16x1024xf32>
    %70 = arith.addf %67, %69 : vector<16x1024xf32>
    %cst_35 = arith.constant 0.00999999977 : f32
    %71 = vector.broadcast %cst_35 : f32 to vector<16x1024xf32>
    %72 = arith.mulf %71, %56 : vector<16x1024xf32>
    %73 = arith.maximumf %56, %72 : vector<16x1024xf32>
    %74 = arith.truncf %73 : vector<16x1024xf32> to vector<16x1024xbf16>
    %c0_36 = arith.constant 0 : index
    %c0_37 = arith.constant 0 : index
    %75 = vector.load %arg14[%c0_36, %c0_37] : memref<1024x128xbf16, #tpu.memory_space<vmem>>, vector<1024x128xbf16>
    %cst_38 = arith.constant dense<0.000000e+00> : vector<16x128xf32>
    %76 = tpu.matmul %74, %75, %cst_38 {dimension_numbers = #tpu.dot_dimension_numbers<[1], [0], [0], [1], [0, 0, 1, 1], [], []>} : vector<16x1024xbf16>, vector<1024x128xbf16>, vector<16x128xf32> -> vector<16x128xf32>
    %c0_39 = arith.constant 0 : index
    %c0_40 = arith.constant 0 : index
    %77 = vector.load %arg15[%c0_39, %c0_40] : memref<1x128xf32, #tpu.memory_space<vmem>>, vector<1x128xf32>
    %78 = vector.broadcast %77 : vector<1x128xf32> to vector<16x128xf32>
    %79 = arith.addf %76, %78 : vector<16x128xf32>
    %cst_41 = arith.constant 0.00999999977 : f32
    %80 = vector.broadcast %cst_41 : f32 to vector<16x1024xf32>
    %81 = arith.mulf %80, %63 : vector<16x1024xf32>
    %82 = arith.maximumf %63, %81 : vector<16x1024xf32>
    %83 = arith.truncf %82 : vector<16x1024xf32> to vector<16x1024xbf16>
    %c0_42 = arith.constant 0 : index
    %c0_43 = arith.constant 0 : index
    %84 = vector.load %arg14[%c0_42, %c0_43] : memref<1024x128xbf16, #tpu.memory_space<vmem>>, vector<1024x128xbf16>
    %cst_44 = arith.constant dense<0.000000e+00> : vector<16x128xf32>
    %85 = tpu.matmul %83, %84, %cst_44 {dimension_numbers = #tpu.dot_dimension_numbers<[1], [0], [0], [1], [0, 0, 1, 1], [], []>} : vector<16x1024xbf16>, vector<1024x128xbf16>, vector<16x128xf32> -> vector<16x128xf32>
    %c0_45 = arith.constant 0 : index
    %c0_46 = arith.constant 0 : index
    %86 = vector.load %arg15[%c0_45, %c0_46] : memref<1x128xf32, #tpu.memory_space<vmem>>, vector<1x128xf32>
    %87 = vector.broadcast %86 : vector<1x128xf32> to vector<16x128xf32>
    %88 = arith.addf %85, %87 : vector<16x128xf32>
    %cst_47 = arith.constant 0.00999999977 : f32
    %89 = vector.broadcast %cst_47 : f32 to vector<16x1024xf32>
    %90 = arith.mulf %89, %70 : vector<16x1024xf32>
    %91 = arith.maximumf %70, %90 : vector<16x1024xf32>
    %92 = arith.truncf %91 : vector<16x1024xf32> to vector<16x1024xbf16>
    %c0_48 = arith.constant 0 : index
    %c0_49 = arith.constant 0 : index
    %93 = vector.load %arg16[%c0_48, %c0_49] : memref<1024x128xbf16, #tpu.memory_space<vmem>>, vector<1024x128xbf16>
    %cst_50 = arith.constant dense<0.000000e+00> : vector<16x128xf32>
    %94 = tpu.matmul %92, %93, %cst_50 {dimension_numbers = #tpu.dot_dimension_numbers<[1], [0], [0], [1], [0, 0, 1, 1], [], []>} : vector<16x1024xbf16>, vector<1024x128xbf16>, vector<16x128xf32> -> vector<16x128xf32>
    %c0_51 = arith.constant 0 : index
    %c0_52 = arith.constant 0 : index
    %95 = vector.load %arg17[%c0_51, %c0_52] : memref<1x128xf32, #tpu.memory_space<vmem>>, vector<1x128xf32>
    %96 = vector.broadcast %95 : vector<1x128xf32> to vector<16x128xf32>
    %97 = arith.addf %94, %96 : vector<16x128xf32>
    %cst_53 = arith.constant 0.000000e+00 : f32
    %98 = vector.broadcast %cst_53 : f32 to vector<16x128xf32>
    %99 = arith.subf %98, %79 : vector<16x128xf32>
    %100 = math.exp %99 : vector<16x128xf32>
    %cst_54 = arith.constant 1.000000e+00 : f32
    %101 = vector.broadcast %cst_54 : f32 to vector<16x128xf32>
    %102 = arith.addf %101, %100 : vector<16x128xf32>
    %103 = tpu.reciprocal %102 {approx = true} : vector<16x128xf32> -> vector<16x128xf32>
    %cst_55 = arith.constant 0.000000e+00 : f32
    %104 = vector.broadcast %cst_55 : f32 to vector<16x128xf32>
    %105 = arith.subf %104, %88 : vector<16x128xf32>
    %106 = math.exp %105 : vector<16x128xf32>
    %cst_56 = arith.constant 1.000000e+00 : f32
    %107 = vector.broadcast %cst_56 : f32 to vector<16x128xf32>
    %108 = arith.addf %107, %106 : vector<16x128xf32>
    %109 = tpu.reciprocal %108 {approx = true} : vector<16x128xf32> -> vector<16x128xf32>
    %110 = arith.mulf %103, %109 : vector<16x128xf32>
    %cst_57 = arith.constant 0.000000e+00 : f32
    %111 = vector.broadcast %cst_57 : f32 to vector<16x128xf32>
    %112 = arith.subf %111, %97 : vector<16x128xf32>
    %113 = math.exp %112 : vector<16x128xf32>
    %cst_58 = arith.constant 1.000000e+00 : f32
    %114 = vector.broadcast %cst_58 : f32 to vector<16x128xf32>
    %115 = arith.addf %114, %113 : vector<16x128xf32>
    %116 = tpu.reciprocal %115 {approx = true} : vector<16x128xf32> -> vector<16x128xf32>
    %117 = arith.mulf %110, %116 : vector<16x128xf32>
    %c0_59 = arith.constant 0 : index
    %c0_60 = arith.constant 0 : index
    %118 = vector.load %arg18[%c0_59, %c0_60] : memref<16x128xf32, #tpu.memory_space<vmem>>, vector<16x128xf32>
    tpu.vector_store %arg18[%c0_59, %c0_60], %117 {strides = array<i32>} : memref<16x128xf32, #tpu.memory_space<vmem>>, vector<16x128xf32>,
    return
  }
  func.func @transform_0(%arg0: i32) -> (i32, i32, i32) {
    %c0_i32 = arith.constant 0 : i32
    %c0_i32_0 = arith.constant 0 : i32
    %c0_i32_1 = arith.constant 0 : i32
    return %c0_i32, %arg0, %c0_i32_0 : i32, i32, i32
  }
  func.func @transform_1(%arg0: i32) -> (i32, i32) {
    %c0_i32 = arith.constant 0 : i32
    %c0_i32_0 = arith.constant 0 : i32
    return %arg0, %c0_i32 : i32, i32
  }
  func.func @transform_2(%arg0: i32) -> (i32, i32) {
    %c0_i32 = arith.constant 0 : i32
    %c0_i32_0 = arith.constant 0 : i32
    return %arg0, %c0_i32 : i32, i32
  }
  func.func @transform_3(%arg0: i32) -> (i32, i32, i32) {
    %c0_i32 = arith.constant 0 : i32
    %c0_i32_0 = arith.constant 0 : i32
    %c0_i32_1 = arith.constant 0 : i32
    %c0_i32_2 = arith.constant 0 : i32
    return %c0_i32, %c0_i32_0, %c0_i32_1 : i32, i32, i32
  }
  func.func @transform_4(%arg0: i32) -> (i32, i32) {
    %c0_i32 = arith.constant 0 : i32
    %c0_i32_0 = arith.constant 0 : i32
    %c0_i32_1 = arith.constant 0 : i32
    return %c0_i32, %c0_i32_0 : i32, i32
  }
  func.func @transform_5(%arg0: i32) -> (i32, i32) {
    %c0_i32 = arith.constant 0 : i32
    %c0_i32_0 = arith.constant 0 : i32
    %c0_i32_1 = arith.constant 0 : i32
    return %c0_i32, %c0_i32_0 : i32, i32
  }
  func.func @transform_6(%arg0: i32) -> (i32, i32) {
    %c0_i32 = arith.constant 0 : i32
    %c0_i32_0 = arith.constant 0 : i32
    %c0_i32_1 = arith.constant 0 : i32
    return %c0_i32, %c0_i32_0 : i32, i32
  }
  func.func @transform_7(%arg0: i32) -> (i32, i32) {
    %c0_i32 = arith.constant 0 : i32
    %c0_i32_0 = arith.constant 0 : i32
    %c0_i32_1 = arith.constant 0 : i32
    return %c0_i32, %c0_i32_0 : i32, i32
  }
  func.func @transform_8(%arg0: i32) -> (i32, i32) {
    %c0_i32 = arith.constant 0 : i32
    %c0_i32_0 = arith.constant 0 : i32
    %c0_i32_1 = arith.constant 0 : i32
    return %c0_i32, %c0_i32_0 : i32, i32
  }
  func.func @transform_9(%arg0: i32) -> (i32, i32) {
    %c0_i32 = arith.constant 0 : i32
    %c0_i32_0 = arith.constant 0 : i32
    %c0_i32_1 = arith.constant 0 : i32
    return %c0_i32, %c0_i32_0 : i32, i32
  }
  func.func @transform_10(%arg0: i32) -> (i32, i32) {
    %c0_i32 = arith.constant 0 : i32
    %c0_i32_0 = arith.constant 0 : i32
    %c0_i32_1 = arith.constant 0 : i32
    return %c0_i32, %c0_i32_0 : i32, i32
  }
  func.func @transform_11(%arg0: i32) -> (i32, i32) {
    %c0_i32 = arith.constant 0 : i32
    %c0_i32_0 = arith.constant 0 : i32
    %c0_i32_1 = arith.constant 0 : i32
    return %c0_i32, %c0_i32_0 : i32, i32
  }
  func.func @transform_12(%arg0: i32) -> (i32, i32) {
    %c0_i32 = arith.constant 0 : i32
    %c0_i32_0 = arith.constant 0 : i32
    %c0_i32_1 = arith.constant 0 : i32
    return %c0_i32, %c0_i32_0 : i32, i32
  }
  func.func @transform_13(%arg0: i32) -> (i32, i32) {
    %c0_i32 = arith.constant 0 : i32
    %c0_i32_0 = arith.constant 0 : i32
    %c0_i32_1 = arith.constant 0 : i32
    return %c0_i32, %c0_i32_0 : i32, i32
  }
  func.func @transform_14(%arg0: i32) -> (i32, i32) {
    %c0_i32 = arith.constant 0 : i32
    %c0_i32_0 = arith.constant 0 : i32
    %c0_i32_1 = arith.constant 0 : i32
    return %c0_i32, %c0_i32_0 : i32, i32
  }
  func.func @transform_15(%arg0: i32) -> (i32, i32) {
    %c0_i32 = arith.constant 0 : i32
    %c0_i32_0 = arith.constant 0 : i32
    %c0_i32_1 = arith.constant 0 : i32
    return %c0_i32, %c0_i32_0 : i32, i32
  }
  func.func @transform_16(%arg0: i32) -> (i32, i32) {
    %c0_i32 = arith.constant 0 : i32
    %c0_i32_0 = arith.constant 0 : i32
    %c0_i32_1 = arith.constant 0 : i32
    return %c0_i32, %c0_i32_0 : i32, i32
  }
  func.func @transform_17(%arg0: i32) -> (i32, i32) {
    %c0_i32 = arith.constant 0 : i32
    %c0_i32_0 = arith.constant 0 : i32
    return %arg0, %c0_i32 : i32, i32
  }
}

</mosaic_0001>

<llo_original>
// kernel: _spalan_forward_impl.1
$region0: #{_spalan_forward_impl.1}
  #allocation0 [shape = 'u32[]', space=smem, size = 0x4, offset = 0x4, fixed_abs, tag = 'smem constant byte address 0x4 - core index']
  #allocation1 [shape = 'u32[144,128]{1,0:T(1,128)}', space=vmem, size = 0x12000, scoped, tag = 'internal scratch']
  %s0 = inlined_call_operand.vmem [shape: bf16[16,16,32], index: 0, kind: input, shape index: {}]
  %s1 = inlined_call_operand.vmem [shape: f32[16,16], index: 1, kind: input, shape index: {}]
  %s2 = inlined_call_operand.vmem [shape: f32[16,8], index: 2, kind: input, shape index: {}]
  %s3 = inlined_call_operand.vmem [shape: bf16[2,160,384], index: 3, kind: input, shape index: {}]
  %s4 = inlined_call_operand.vmem [shape: f32[1,384], index: 4, kind: input, shape index: {}]
  %s5 = inlined_call_operand.vmem [shape: bf16[1920,64], index: 5, kind: input, shape index: {}]
  %s6 = inlined_call_operand.vmem [shape: f32[1,32], index: 6, kind: input, shape index: {}]
  %s7 = inlined_call_operand.vmem [shape: bf16[32,1024], index: 7, kind: input, shape index: {}]
  %s8 = inlined_call_operand.vmem [shape: f32[1,1024], index: 8, kind: input, shape index: {}]
  %s9 = inlined_call_operand.vmem [shape: bf16[16,1024], index: 9, kind: input, shape index: {}]
  %s10 = inlined_call_operand.vmem [shape: f32[1,1024], index: 10, kind: input, shape index: {}]
  %s11 = inlined_call_operand.vmem [shape: bf16[8,1024], index: 11, kind: input, shape index: {}]
  %s12 = inlined_call_operand.vmem [shape: f32[1,1024], index: 12, kind: input, shape index: {}]
  %s13 = inlined_call_operand.vmem [shape: bf16[1024,128], index: 13, kind: input, shape index: {}]
  %s14 = inlined_call_operand.vmem [shape: f32[1,128], index: 14, kind: input, shape index: {}]
  %s15 = inlined_call_operand.vmem [shape: bf16[1024,128], index: 15, kind: input, shape index: {}]
  %s16 = inlined_call_operand.vmem [shape: f32[1,128], index: 16, kind: input, shape index: {}]
  %s17 = inlined_call_operand.vmem [shape: f32[16,128], index: 17, kind: output, shape index: {}]
  %s18 = sld [smem:[#allocation0]]
  $region78: #{_spalan_forward_impl.1} parent=0
    _
  %s20 = ssub.s32 1, %s18
  %s21 = scalar_select 0, %s20, %s18
  // Predicated region
  $region2: #{_spalan_forward_impl.1} parent=0 // pred_check
    _
  $region3: #{_spalan_forward_impl.1} parent=0 // pred_check_branch
    %23 = sbr.rel (0) target = $region5
  $region4: #{_spalan_forward_impl.1} parent=0 // pred_region
    _
  $region5: #{_spalan_forward_impl.1} parent=0 // pred_fallthru
    _
  // Predicated region
  $region6: #{_spalan_forward_impl.1} parent=0 // pred_check
    _
  $region7: #{_spalan_forward_impl.1} parent=0 // pred_check_branch
    %25 = sbr.rel (0) target = $region9
  $region8: #{_spalan_forward_impl.1} parent=0 // pred_region
    _
  $region9: #{_spalan_forward_impl.1} parent=0 // pred_fallthru
    _
  // Predicated region
  $region10: #{_spalan_forward_impl.1} parent=0 // pred_check
    _
  $region11: #{_spalan_forward_impl.1} parent=0 // pred_check_branch
    %27 = sbr.rel (0) target = $region13
  $region12: #{_spalan_forward_impl.1} parent=0 // pred_region
    _
  $region13: #{_spalan_forward_impl.1} parent=0 // pred_fallthru
    _
  // Predicated region
  $region14: #{_spalan_forward_impl.1} parent=0 // pred_check
    _
  $region15: #{_spalan_forward_impl.1} parent=0 // pred_check_branch
    %29 = sbr.rel (0) target = $region17
  $region16: #{_spalan_forward_impl.1} parent=0 // pred_region
    _
  $region17: #{_spalan_forward_impl.1} parent=0 // pred_fallthru
    _
  // Predicated region
  $region18: #{_spalan_forward_impl.1} parent=0 // pred_check
    _
  $region19: #{_spalan_forward_impl.1} parent=0 // pred_check_branch
    %31 = sbr.rel (0) target = $region21
  $region20: #{_spalan_forward_impl.1} parent=0 // pred_region
    _
  $region21: #{_spalan_forward_impl.1} parent=0 // pred_fallthru
    _
  // Predicated region
  $region22: #{_spalan_forward_impl.1} parent=0 // pred_check
    _
  $region23: #{_spalan_forward_impl.1} parent=0 // pred_check_branch
    %33 = sbr.rel (0) target = $region25
  $region24: #{_spalan_forward_impl.1} parent=0 // pred_region
    _
  $region25: #{_spalan_forward_impl.1} parent=0 // pred_fallthru
    _
  // Predicated region
  $region26: #{_spalan_forward_impl.1} parent=0 // pred_check
    _
  $region27: #{_spalan_forward_impl.1} parent=0 // pred_check_branch
    %35 = sbr.rel (0) target = $region29
  $region28: #{_spalan_forward_impl.1} parent=0 // pred_region
    _
  $region29: #{_spalan_forward_impl.1} parent=0 // pred_fallthru
    _
  // Predicated region
  $region30: #{_spalan_forward_impl.1} parent=0 // pred_check
    _
  $region31: #{_spalan_forward_impl.1} parent=0 // pred_check_branch
    %37 = sbr.rel (0) target = $region33
  $region32: #{_spalan_forward_impl.1} parent=0 // pred_region
    _
  $region33: #{_spalan_forward_impl.1} parent=0 // pred_fallthru
    _
  // Predicated region
  $region34: #{_spalan_forward_impl.1} parent=0 // pred_check
    _
  $region35: #{_spalan_forward_impl.1} parent=0 // pred_check_branch
    %39 = sbr.rel (0) target = $region37
  $region36: #{_spalan_forward_impl.1} parent=0 // pred_region
    _
  $region37: #{_spalan_forward_impl.1} parent=0 // pred_fallthru
    _
  // Predicated region
  $region38: #{_spalan_forward_impl.1} parent=0 // pred_check
    _
  $region39: #{_spalan_forward_impl.1} parent=0 // pred_check_branch
    %41 = sbr.rel (0) target = $region41
  $region40: #{_spalan_forward_impl.1} parent=0 // pred_region
    _
  $region41: #{_spalan_forward_impl.1} parent=0 // pred_fallthru
    _
  // Predicated region
  $region42: #{_spalan_forward_impl.1} parent=0 // pred_check
    _
  $region43: #{_spalan_forward_impl.1} parent=0 // pred_check_branch
    %43 = sbr.rel (0) target = $region45
  $region44: #{_spalan_forward_impl.1} parent=0 // pred_region
    _
  $region45: #{_spalan_forward_impl.1} parent=0 // pred_fallthru
    _
  // Predicated region
  $region46: #{_spalan_forward_impl.1} parent=0 // pred_check
    _
  $region47: #{_spalan_forward_impl.1} parent=0 // pred_check_branch
    %45 = sbr.rel (0) target = $region49
  $region48: #{_spalan_forward_impl.1} parent=0 // pred_region
    _
  $region49: #{_spalan_forward_impl.1} parent=0 // pred_fallthru
    _
  // Predicated region
  $region50: #{_spalan_forward_impl.1} parent=0 // pred_check
    _
  $region51: #{_spalan_forward_impl.1} parent=0 // pred_check_branch
    %47 = sbr.rel (0) target = $region53
  $region52: #{_spalan_forward_impl.1} parent=0 // pred_region
    _
  $region53: #{_spalan_forward_impl.1} parent=0 // pred_fallthru
    _
  // Predicated region
  $region54: #{_spalan_forward_impl.1} parent=0 // pred_check
    _
  $region55: #{_spalan_forward_impl.1} parent=0 // pred_check_branch
    %49 = sbr.rel (0) target = $region57
  $region56: #{_spalan_forward_impl.1} parent=0 // pred_region
    _
  $region57: #{_spalan_forward_impl.1} parent=0 // pred_fallthru
    _
  // Predicated region
  $region58: #{_spalan_forward_impl.1} parent=0 // pred_check
    _
  $region59: #{_spalan_forward_impl.1} parent=0 // pred_check_branch
    %51 = sbr.rel (0) target = $region61
  $region60: #{_spalan_forward_impl.1} parent=0 // pred_region
    _
  $region61: #{_spalan_forward_impl.1} parent=0 // pred_fallthru
    _
  // Predicated region
  $region62: #{_spalan_forward_impl.1} parent=0 // pred_check
    _
  $region63: #{_spalan_forward_impl.1} parent=0 // pred_check_branch
    %53 = sbr.rel (0) target = $region65
  $region64: #{_spalan_forward_impl.1} parent=0 // pred_region
    _
  $region65: #{_spalan_forward_impl.1} parent=0 // pred_fallthru
    _
  // Predicated region
  $region66: #{_spalan_forward_impl.1} parent=0 // pred_check
    _
  $region67: #{_spalan_forward_impl.1} parent=0 // pred_check_branch
    %55 = sbr.rel (0) target = $region69
  $region68: #{_spalan_forward_impl.1} parent=0 // pred_region
    _
  $region69: #{_spalan_forward_impl.1} parent=0 // pred_fallthru
    _
  %v57 = vld [vmem:[%s0] sm:$0xf]
  %v58 = vld [vmem:[%s0 + $0x4] sm:$0xf]
  %v59 = vld [vmem:[%s0 + $0x8] sm:$0xf]
  %v60 = vld [vmem:[%s0 + $0xc] sm:$0xf]
  %v61 = vld [vmem:[%s0 + $0x10] sm:$0xf]
  %v62 = vld [vmem:[%s0 + $0x14] sm:$0xf]
  %v63 = vld [vmem:[%s0 + $0x18] sm:$0xf]
  %v64 = vld [vmem:[%s0 + $0x1c] sm:$0xf]
  %v65 = vld [vmem:[%s0 + $0x20] sm:$0xf]
  %v66 = vld [vmem:[%s0 + $0x24] sm:$0xf]
  %v67 = vld [vmem:[%s0 + $0x28] sm:$0xf]
  %v68 = vld [vmem:[%s0 + $0x2c] sm:$0xf]
  %v69 = vld [vmem:[%s0 + $0x30] sm:$0xf]
  %v70 = vld [vmem:[%s0 + $0x34] sm:$0xf]
  %v71 = vld [vmem:[%s0 + $0x38] sm:$0xf]
  %v72 = vld [vmem:[%s0 + $0x3c] sm:$0xf]
  %v73 = vld [vmem:[%s0 + $0x40] sm:$0xf]
  %v74 = vld [vmem:[%s0 + $0x44] sm:$0xf]
  %v75 = vld [vmem:[%s0 + $0x48] sm:$0xf]
  %v76 = vld [vmem:[%s0 + $0x4c] sm:$0xf]
  %v77 = vld [vmem:[%s0 + $0x50] sm:$0xf]
  %v78 = vld [vmem:[%s0 + $0x54] sm:$0xf]
  %v79 = vld [vmem:[%s0 + $0x58] sm:$0xf]
  %v80 = vld [vmem:[%s0 + $0x5c] sm:$0xf]
  %v81 = vld [vmem:[%s0 + $0x60] sm:$0xf]
  %v82 = vld [vmem:[%s0 + $0x64] sm:$0xf]
  %v83 = vld [vmem:[%s0 + $0x68] sm:$0xf]
  %v84 = vld [vmem:[%s0 + $0x6c] sm:$0xf]
  %v85 = vld [vmem:[%s0 + $0x70] sm:$0xf]
  %v86 = vld [vmem:[%s0 + $0x74] sm:$0xf]
  %v87 = vld [vmem:[%s0 + $0x78] sm:$0xf]
  %v88 = vld [vmem:[%s0 + $0x7c] sm:$0xf]
  %v113 = vunpack.c.l.b16 %v57
  %v114 = vunpack.c.l.b16 %v58
  %v115 = vunpack.c.l.b16 %v59
  %v116 = vunpack.c.l.b16 %v60
  %v117 = vunpack.c.l.b16 %v61
  %v118 = vunpack.c.l.b16 %v62
  %v119 = vunpack.c.l.b16 %v63
  %v120 = vunpack.c.l.b16 %v64
  %v121 = vunpack.c.l.b16 %v65
  %v122 = vunpack.c.l.b16 %v66
  %v123 = vunpack.c.l.b16 %v67
  %v124 = vunpack.c.l.b16 %v68
  %v125 = vunpack.c.l.b16 %v69
  %v126 = vunpack.c.l.b16 %v70
  %v127 = vunpack.c.l.b16 %v71
  %v128 = vunpack.c.l.b16 %v72
  %v129 = vunpack.c.l.b16 %v73
  %v130 = vunpack.c.l.b16 %v74
  %v131 = vunpack.c.l.b16 %v75
  %v132 = vunpack.c.l.b16 %v76
  %v133 = vunpack.c.l.b16 %v77
  %v134 = vunpack.c.l.b16 %v78
  %v135 = vunpack.c.l.b16 %v79
  %v136 = vunpack.c.l.b16 %v80
  %v137 = vpack.c.b16 %v114, %v113
  %v138 = vpack.c.b16 %v116, %v115
  %v139 = vpack.c.b16 %v118, %v117
  %v140 = vpack.c.b16 %v120, %v119
  %v141 = vpack.c.b16 %v122, %v121
  %v142 = vpack.c.b16 %v124, %v123
  %v143 = vpack.c.b16 %v126, %v125
  %v144 = vpack.c.b16 %v128, %v127
  %v145 = vpack.c.b16 %v130, %v129
  %v146 = vpack.c.b16 %v132, %v131
  %v147 = vpack.c.b16 %v134, %v133
  %v148 = vpack.c.b16 %v136, %v135
  %v151 = vunpack.c.l.b16 %v81
  %v152 = vunpack.c.l.b16 %v82
  %v153 = vpack.c.b16 %v152, %v151
  %154 = vrot.lane.b32.xlu0 %v138, 32
  %v155 = vpop.permute.xlu0 %154
  %156 = vrot.lane.b32.xlu0 %v139, 32
  %v157 = vpop.permute.xlu0 %156
  %158 = vrot.lane.b32.xlu0 %v140, 32
  %v159 = vpop.permute.xlu0 %158
  %160 = vrot.lane.b32.xlu0 %v141, 32
  %v161 = vpop.permute.xlu0 %160
  %162 = vrot.lane.b32.xlu0 %v142, 32
  %v163 = vpop.permute.xlu0 %162
  %164 = vrot.lane.b32.xlu0 %v143, 32
  %v165 = vpop.permute.xlu0 %164
  %166 = vrot.lane.b32.xlu0 %v144, 32
  %v167 = vpop.permute.xlu0 %166
  %168 = vrot.lane.b32.xlu0 %v145, 32
  %v169 = vpop.permute.xlu0 %168
  %170 = vrot.lane.b32.xlu0 %v146, 32
  %v171 = vpop.permute.xlu0 %170
  %172 = vrot.lane.b32.xlu0 %v147, 32
  %v173 = vpop.permute.xlu0 %172
  %174 = vrot.lane.b32.xlu0 %v148, 32
  %v175 = vpop.permute.xlu0 %174
  %176 = vrot.lane.b32.xlu0 %v153, 32
  %v177 = vpop.permute.xlu0 %176
  %v180 = vunpack.c.l.b16 %v83
  %v181 = vunpack.c.l.b16 %v84
  %v182 = vpack.c.b16 %v181, %v180
  %183 = vrot.lane.b32.xlu0 %v139, 64
  %v184 = vpop.permute.xlu0 %183
  %185 = vrot.lane.b32.xlu0 %v140, 64
  %v186 = vpop.permute.xlu0 %185
  %187 = vrot.lane.b32.xlu0 %v141, 64
  %v188 = vpop.permute.xlu0 %187
  %189 = vrot.lane.b32.xlu0 %v142, 64
  %v190 = vpop.permute.xlu0 %189
  %191 = vrot.lane.b32.xlu0 %v143, 64
  %v192 = vpop.permute.xlu0 %191
  %193 = vrot.lane.b32.xlu0 %v144, 64
  %v194 = vpop.permute.xlu0 %193
  %195 = vrot.lane.b32.xlu0 %v145, 64
  %v196 = vpop.permute.xlu0 %195
  %197 = vrot.lane.b32.xlu0 %v146, 64
  %v198 = vpop.permute.xlu0 %197
  %199 = vrot.lane.b32.xlu0 %v147, 64
  %v200 = vpop.permute.xlu0 %199
  %201 = vrot.lane.b32.xlu0 %v148, 64
  %v202 = vpop.permute.xlu0 %201
  %203 = vrot.lane.b32.xlu0 %v153, 64
  %v204 = vpop.permute.xlu0 %203
  %205 = vrot.lane.b32.xlu0 %v182, 64
  %v206 = vpop.permute.xlu0 %205
  %v209 = vunpack.c.l.b16 %v85
  %v210 = vunpack.c.l.b16 %v86
  %v211 = vpack.c.b16 %v210, %v209
  %212 = vrot.lane.b32.xlu0 %v140, 96
  %v213 = vpop.permute.xlu0 %212
  %214 = vrot.lane.b32.xlu0 %v141, 96
  %v215 = vpop.permute.xlu0 %214
  %216 = vrot.lane.b32.xlu0 %v142, 96
  %v217 = vpop.permute.xlu0 %216
  %218 = vrot.lane.b32.xlu0 %v143, 96
  %v219 = vpop.permute.xlu0 %218
  %220 = vrot.lane.b32.xlu0 %v144, 96
  %v221 = vpop.permute.xlu0 %220
  %222 = vrot.lane.b32.xlu0 %v145, 96
  %v223 = vpop.permute.xlu0 %222
  %224 = vrot.lane.b32.xlu0 %v146, 96
  %v225 = vpop.permute.xlu0 %224
  %226 = vrot.lane.b32.xlu0 %v147, 96
  %v227 = vpop.permute.xlu0 %226
  %228 = vrot.lane.b32.xlu0 %v148, 96
  %v229 = vpop.permute.xlu0 %228
  %230 = vrot.lane.b32.xlu0 %v153, 96
  %v231 = vpop.permute.xlu0 %230
  %232 = vrot.lane.b32.xlu0 %v182, 96
  %v233 = vpop.permute.xlu0 %232
  %234 = vrot.lane.b32.xlu0 %v211, 96
  %v235 = vpop.permute.xlu0 %234
  %v238 = vunpack.c.l.b16 %v87
  %v239 = vunpack.c.l.b16 %v88
  %v240 = vpack.c.b16 %v239, %v238
  %vm241 = vcmask 261120
  %v244 = vsel %vm241, %v137, %v155
  %v247 = vsel %vm241, %v138, %v157
  %v250 = vsel %vm241, %v139, %v159
  %v253 = vsel %vm241, %v140, %v161
  %v256 = vsel %vm241, %v141, %v163
  %v259 = vsel %vm241, %v142, %v165
  %v262 = vsel %vm241, %v143, %v167
  %v265 = vsel %vm241, %v144, %v169
  %v268 = vsel %vm241, %v145, %v171
  %v271 = vsel %vm241, %v146, %v173
  %v274 = vsel %vm241, %v147, %v175
  %v277 = vsel %vm241, %v148, %v177
  %vm278 = vcmask 523264
  %v280 = vsel %vm278, %v244, %v184
  %v282 = vsel %vm278, %v247, %v186
  %v284 = vsel %vm278, %v250, %v188
  %v286 = vsel %vm278, %v253, %v190
  %v288 = vsel %vm278, %v256, %v192
  %v290 = vsel %vm278, %v259, %v194
  %v292 = vsel %vm278, %v262, %v196
  %v294 = vsel %vm278, %v265, %v198
  %v296 = vsel %vm278, %v268, %v200
  %v298 = vsel %vm278, %v271, %v202
  %v300 = vsel %vm278, %v274, %v204
  %v302 = vsel %vm278, %v277, %v206
  %vm303 = vcmask 785408
  %v305 = vsel %vm303, %v280, %v213
  %v308 = vsel %vm303, %v282, %v215
  %v311 = vsel %vm303, %v284, %v217
  %v314 = vsel %vm303, %v286, %v219
  %v317 = vsel %vm303, %v288, %v221
  %v320 = vsel %vm303, %v290, %v223
  %v323 = vsel %vm303, %v292, %v225
  %v326 = vsel %vm303, %v294, %v227
  %v329 = vsel %vm303, %v296, %v229
  %v332 = vsel %vm303, %v298, %v231
  %v335 = vsel %vm303, %v300, %v233
  %v338 = vsel %vm303, %v302, %v235
  %v340 = vld [vmem:[%s3] sm:$0xff]
  %v341 = vld [vmem:[%s3 + $0x8] sm:$0xf]
  %v342 = vld [vmem:[%s3 + $0xc] sm:$0xff]
  %v343 = vld [vmem:[%s3 + $0x14] sm:$0xf]
  %v344 = vld [vmem:[%s3 + $0x18] sm:$0xff]
  %v345 = vld [vmem:[%s3 + $0x20] sm:$0xf]
  %v346 = vld [vmem:[%s3 + $0x24] sm:$0xff]
  %v347 = vld [vmem:[%s3 + $0x2c] sm:$0xf]
  %v348 = vld [vmem:[%s3 + $0x30] sm:$0xff]
  %v349 = vld [vmem:[%s3 + $0x38] sm:$0xf]
  %v350 = vld [vmem:[%s3 + $0x3c] sm:$0xff]
  %v351 = vld [vmem:[%s3 + $0x44] sm:$0xf]
  %v352 = vld [vmem:[%s3 + $0x48] sm:$0xff]
  %v353 = vld [vmem:[%s3 + $0x50] sm:$0xf]
  %v354 = vld [vmem:[%s3 + $0x54] sm:$0xff]
  %v355 = vld [vmem:[%s3 + $0x5c] sm:$0xf]
  %v356 = vld [vmem:[%s3 + $0x60] sm:$0xff]
  %v357 = vld [vmem:[%s3 + $0x68] sm:$0xf]
  %v358 = vld [vmem:[%s3 + $0x6c] sm:$0xff]
  %v359 = vld [vmem:[%s3 + $0x74] sm:$0xf]
  %v360 = vld [vmem:[%s3 + $0x78] sm:$0xff]
  %v361 = vld [vmem:[%s3 + $0x80] sm:$0xf]
  %v362 = vld [vmem:[%s3 + $0x84] sm:$0xff]
  %v363 = vld [vmem:[%s3 + $0x8c] sm:$0xf]
  %v364 = vld [vmem:[%s3 + $0x90] sm:$0xff]
  %v365 = vld [vmem:[%s3 + $0x98] sm:$0xf]
  %v366 = vld [vmem:[%s3 + $0x9c] sm:$0xff]
  %v367 = vld [vmem:[%s3 + $0xa4] sm:$0xf]
  %v368 = vld [vmem:[%s3 + $0xa8] sm:$0xff]
  %v369 = vld [vmem:[%s3 + $0xb0] sm:$0xf]
  %v370 = vld [vmem:[%s3 + $0xb4] sm:$0xff]
  %v371 = vld [vmem:[%s3 + $0xbc] sm:$0xf]
  %v372 = vld [vmem:[%s3 + $0xc0] sm:$0xff]
  %v373 = vld [vmem:[%s3 + $0xc8] sm:$0xf]
  %v374 = vld [vmem:[%s3 + $0xcc] sm:$0xff]
  %v375 = vld [vmem:[%s3 + $0xd4] sm:$0xf]
  %v376 = vld [vmem:[%s3 + $0xd8] sm:$0xff]
  %v377 = vld [vmem:[%s3 + $0xe0] sm:$0xf]
  %v378 = vld [vmem:[%s3 + $0xe4] sm:$0xff]
  %v379 = vld [vmem:[%s3 + $0xec] sm:$0xf]
  %v420 = vunpack.c.l.b16 %v340
  %v421 = vunpack.c.h.b16 %v340
  %v422 = vunpack.c.l.b16 %v341
  %v423 = vunpack.c.l.b16 %v342
  %v424 = vunpack.c.h.b16 %v342
  %v425 = vunpack.c.l.b16 %v343
  %v426 = vunpack.c.l.b16 %v344
  %v427 = vunpack.c.h.b16 %v344
  %v428 = vunpack.c.l.b16 %v345
  %v429 = vunpack.c.l.b16 %v346
  %v430 = vunpack.c.h.b16 %v346
  %v431 = vunpack.c.l.b16 %v347
  %v432 = vunpack.c.l.b16 %v348
  %v433 = vunpack.c.h.b16 %v348
  %v434 = vunpack.c.l.b16 %v349
  %v435 = vunpack.c.l.b16 %v350
  %v436 = vunpack.c.h.b16 %v350
  %v437 = vunpack.c.l.b16 %v351
  %v438 = vunpack.c.l.b16 %v352
  %v439 = vunpack.c.h.b16 %v352
  %v440 = vunpack.c.l.b16 %v353
  %v441 = vunpack.c.l.b16 %v354
  %v442 = vunpack.c.h.b16 %v354
  %v443 = vunpack.c.l.b16 %v355
  %v444 = vunpack.c.l.b16 %v356
  %v445 = vunpack.c.h.b16 %v356
  %v446 = vunpack.c.l.b16 %v357
  %v447 = vunpack.c.l.b16 %v358
  %v448 = vunpack.c.h.b16 %v358
  %v449 = vunpack.c.l.b16 %v359
  %v450 = vunpack.c.l.b16 %v360
  %v451 = vunpack.c.h.b16 %v360
  %v452 = vunpack.c.l.b16 %v361
  %v453 = vunpack.c.l.b16 %v362
  %v454 = vunpack.c.h.b16 %v362
  %v455 = vunpack.c.l.b16 %v363
  %v456 = vunpack.c.l.b16 %v364
  %v457 = vunpack.c.h.b16 %v364
  %v458 = vunpack.c.l.b16 %v365
  %v459 = vunpack.c.l.b16 %v366
  %v460 = vunpack.c.h.b16 %v366
  %v461 = vunpack.c.l.b16 %v367
  %v462 = vunpack.c.l.b16 %v368
  %v463 = vunpack.c.h.b16 %v368
  %v464 = vunpack.c.l.b16 %v369
  %v465 = vunpack.c.l.b16 %v370
  %v466 = vunpack.c.h.b16 %v370
  %v467 = vunpack.c.l.b16 %v371
  %v468 = vunpack.c.l.b16 %v372
  %v469 = vunpack.c.h.b16 %v372
  %v470 = vunpack.c.l.b16 %v373
  %v471 = vunpack.c.l.b16 %v374
  %v472 = vunpack.c.h.b16 %v374
  %v473 = vunpack.c.l.b16 %v375
  %v474 = vunpack.c.l.b16 %v376
  %v475 = vunpack.c.h.b16 %v376
  %v476 = vunpack.c.l.b16 %v377
  %v477 = vunpack.c.l.b16 %v378
  %v478 = vunpack.c.h.b16 %v378
  %v479 = vunpack.c.l.b16 %v379
  %v480 = vpack.c.b16 %v423, %v420
  %v481 = vpack.c.b16 %v424, %v421
  %v482 = vpack.c.b16 %v425, %v422
  %v483 = vpack.c.b16 %v429, %v426
  %v484 = vpack.c.b16 %v430, %v427
  %v485 = vpack.c.b16 %v431, %v428
  %v486 = vpack.c.b16 %v435, %v432
  %v487 = vpack.c.b16 %v436, %v433
  %v488 = vpack.c.b16 %v437, %v434
  %v489 = vpack.c.b16 %v441, %v438
  %v490 = vpack.c.b16 %v442, %v439
  %v491 = vpack.c.b16 %v443, %v440
  %v492 = vpack.c.b16 %v447, %v444
  %v493 = vpack.c.b16 %v448, %v445
  %v494 = vpack.c.b16 %v449, %v446
  %v495 = vpack.c.b16 %v453, %v450
  %v496 = vpack.c.b16 %v454, %v451
  %v497 = vpack.c.b16 %v455, %v452
  %v498 = vpack.c.b16 %v459, %v456
  %v499 = vpack.c.b16 %v460, %v457
  %v500 = vpack.c.b16 %v461, %v458
  %v501 = vpack.c.b16 %v465, %v462
  %v502 = vpack.c.b16 %v466, %v463
  %v503 = vpack.c.b16 %v467, %v464
  %v504 = vpack.c.b16 %v471, %v468
  %v505 = vpack.c.b16 %v472, %v469
  %v506 = vpack.c.b16 %v473, %v470
  %v507 = vpack.c.b16 %v477, %v474
  %v508 = vpack.c.b16 %v478, %v475
  %v509 = vpack.c.b16 %v479, %v476
  %v540 = vsel %vm241, %v141, 0
  %v542 = vsel %vm241, %v142, 0
  %v544 = vsel %vm241, %v143, 0
  %v546 = vsel %vm241, %v144, 0
  %v548 = vsel %vm241, %v145, 0
  %v550 = vsel %vm241, %v146, 0
  %v552 = vsel %vm241, %v147, 0
  %v554 = vsel %vm241, %v148, 0
  %v557 = vsel %vm241, %v153, 0
  %v560 = vsel %vm241, %v182, 0
  %v563 = vsel %vm241, %v211, 0
  %v566 = vsel %vm241, %v240, 0
  %568 = vmatprep.subr.bf16.mxu0 %v502
  %569 = vmatpush1.bf16.msra.mxu0 %v501
  %570 = vmatprep.subr.bf16.mxu0 %v499
  %571 = vmatpush1.bf16.msra.mxu0 %v498
  %572 = vmatprep.subr.bf16.mxu0 %v496
  %573 = vmatpush1.bf16.msra.mxu0 %v495
  %574 = vmatprep.subr.bf16.mxu0 %v493
  %575 = vmatpush1.bf16.msra.mxu0 %v492
  %576 = vmatprep.subr.bf16.mxu0 %v490
  %577 = vmatpush1.bf16.msra.mxu0 %v489
  %578 = vmatprep.subr.bf16.mxu0 %v487
  %579 = vmatpush1.bf16.msra.mxu0 %v486
  %580 = vmatprep.subr.bf16.mxu0 %v484
  %581 = vmatpush1.bf16.msra.mxu0 %v483
  %582 = vmatprep.subr.bf16.mxu0 %v481
  %583 = vmatpush1.bf16.msra.mxu0 %v480
  %584 = vmatprep.subr.bf16.mxu0 0
  %585 = vmatpush2.bf16.msra.mxu0 0
  %586 = vmatprep.subr.bf16.mxu0 0
  %587 = vmatpush2.bf16.msra.mxu0 0
  %588 = vmatprep.subr.bf16.mxu0 0
  %589 = vmatpush2.bf16.msra.mxu0 0
  %590 = vmatprep.subr.bf16.mxu0 0
  %591 = vmatpush2.bf16.msra.mxu0 0
  %592 = vmatprep.subr.bf16.mxu0 0
  %593 = vmatpush2.bf16.msra.mxu0 0
  %594 = vmatprep.subr.bf16.mxu0 0
  %595 = vmatpush2.bf16.msra.mxu0 0
  %596 = vmatprep.subr.bf16.mxu0 %v508
  %597 = vmatpush2.bf16.msra.mxu0 %v507
  %598 = vmatprep.subr.bf16.mxu0 %v505
  %599 = vmatpush2.bf16.msra.mxu0 %v504
  %600 = vmatprep.mubr.bf16.mxu0 %v540
  %601 = vmatmul.mubr.bf16.gmra.mxu0 %v305
  %v602 = vpop.f32.mrf.mxu0
  %v603 = vadd.f32 0.0, %v602
  %v604 = vpop.f32.mrf.mxu0
  %v605 = vadd.f32 0.0, %v604
  %v606 = vpop.f32.mrf.mxu0
  %v607 = vadd.f32 0.0, %v606
  %v608 = vpop.f32.mrf.mxu0
  %v609 = vadd.f32 0.0, %v608
  %610 = vmatprep.mubr.bf16.mxu0 %v542
  %611 = vmatmul.mubr.bf16.gmra.mxu0 %v308
  %v612 = vpop.f32.mrf.mxu0
  %v613 = vadd.f32 0.0, %v612
  %v614 = vpop.f32.mrf.mxu0
  %v615 = vadd.f32 0.0, %v614
  %v616 = vpop.f32.mrf.mxu0
  %v617 = vadd.f32 0.0, %v616
  %v618 = vpop.f32.mrf.mxu0
  %v619 = vadd.f32 0.0, %v618
  %620 = vmatprep.mubr.bf16.mxu0 %v544
  %621 = vmatmul.mubr.bf16.gmra.mxu0 %v311
  %v622 = vpop.f32.mrf.mxu0
  %v623 = vadd.f32 0.0, %v622
  %v624 = vpop.f32.mrf.mxu0
  %v625 = vadd.f32 0.0, %v624
  %v626 = vpop.f32.mrf.mxu0
  %v627 = vadd.f32 0.0, %v626
  %v628 = vpop.f32.mrf.mxu0
  %v629 = vadd.f32 0.0, %v628
  %630 = vmatprep.mubr.bf16.mxu0 %v546
  %631 = vmatmul.mubr.bf16.gmra.mxu0 %v314
  %v632 = vpop.f32.mrf.mxu0
  %v633 = vadd.f32 0.0, %v632
  %v634 = vpop.f32.mrf.mxu0
  %v635 = vadd.f32 0.0, %v634
  %v636 = vpop.f32.mrf.mxu0
  %v637 = vadd.f32 0.0, %v636
  %v638 = vpop.f32.mrf.mxu0
  %v639 = vadd.f32 0.0, %v638
  %640 = vmatprep.mubr.bf16.mxu0 %v548
  %641 = vmatmul.mubr.bf16.gmra.mxu0 %v317
  %v642 = vpop.f32.mrf.mxu0
  %v643 = vadd.f32 0.0, %v642
  %v644 = vpop.f32.mrf.mxu0
  %v645 = vadd.f32 0.0, %v644
  %v646 = vpop.f32.mrf.mxu0
  %v647 = vadd.f32 0.0, %v646
  %v648 = vpop.f32.mrf.mxu0
  %v649 = vadd.f32 0.0, %v648
  %650 = vmatprep.mubr.bf16.mxu0 %v550
  %651 = vmatmul.mubr.bf16.gmra.mxu0 %v320
  %v652 = vpop.f32.mrf.mxu0
  %v653 = vadd.f32 0.0, %v652
  %v654 = vpop.f32.mrf.mxu0
  %v655 = vadd.f32 0.0, %v654
  %v656 = vpop.f32.mrf.mxu0
  %v657 = vadd.f32 0.0, %v656
  %v658 = vpop.f32.mrf.mxu0
  %v659 = vadd.f32 0.0, %v658
  %660 = vmatprep.mubr.bf16.mxu0 %v552
  %661 = vmatmul.mubr.bf16.gmra.mxu0 %v323
  %v662 = vpop.f32.mrf.mxu0
  %v663 = vadd.f32 0.0, %v662
  %v664 = vpop.f32.mrf.mxu0
  %v665 = vadd.f32 0.0, %v664
  %v666 = vpop.f32.mrf.mxu0
  %v667 = vadd.f32 0.0, %v666
  %v668 = vpop.f32.mrf.mxu0
  %v669 = vadd.f32 0.0, %v668
  %670 = vmatprep.mubr.bf16.mxu0 %v554
  %671 = vmatmul.mubr.bf16.gmra.mxu0 %v326
  %v672 = vpop.f32.mrf.mxu0
  %v673 = vadd.f32 0.0, %v672
  %v674 = vpop.f32.mrf.mxu0
  %v675 = vadd.f32 0.0, %v674
  %v676 = vpop.f32.mrf.mxu0
  %v677 = vadd.f32 0.0, %v676
  %v678 = vpop.f32.mrf.mxu0
  %v679 = vadd.f32 0.0, %v678
  %680 = vmatprep.mubr.bf16.mxu0 %v557
  %681 = vmatmul.mubr.bf16.gmra.mxu0 %v329
  %v682 = vpop.f32.mrf.mxu0
  %v683 = vadd.f32 0.0, %v682
  %v684 = vpop.f32.mrf.mxu0
  %v685 = vadd.f32 0.0, %v684
  %v686 = vpop.f32.mrf.mxu0
  %v687 = vadd.f32 0.0, %v686
  %v688 = vpop.f32.mrf.mxu0
  %v689 = vadd.f32 0.0, %v688
  %690 = vmatprep.mubr.bf16.mxu0 %v560
  %691 = vmatmul.mubr.bf16.gmra.mxu0 %v332
  %v692 = vpop.f32.mrf.mxu0
  %v693 = vadd.f32 0.0, %v692
  %v694 = vpop.f32.mrf.mxu0
  %v695 = vadd.f32 0.0, %v694
  %v696 = vpop.f32.mrf.mxu0
  %v697 = vadd.f32 0.0, %v696
  %v698 = vpop.f32.mrf.mxu0
  %v699 = vadd.f32 0.0, %v698
  %700 = vmatprep.mubr.bf16.mxu0 %v563
  %701 = vmatmul.mubr.bf16.gmra.mxu0 %v335
  %v702 = vpop.f32.mrf.mxu0
  %v703 = vadd.f32 0.0, %v702
  %v704 = vpop.f32.mrf.mxu0
  %v705 = vadd.f32 0.0, %v704
  %v706 = vpop.f32.mrf.mxu0
  %v707 = vadd.f32 0.0, %v706
  %v708 = vpop.f32.mrf.mxu0
  %v709 = vadd.f32 0.0, %v708
  %710 = vmatprep.mubr.bf16.mxu0 %v566
  %711 = vmatmul.mubr.bf16.gmra.mxu0 %v338
  %v712 = vpop.f32.mrf.mxu0
  %v713 = vadd.f32 0.0, %v712
  %v714 = vpop.f32.mrf.mxu0
  %v715 = vadd.f32 0.0, %v714
  %v716 = vpop.f32.mrf.mxu0
  %v717 = vadd.f32 0.0, %v716
  %v718 = vpop.f32.mrf.mxu0
  %v719 = vadd.f32 0.0, %v718
  %720 = vdwg.mxu0
  %721 = vmatprep.subr.bf16.mxu0 0
  %722 = vmatpush1.bf16.msra.mxu0 %v503
  %723 = vmatprep.subr.bf16.mxu0 0
  %724 = vmatpush1.bf16.msra.mxu0 %v500
  %725 = vmatprep.subr.bf16.mxu0 0
  %726 = vmatpush1.bf16.msra.mxu0 %v497
  %727 = vmatprep.subr.bf16.mxu0 0
  %728 = vmatpush1.bf16.msra.mxu0 %v494
  %729 = vmatprep.subr.bf16.mxu0 0
  %730 = vmatpush1.bf16.msra.mxu0 %v491
  %731 = vmatprep.subr.bf16.mxu0 0
  %732 = vmatpush1.bf16.msra.mxu0 %v488
  %733 = vmatprep.subr.bf16.mxu0 0
  %734 = vmatpush1.bf16.msra.mxu0 %v485
  %735 = vmatprep.subr.bf16.mxu0 0
  %736 = vmatpush1.bf16.msra.mxu0 %v482
  %737 = vmatprep.subr.bf16.mxu0 0
  %738 = vmatpush2.bf16.msra.mxu0 0
  %739 = vmatprep.subr.bf16.mxu0 0
  %740 = vmatpush2.bf16.msra.mxu0 0
  %741 = vmatprep.subr.bf16.mxu0 0
  %742 = vmatpush2.bf16.msra.mxu0 0
  %743 = vmatprep.subr.bf16.mxu0 0
  %744 = vmatpush2.bf16.msra.mxu0 0
  %745 = vmatprep.subr.bf16.mxu0 0
  %746 = vmatpush2.bf16.msra.mxu0 0
  %747 = vmatprep.subr.bf16.mxu0 0
  %748 = vmatpush2.bf16.msra.mxu0 0
  %749 = vmatprep.subr.bf16.mxu0 0
  %750 = vmatpush2.bf16.msra.mxu0 %v509
  %751 = vmatprep.subr.bf16.mxu0 0
  %752 = vmatpush2.bf16.msra.mxu0 %v506
  %753 = vmatprep.mubr.bf16.mxu0 %v540
  %754 = vmatmul.mubr.bf16.gmra.mxu0 %v305
  %v755 = vpop.f32.mrf.mxu0
  %v756 = vadd.f32 0.0, %v755
  %v757 = vpop.f32.mrf.mxu0
  %v758 = vpop.f32.mrf.mxu0
  %v759 = vadd.f32 0.0, %v758
  %v760 = vpop.f32.mrf.mxu0
  %761 = vmatprep.mubr.bf16.mxu0 %v542
  %762 = vmatmul.mubr.bf16.gmra.mxu0 %v308
  %v763 = vpop.f32.mrf.mxu0
  %v764 = vadd.f32 0.0, %v763
  %v765 = vpop.f32.mrf.mxu0
  %v766 = vpop.f32.mrf.mxu0
  %v767 = vadd.f32 0.0, %v766
  %v768 = vpop.f32.mrf.mxu0
  %769 = vmatprep.mubr.bf16.mxu0 %v544
  %770 = vmatmul.mubr.bf16.gmra.mxu0 %v311
  %v771 = vpop.f32.mrf.mxu0
  %v772 = vadd.f32 0.0, %v771
  %v773 = vpop.f32.mrf.mxu0
  %v774 = vpop.f32.mrf.mxu0
  %v775 = vadd.f32 0.0, %v774
  %v776 = vpop.f32.mrf.mxu0
  %777 = vmatprep.mubr.bf16.mxu0 %v546
  %778 = vmatmul.mubr.bf16.gmra.mxu0 %v314
  %v779 = vpop.f32.mrf.mxu0
  %v780 = vadd.f32 0.0, %v779
  %v781 = vpop.f32.mrf.mxu0
  %v782 = vpop.f32.mrf.mxu0
  %v783 = vadd.f32 0.0, %v782
  %v784 = vpop.f32.mrf.mxu0
  %785 = vmatprep.mubr.bf16.mxu0 %v548
  %786 = vmatmul.mubr.bf16.gmra.mxu0 %v317
  %v787 = vpop.f32.mrf.mxu0
  %v788 = vadd.f32 0.0, %v787
  %v789 = vpop.f32.mrf.mxu0
  %v790 = vpop.f32.mrf.mxu0
  %v791 = vadd.f32 0.0, %v790
  %v792 = vpop.f32.mrf.mxu0
  %793 = vmatprep.mubr.bf16.mxu0 %v550
  %794 = vmatmul.mubr.bf16.gmra.mxu0 %v320
  %v795 = vpop.f32.mrf.mxu0
  %v796 = vadd.f32 0.0, %v795
  %v797 = vpop.f32.mrf.mxu0
  %v798 = vpop.f32.mrf.mxu0
  %v799 = vadd.f32 0.0, %v798
  %v800 = vpop.f32.mrf.mxu0
  %801 = vmatprep.mubr.bf16.mxu0 %v552
  %802 = vmatmul.mubr.bf16.gmra.mxu0 %v323
  %v803 = vpop.f32.mrf.mxu0
  %v804 = vadd.f32 0.0, %v803
  %v805 = vpop.f32.mrf.mxu0
  %v806 = vpop.f32.mrf.mxu0
  %v807 = vadd.f32 0.0, %v806
  %v808 = vpop.f32.mrf.mxu0
  %809 = vmatprep.mubr.bf16.mxu0 %v554
  %810 = vmatmul.mubr.bf16.gmra.mxu0 %v326
  %v811 = vpop.f32.mrf.mxu0
  %v812 = vadd.f32 0.0, %v811
  %v813 = vpop.f32.mrf.mxu0
  %v814 = vpop.f32.mrf.mxu0
  %v815 = vadd.f32 0.0, %v814
  %v816 = vpop.f32.mrf.mxu0
  %817 = vmatprep.mubr.bf16.mxu0 %v557
  %818 = vmatmul.mubr.bf16.gmra.mxu0 %v329
  %v819 = vpop.f32.mrf.mxu0
  %v820 = vadd.f32 0.0, %v819
  %v821 = vpop.f32.mrf.mxu0
  %v822 = vpop.f32.mrf.mxu0
  %v823 = vadd.f32 0.0, %v822
  %v824 = vpop.f32.mrf.mxu0
  %825 = vmatprep.mubr.bf16.mxu0 %v560
  %826 = vmatmul.mubr.bf16.gmra.mxu0 %v332
  %v827 = vpop.f32.mrf.mxu0
  %v828 = vadd.f32 0.0, %v827
  %v829 = vpop.f32.mrf.mxu0
  %v830 = vpop.f32.mrf.mxu0
  %v831 = vadd.f32 0.0, %v830
  %v832 = vpop.f32.mrf.mxu0
  %833 = vmatprep.mubr.bf16.mxu0 %v563
  %834 = vmatmul.mubr.bf16.gmra.mxu0 %v335
  %v835 = vpop.f32.mrf.mxu0
  %v836 = vadd.f32 0.0, %v835
  %v837 = vpop.f32.mrf.mxu0
  %v838 = vpop.f32.mrf.mxu0
  %v839 = vadd.f32 0.0, %v838
  %v840 = vpop.f32.mrf.mxu0
  %841 = vmatprep.mubr.bf16.mxu0 %v566
  %842 = vmatmul.mubr.bf16.gmra.mxu0 %v338
  %v843 = vpop.f32.mrf.mxu0
  %v844 = vadd.f32 0.0, %v843
  %v845 = vpop.f32.mrf.mxu0
  %v846 = vpop.f32.mrf.mxu0
  %v847 = vadd.f32 0.0, %v846
  %v848 = vpop.f32.mrf.mxu0
  %849 = vdwg.mxu0
  %s850 = scalar_lea.vmem %s3, 240
  %v851 = vld [vmem:[%s850] sm:$0xff]
  %v852 = vld [vmem:[%s850 + $0x8] sm:$0xf]
  %v853 = vld [vmem:[%s850 + $0xc] sm:$0xff]
  %v854 = vld [vmem:[%s850 + $0x14] sm:$0xf]
  %v855 = vld [vmem:[%s850 + $0x18] sm:$0xff]
  %v856 = vld [vmem:[%s850 + $0x20] sm:$0xf]
  %v857 = vld [vmem:[%s850 + $0x24] sm:$0xff]
  %v858 = vld [vmem:[%s850 + $0x2c] sm:$0xf]
  %v859 = vld [vmem:[%s850 + $0x30] sm:$0xff]
  %v860 = vld [vmem:[%s850 + $0x38] sm:$0xf]
  %v861 = vld [vmem:[%s850 + $0x3c] sm:$0xff]
  %v862 = vld [vmem:[%s850 + $0x44] sm:$0xf]
  %v863 = vld [vmem:[%s850 + $0x48] sm:$0xff]
  %v864 = vld [vmem:[%s850 + $0x50] sm:$0xf]
  %v865 = vld [vmem:[%s850 + $0x54] sm:$0xff]
  %v866 = vld [vmem:[%s850 + $0x5c] sm:$0xf]
  %v867 = vld [vmem:[%s850 + $0x60] sm:$0xff]
  %v868 = vld [vmem:[%s850 + $0x68] sm:$0xf]
  %v869 = vld [vmem:[%s850 + $0x6c] sm:$0xff]
  %v870 = vld [vmem:[%s850 + $0x74] sm:$0xf]
  %v871 = vld [vmem:[%s850 + $0x78] sm:$0xff]
  %v872 = vld [vmem:[%s850 + $0x80] sm:$0xf]
  %v873 = vld [vmem:[%s850 + $0x84] sm:$0xff]
  %v874 = vld [vmem:[%s850 + $0x8c] sm:$0xf]
  %v875 = vld [vmem:[%s850 + $0x90] sm:$0xff]
  %v876 = vld [vmem:[%s850 + $0x98] sm:$0xf]
  %v877 = vld [vmem:[%s850 + $0x9c] sm:$0xff]
  %v878 = vld [vmem:[%s850 + $0xa4] sm:$0xf]
  %v879 = vld [vmem:[%s850 + $0xa8] sm:$0xff]
  %v880 = vld [vmem:[%s850 + $0xb0] sm:$0xf]
  %v881 = vld [vmem:[%s850 + $0xb4] sm:$0xff]
  %v882 = vld [vmem:[%s850 + $0xbc] sm:$0xf]
  %v883 = vld [vmem:[%s850 + $0xc0] sm:$0xff]
  %v884 = vld [vmem:[%s850 + $0xc8] sm:$0xf]
  %v885 = vld [vmem:[%s850 + $0xcc] sm:$0xff]
  %v886 = vld [vmem:[%s850 + $0xd4] sm:$0xf]
  %v887 = vld [vmem:[%s850 + $0xd8] sm:$0xff]
  %v888 = vld [vmem:[%s850 + $0xe0] sm:$0xf]
  %v889 = vld [vmem:[%s850 + $0xe4] sm:$0xff]
  %v890 = vld [vmem:[%s850 + $0xec] sm:$0xf]
  %v931 = vunpack.c.l.b16 %v851
  %v932 = vunpack.c.h.b16 %v851
  %v933 = vunpack.c.l.b16 %v852
  %v934 = vunpack.c.l.b16 %v853
  %v935 = vunpack.c.h.b16 %v853
  %v936 = vunpack.c.l.b16 %v854
  %v937 = vunpack.c.l.b16 %v855
  %v938 = vunpack.c.h.b16 %v855
  %v939 = vunpack.c.l.b16 %v856
  %v940 = vunpack.c.l.b16 %v857
  %v941 = vunpack.c.h.b16 %v857
  %v942 = vunpack.c.l.b16 %v858
  %v943 = vunpack.c.l.b16 %v859
  %v944 = vunpack.c.h.b16 %v859
  %v945 = vunpack.c.l.b16 %v860
  %v946 = vunpack.c.l.b16 %v861
  %v947 = vunpack.c.h.b16 %v861
  %v948 = vunpack.c.l.b16 %v862
  %v949 = vunpack.c.l.b16 %v863
  %v950 = vunpack.c.h.b16 %v863
  %v951 = vunpack.c.l.b16 %v864
  %v952 = vunpack.c.l.b16 %v865
  %v953 = vunpack.c.h.b16 %v865
  %v954 = vunpack.c.l.b16 %v866
  %v955 = vunpack.c.l.b16 %v867
  %v956 = vunpack.c.h.b16 %v867
  %v957 = vunpack.c.l.b16 %v868
  %v958 = vunpack.c.l.b16 %v869
  %v959 = vunpack.c.h.b16 %v869
  %v960 = vunpack.c.l.b16 %v870
  %v961 = vunpack.c.l.b16 %v871
  %v962 = vunpack.c.h.b16 %v871
  %v963 = vunpack.c.l.b16 %v872
  %v964 = vunpack.c.l.b16 %v873
  %v965 = vunpack.c.h.b16 %v873
  %v966 = vunpack.c.l.b16 %v874
  %v967 = vunpack.c.l.b16 %v875
  %v968 = vunpack.c.h.b16 %v875
  %v969 = vunpack.c.l.b16 %v876
  %v970 = vunpack.c.l.b16 %v877
  %v971 = vunpack.c.h.b16 %v877
  %v972 = vunpack.c.l.b16 %v878
  %v973 = vunpack.c.l.b16 %v879
  %v974 = vunpack.c.h.b16 %v879
  %v975 = vunpack.c.l.b16 %v880
  %v976 = vunpack.c.l.b16 %v881
  %v977 = vunpack.c.h.b16 %v881
  %v978 = vunpack.c.l.b16 %v882
  %v979 = vunpack.c.l.b16 %v883
  %v980 = vunpack.c.h.b16 %v883
  %v981 = vunpack.c.l.b16 %v884
  %v982 = vunpack.c.l.b16 %v885
  %v983 = vunpack.c.h.b16 %v885
  %v984 = vunpack.c.l.b16 %v886
  %v985 = vunpack.c.l.b16 %v887
  %v986 = vunpack.c.h.b16 %v887
  %v987 = vunpack.c.l.b16 %v888
  %v988 = vunpack.c.l.b16 %v889
  %v989 = vunpack.c.h.b16 %v889
  %v990 = vunpack.c.l.b16 %v890
  %v991 = vpack.c.b16 %v934, %v931
  %v992 = vpack.c.b16 %v935, %v932
  %v993 = vpack.c.b16 %v936, %v933
  %v994 = vpack.c.b16 %v940, %v937
  %v995 = vpack.c.b16 %v941, %v938
  %v996 = vpack.c.b16 %v942, %v939
  %v997 = vpack.c.b16 %v946, %v943
  %v998 = vpack.c.b16 %v947, %v944
  %v999 = vpack.c.b16 %v948, %v945
  %v1000 = vpack.c.b16 %v952, %v949
  %v1001 = vpack.c.b16 %v953, %v950
  %v1002 = vpack.c.b16 %v954, %v951
  %v1003 = vpack.c.b16 %v958, %v955
  %v1004 = vpack.c.b16 %v959, %v956
  %v1005 = vpack.c.b16 %v960, %v957
  %v1006 = vpack.c.b16 %v964, %v961
  %v1007 = vpack.c.b16 %v965, %v962
  %v1008 = vpack.c.b16 %v966, %v963
  %v1009 = vpack.c.b16 %v970, %v967
  %v1010 = vpack.c.b16 %v971, %v968
  %v1011 = vpack.c.b16 %v972, %v969
  %v1012 = vpack.c.b16 %v976, %v973
  %v1013 = vpack.c.b16 %v977, %v974
  %v1014 = vpack.c.b16 %v978, %v975
  %v1015 = vpack.c.b16 %v982, %v979
  %v1016 = vpack.c.b16 %v983, %v980
  %v1017 = vpack.c.b16 %v984, %v981
  %v1018 = vpack.c.b16 %v988, %v985
  %v1019 = vpack.c.b16 %v989, %v986
  %v1020 = vpack.c.b16 %v990, %v987
  %1051 = vmatprep.subr.bf16.mxu0 %v1013
  %1052 = vmatpush1.bf16.msra.mxu0 %v1012
  %1053 = vmatprep.subr.bf16.mxu0 %v1010
  %1054 = vmatpush1.bf16.msra.mxu0 %v1009
  %1055 = vmatprep.subr.bf16.mxu0 %v1007
  %1056 = vmatpush1.bf16.msra.mxu0 %v1006
  %1057 = vmatprep.subr.bf16.mxu0 %v1004
  %1058 = vmatpush1.bf16.msra.mxu0 %v1003
  %1059 = vmatprep.subr.bf16.mxu0 %v1001
  %1060 = vmatpush1.bf16.msra.mxu0 %v1000
  %1061 = vmatprep.subr.bf16.mxu0 %v998
  %1062 = vmatpush1.bf16.msra.mxu0 %v997
  %1063 = vmatprep.subr.bf16.mxu0 %v995
  %1064 = vmatpush1.bf16.msra.mxu0 %v994
  %1065 = vmatprep.subr.bf16.mxu0 %v992
  %1066 = vmatpush1.bf16.msra.mxu0 %v991
  %1067 = vmatprep.subr.bf16.mxu0 0
  %1068 = vmatpush2.bf16.msra.mxu0 0
  %1069 = vmatprep.subr.bf16.mxu0 0
  %1070 = vmatpush2.bf16.msra.mxu0 0
  %1071 = vmatprep.subr.bf16.mxu0 0
  %1072 = vmatpush2.bf16.msra.mxu0 0
  %1073 = vmatprep.subr.bf16.mxu0 0
  %1074 = vmatpush2.bf16.msra.mxu0 0
  %1075 = vmatprep.subr.bf16.mxu0 0
  %1076 = vmatpush2.bf16.msra.mxu0 0
  %1077 = vmatprep.subr.bf16.mxu0 0
  %1078 = vmatpush2.bf16.msra.mxu0 0
  %1079 = vmatprep.subr.bf16.mxu0 %v1019
  %1080 = vmatpush2.bf16.msra.mxu0 %v1018
  %1081 = vmatprep.subr.bf16.mxu0 %v1016
  %1082 = vmatpush2.bf16.msra.mxu0 %v1015
  %1083 = vmatprep.mubr.bf16.mxu0 %v540
  %1084 = vmatmul.mubr.bf16.gmra.mxu0 %v305
  %v1085 = vpop.f32.mrf.mxu0
  %v1086 = vadd.f32 0.0, %v1085
  %v1087 = vpop.f32.mrf.mxu0
  %v1088 = vadd.f32 0.0, %v1087
  %v1089 = vpop.f32.mrf.mxu0
  %v1090 = vadd.f32 0.0, %v1089
  %v1091 = vpop.f32.mrf.mxu0
  %v1092 = vadd.f32 0.0, %v1091
  %1093 = vmatprep.mubr.bf16.mxu0 %v542
  %1094 = vmatmul.mubr.bf16.gmra.mxu0 %v308
  %v1095 = vpop.f32.mrf.mxu0
  %v1096 = vadd.f32 0.0, %v1095
  %v1097 = vpop.f32.mrf.mxu0
  %v1098 = vadd.f32 0.0, %v1097
  %v1099 = vpop.f32.mrf.mxu0
  %v1100 = vadd.f32 0.0, %v1099
  %v1101 = vpop.f32.mrf.mxu0
  %v1102 = vadd.f32 0.0, %v1101
  %1103 = vmatprep.mubr.bf16.mxu0 %v544
  %1104 = vmatmul.mubr.bf16.gmra.mxu0 %v311
  %v1105 = vpop.f32.mrf.mxu0
  %v1106 = vadd.f32 0.0, %v1105
  %v1107 = vpop.f32.mrf.mxu0
  %v1108 = vadd.f32 0.0, %v1107
  %v1109 = vpop.f32.mrf.mxu0
  %v1110 = vadd.f32 0.0, %v1109
  %v1111 = vpop.f32.mrf.mxu0
  %v1112 = vadd.f32 0.0, %v1111
  %1113 = vmatprep.mubr.bf16.mxu0 %v546
  %1114 = vmatmul.mubr.bf16.gmra.mxu0 %v314
  %v1115 = vpop.f32.mrf.mxu0
  %v1116 = vadd.f32 0.0, %v1115
  %v1117 = vpop.f32.mrf.mxu0
  %v1118 = vadd.f32 0.0, %v1117
  %v1119 = vpop.f32.mrf.mxu0
  %v1120 = vadd.f32 0.0, %v1119
  %v1121 = vpop.f32.mrf.mxu0
  %v1122 = vadd.f32 0.0, %v1121
  %1123 = vmatprep.mubr.bf16.mxu0 %v548
  %1124 = vmatmul.mubr.bf16.gmra.mxu0 %v317
  %v1125 = vpop.f32.mrf.mxu0
  %v1126 = vadd.f32 0.0, %v1125
  %v1127 = vpop.f32.mrf.mxu0
  %v1128 = vadd.f32 0.0, %v1127
  %v1129 = vpop.f32.mrf.mxu0
  %v1130 = vadd.f32 0.0, %v1129
  %v1131 = vpop.f32.mrf.mxu0
  %v1132 = vadd.f32 0.0, %v1131
  %1133 = vmatprep.mubr.bf16.mxu0 %v550
  %1134 = vmatmul.mubr.bf16.gmra.mxu0 %v320
  %v1135 = vpop.f32.mrf.mxu0
  %v1136 = vadd.f32 0.0, %v1135
  %v1137 = vpop.f32.mrf.mxu0
  %v1138 = vadd.f32 0.0, %v1137
  %v1139 = vpop.f32.mrf.mxu0
  %v1140 = vadd.f32 0.0, %v1139
  %v1141 = vpop.f32.mrf.mxu0
  %v1142 = vadd.f32 0.0, %v1141
  %1143 = vmatprep.mubr.bf16.mxu0 %v552
  %1144 = vmatmul.mubr.bf16.gmra.mxu0 %v323
  %v1145 = vpop.f32.mrf.mxu0
  %v1146 = vadd.f32 0.0, %v1145
  %v1147 = vpop.f32.mrf.mxu0
  %v1148 = vadd.f32 0.0, %v1147
  %v1149 = vpop.f32.mrf.mxu0
  %v1150 = vadd.f32 0.0, %v1149
  %v1151 = vpop.f32.mrf.mxu0
  %v1152 = vadd.f32 0.0, %v1151
  %1153 = vmatprep.mubr.bf16.mxu0 %v554
  %1154 = vmatmul.mubr.bf16.gmra.mxu0 %v326
  %v1155 = vpop.f32.mrf.mxu0
  %v1156 = vadd.f32 0.0, %v1155
  %v1157 = vpop.f32.mrf.mxu0
  %v1158 = vadd.f32 0.0, %v1157
  %v1159 = vpop.f32.mrf.mxu0
  %v1160 = vadd.f32 0.0, %v1159
  %v1161 = vpop.f32.mrf.mxu0
  %v1162 = vadd.f32 0.0, %v1161
  %1163 = vmatprep.mubr.bf16.mxu0 %v557
  %1164 = vmatmul.mubr.bf16.gmra.mxu0 %v329
  %v1165 = vpop.f32.mrf.mxu0
  %v1166 = vadd.f32 0.0, %v1165
  %v1167 = vpop.f32.mrf.mxu0
  %v1168 = vadd.f32 0.0, %v1167
  %v1169 = vpop.f32.mrf.mxu0
  %v1170 = vadd.f32 0.0, %v1169
  %v1171 = vpop.f32.mrf.mxu0
  %v1172 = vadd.f32 0.0, %v1171
  %1173 = vmatprep.mubr.bf16.mxu0 %v560
  %1174 = vmatmul.mubr.bf16.gmra.mxu0 %v332
  %v1175 = vpop.f32.mrf.mxu0
  %v1176 = vadd.f32 0.0, %v1175
  %v1177 = vpop.f32.mrf.mxu0
  %v1178 = vadd.f32 0.0, %v1177
  %v1179 = vpop.f32.mrf.mxu0
  %v1180 = vadd.f32 0.0, %v1179
  %v1181 = vpop.f32.mrf.mxu0
  %v1182 = vadd.f32 0.0, %v1181
  %1183 = vmatprep.mubr.bf16.mxu0 %v563
  %1184 = vmatmul.mubr.bf16.gmra.mxu0 %v335
  %v1185 = vpop.f32.mrf.mxu0
  %v1186 = vadd.f32 0.0, %v1185
  %v1187 = vpop.f32.mrf.mxu0
  %v1188 = vadd.f32 0.0, %v1187
  %v1189 = vpop.f32.mrf.mxu0
  %v1190 = vadd.f32 0.0, %v1189
  %v1191 = vpop.f32.mrf.mxu0
  %v1192 = vadd.f32 0.0, %v1191
  %1193 = vmatprep.mubr.bf16.mxu0 %v566
  %1194 = vmatmul.mubr.bf16.gmra.mxu0 %v338
  %v1195 = vpop.f32.mrf.mxu0
  %v1196 = vadd.f32 0.0, %v1195
  %v1197 = vpop.f32.mrf.mxu0
  %v1198 = vadd.f32 0.0, %v1197
  %v1199 = vpop.f32.mrf.mxu0
  %v1200 = vadd.f32 0.0, %v1199
  %v1201 = vpop.f32.mrf.mxu0
  %v1202 = vadd.f32 0.0, %v1201
  %1203 = vdwg.mxu0
  %1204 = vmatprep.subr.bf16.mxu0 0
  %1205 = vmatpush1.bf16.msra.mxu0 %v1014
  %1206 = vmatprep.subr.bf16.mxu0 0
  %1207 = vmatpush1.bf16.msra.mxu0 %v1011
  %1208 = vmatprep.subr.bf16.mxu0 0
  %1209 = vmatpush1.bf16.msra.mxu0 %v1008
  %1210 = vmatprep.subr.bf16.mxu0 0
  %1211 = vmatpush1.bf16.msra.mxu0 %v1005
  %1212 = vmatprep.subr.bf16.mxu0 0
  %1213 = vmatpush1.bf16.msra.mxu0 %v1002
  %1214 = vmatprep.subr.bf16.mxu0 0
  %1215 = vmatpush1.bf16.msra.mxu0 %v999
  %1216 = vmatprep.subr.bf16.mxu0 0
  %1217 = vmatpush1.bf16.msra.mxu0 %v996
  %1218 = vmatprep.subr.bf16.mxu0 0
  %1219 = vmatpush1.bf16.msra.mxu0 %v993
  %1220 = vmatprep.subr.bf16.mxu0 0
  %1221 = vmatpush2.bf16.msra.mxu0 0
  %1222 = vmatprep.subr.bf16.mxu0 0
  %1223 = vmatpush2.bf16.msra.mxu0 0
  %1224 = vmatprep.subr.bf16.mxu0 0
  %1225 = vmatpush2.bf16.msra.mxu0 0
  %1226 = vmatprep.subr.bf16.mxu0 0
  %1227 = vmatpush2.bf16.msra.mxu0 0
  %1228 = vmatprep.subr.bf16.mxu0 0
  %1229 = vmatpush2.bf16.msra.mxu0 0
  %1230 = vmatprep.subr.bf16.mxu0 0
  %1231 = vmatpush2.bf16.msra.mxu0 0
  %1232 = vmatprep.subr.bf16.mxu0 0
  %1233 = vmatpush2.bf16.msra.mxu0 %v1020
  %1234 = vmatprep.subr.bf16.mxu0 0
  %1235 = vmatpush2.bf16.msra.mxu0 %v1017
  %1236 = vmatprep.mubr.bf16.mxu0 %v540
  %1237 = vmatmul.mubr.bf16.gmra.mxu0 %v305
  %v1238 = vpop.f32.mrf.mxu0
  %v1239 = vadd.f32 0.0, %v1238
  %v1240 = vpop.f32.mrf.mxu0
  %v1241 = vpop.f32.mrf.mxu0
  %v1242 = vadd.f32 0.0, %v1241
  %v1243 = vpop.f32.mrf.mxu0
  %1244 = vmatprep.mubr.bf16.mxu0 %v542
  %1245 = vmatmul.mubr.bf16.gmra.mxu0 %v308
  %v1246 = vpop.f32.mrf.mxu0
  %v1247 = vadd.f32 0.0, %v1246
  %v1248 = vpop.f32.mrf.mxu0
  %v1249 = vpop.f32.mrf.mxu0
  %v1250 = vadd.f32 0.0, %v1249
  %v1251 = vpop.f32.mrf.mxu0
  %1252 = vmatprep.mubr.bf16.mxu0 %v544
  %1253 = vmatmul.mubr.bf16.gmra.mxu0 %v311
  %v1254 = vpop.f32.mrf.mxu0
  %v1255 = vadd.f32 0.0, %v1254
  %v1256 = vpop.f32.mrf.mxu0
  %v1257 = vpop.f32.mrf.mxu0
  %v1258 = vadd.f32 0.0, %v1257
  %v1259 = vpop.f32.mrf.mxu0
  %1260 = vmatprep.mubr.bf16.mxu0 %v546
  %1261 = vmatmul.mubr.bf16.gmra.mxu0 %v314
  %v1262 = vpop.f32.mrf.mxu0
  %v1263 = vadd.f32 0.0, %v1262
  %v1264 = vpop.f32.mrf.mxu0
  %v1265 = vpop.f32.mrf.mxu0
  %v1266 = vadd.f32 0.0, %v1265
  %v1267 = vpop.f32.mrf.mxu0
  %1268 = vmatprep.mubr.bf16.mxu0 %v548
  %1269 = vmatmul.mubr.bf16.gmra.mxu0 %v317
  %v1270 = vpop.f32.mrf.mxu0
  %v1271 = vadd.f32 0.0, %v1270
  %v1272 = vpop.f32.mrf.mxu0
  %v1273 = vpop.f32.mrf.mxu0
  %v1274 = vadd.f32 0.0, %v1273
  %v1275 = vpop.f32.mrf.mxu0
  %1276 = vmatprep.mubr.bf16.mxu0 %v550
  %1277 = vmatmul.mubr.bf16.gmra.mxu0 %v320
  %v1278 = vpop.f32.mrf.mxu0
  %v1279 = vadd.f32 0.0, %v1278
  %v1280 = vpop.f32.mrf.mxu0
  %v1281 = vpop.f32.mrf.mxu0
  %v1282 = vadd.f32 0.0, %v1281
  %v1283 = vpop.f32.mrf.mxu0
  %1284 = vmatprep.mubr.bf16.mxu0 %v552
  %1285 = vmatmul.mubr.bf16.gmra.mxu0 %v323
  %v1286 = vpop.f32.mrf.mxu0
  %v1287 = vadd.f32 0.0, %v1286
  %v1288 = vpop.f32.mrf.mxu0
  %v1289 = vpop.f32.mrf.mxu0
  %v1290 = vadd.f32 0.0, %v1289
  %v1291 = vpop.f32.mrf.mxu0
  %1292 = vmatprep.mubr.bf16.mxu0 %v554
  %1293 = vmatmul.mubr.bf16.gmra.mxu0 %v326
  %v1294 = vpop.f32.mrf.mxu0
  %v1295 = vadd.f32 0.0, %v1294
  %v1296 = vpop.f32.mrf.mxu0
  %v1297 = vpop.f32.mrf.mxu0
  %v1298 = vadd.f32 0.0, %v1297
  %v1299 = vpop.f32.mrf.mxu0
  %1300 = vmatprep.mubr.bf16.mxu0 %v557
  %1301 = vmatmul.mubr.bf16.gmra.mxu0 %v329
  %v1302 = vpop.f32.mrf.mxu0
  %v1303 = vadd.f32 0.0, %v1302
  %v1304 = vpop.f32.mrf.mxu0
  %v1305 = vpop.f32.mrf.mxu0
  %v1306 = vadd.f32 0.0, %v1305
  %v1307 = vpop.f32.mrf.mxu0
  %1308 = vmatprep.mubr.bf16.mxu0 %v560
  %1309 = vmatmul.mubr.bf16.gmra.mxu0 %v332
  %v1310 = vpop.f32.mrf.mxu0
  %v1311 = vadd.f32 0.0, %v1310
  %v1312 = vpop.f32.mrf.mxu0
  %v1313 = vpop.f32.mrf.mxu0
  %v1314 = vadd.f32 0.0, %v1313
  %v1315 = vpop.f32.mrf.mxu0
  %1316 = vmatprep.mubr.bf16.mxu0 %v563
  %1317 = vmatmul.mubr.bf16.gmra.mxu0 %v335
  %v1318 = vpop.f32.mrf.mxu0
  %v1319 = vadd.f32 0.0, %v1318
  %v1320 = vpop.f32.mrf.mxu0
  %v1321 = vpop.f32.mrf.mxu0
  %v1322 = vadd.f32 0.0, %v1321
  %v1323 = vpop.f32.mrf.mxu0
  %1324 = vmatprep.mubr.bf16.mxu0 %v566
  %1325 = vmatmul.mubr.bf16.gmra.mxu0 %v338
  %v1326 = vpop.f32.mrf.mxu0
  %v1327 = vadd.f32 0.0, %v1326
  %v1328 = vpop.f32.mrf.mxu0
  %v1329 = vpop.f32.mrf.mxu0
  %v1330 = vadd.f32 0.0, %v1329
  %v1331 = vpop.f32.mrf.mxu0
  %1332 = vdwg.mxu0
  %v1333 = vmax.f32 %v603, %v1086
  %v1334 = vmax.f32 %v605, %v1088
  %v1335 = vmax.f32 %v756, %v1239
  %v1336 = vmax.f32 %v607, %v1090
  %v1337 = vmax.f32 %v609, %v1092
  %v1338 = vmax.f32 %v759, %v1242
  %v1339 = vmax.f32 %v613, %v1096
  %v1340 = vmax.f32 %v615, %v1098
  %v1341 = vmax.f32 %v764, %v1247
  %v1342 = vmax.f32 %v617, %v1100
  %v1343 = vmax.f32 %v619, %v1102
  %v1344 = vmax.f32 %v767, %v1250
  %v1345 = vmax.f32 %v623, %v1106
  %v1346 = vmax.f32 %v625, %v1108
  %v1347 = vmax.f32 %v772, %v1255
  %v1348 = vmax.f32 %v627, %v1110
  %v1349 = vmax.f32 %v629, %v1112
  %v1350 = vmax.f32 %v775, %v1258
  %v1351 = vmax.f32 %v633, %v1116
  %v1352 = vmax.f32 %v635, %v1118
  %v1353 = vmax.f32 %v780, %v1263
  %v1354 = vmax.f32 %v637, %v1120
  %v1355 = vmax.f32 %v639, %v1122
  %v1356 = vmax.f32 %v783, %v1266
  %v1357 = vmax.f32 %v643, %v1126
  %v1358 = vmax.f32 %v645, %v1128
  %v1359 = vmax.f32 %v788, %v1271
  %v1360 = vmax.f32 %v647, %v1130
  %v1361 = vmax.f32 %v649, %v1132
  %v1362 = vmax.f32 %v791, %v1274
  %v1363 = vmax.f32 %v653, %v1136
  %v1364 = vmax.f32 %v655, %v1138
  %v1365 = vmax.f32 %v796, %v1279
  %v1366 = vmax.f32 %v657, %v1140
  %v1367 = vmax.f32 %v659, %v1142
  %v1368 = vmax.f32 %v799, %v1282
  %v1369 = vmax.f32 %v663, %v1146
  %v1370 = vmax.f32 %v665, %v1148
  %v1371 = vmax.f32 %v804, %v1287
  %v1372 = vmax.f32 %v667, %v1150
  %v1373 = vmax.f32 %v669, %v1152
  %v1374 = vmax.f32 %v807, %v1290
  %v1375 = vmax.f32 %v673, %v1156
  %v1376 = vmax.f32 %v675, %v1158
  %v1377 = vmax.f32 %v812, %v1295
  %v1378 = vmax.f32 %v677, %v1160
  %v1379 = vmax.f32 %v679, %v1162
  %v1380 = vmax.f32 %v815, %v1298
  %v1381 = vmax.f32 %v683, %v1166
  %v1382 = vmax.f32 %v685, %v1168
  %v1383 = vmax.f32 %v820, %v1303
  %v1384 = vmax.f32 %v687, %v1170
  %v1385 = vmax.f32 %v689, %v1172
  %v1386 = vmax.f32 %v823, %v1306
  %v1387 = vmax.f32 %v693, %v1176
  %v1388 = vmax.f32 %v695, %v1178
  %v1389 = vmax.f32 %v828, %v1311
  %v1390 = vmax.f32 %v697, %v1180
  %v1391 = vmax.f32 %v699, %v1182
  %v1392 = vmax.f32 %v831, %v1314
  %v1393 = vmax.f32 %v703, %v1186
  %v1394 = vmax.f32 %v705, %v1188
  %v1395 = vmax.f32 %v836, %v1319
  %v1396 = vmax.f32 %v707, %v1190
  %v1397 = vmax.f32 %v709, %v1192
  %v1398 = vmax.f32 %v839, %v1322
  %v1399 = vmax.f32 %v713, %v1196
  %v1400 = vmax.f32 %v715, %v1198
  %v1401 = vmax.f32 %v844, %v1327
  %v1402 = vmax.f32 %v717, %v1200
  %v1403 = vmax.f32 %v719, %v1202
  %v1404 = vmax.f32 %v847, %v1330
  %v1405 = vmax.f32 %v1333, %v1339
  %v1406 = vmax.f32 %v1334, %v1340
  %v1407 = vmax.f32 %v1335, %v1341
  %v1408 = vmax.f32 %v1336, %v1342
  %v1409 = vmax.f32 %v1337, %v1343
  %v1410 = vmax.f32 %v1338, %v1344
  %v1411 = vmax.f32 %v1345, %v1351
  %v1412 = vmax.f32 %v1346, %v1352
  %v1413 = vmax.f32 %v1347, %v1353
  %v1414 = vmax.f32 %v1348, %v1354
  %v1415 = vmax.f32 %v1349, %v1355
  %v1416 = vmax.f32 %v1350, %v1356
  %v1417 = vmax.f32 %v1357, %v1363
  %v1418 = vmax.f32 %v1358, %v1364
  %v1419 = vmax.f32 %v1359, %v1365
  %v1420 = vmax.f32 %v1360, %v1366
  %v1421 = vmax.f32 %v1361, %v1367
  %v1422 = vmax.f32 %v1362, %v1368
  %v1423 = vmax.f32 %v1369, %v1375
  %v1424 = vmax.f32 %v1370, %v1376
  %v1425 = vmax.f32 %v1371, %v1377
  %v1426 = vmax.f32 %v1372, %v1378
  %v1427 = vmax.f32 %v1373, %v1379
  %v1428 = vmax.f32 %v1374, %v1380
  %v1429 = vmax.f32 %v1381, %v1387
  %v1430 = vmax.f32 %v1382, %v1388
  %v1431 = vmax.f32 %v1383, %v1389
  %v1432 = vmax.f32 %v1384, %v1390
  %v1433 = vmax.f32 %v1385, %v1391
  %v1434 = vmax.f32 %v1386, %v1392
  %v1435 = vmax.f32 %v1393, %v1399
  %v1436 = vmax.f32 %v1394, %v1400
  %v1437 = vmax.f32 %v1395, %v1401
  %v1438 = vmax.f32 %v1396, %v1402
  %v1439 = vmax.f32 %v1397, %v1403
  %v1440 = vmax.f32 %v1398, %v1404
  %v1441 = vld [vmem:[%s4] sm:$0x7]
  %v1443 = vlaneseq
  %v1444 = vshrl.u32 %v1443, 7
  %v1445 = vsub.s32 0, %v1444
  %v1446 = vrot.slane %v1441, %v1445
  %v1447 = vlaneseq
  %v1448 = vshrl.u32 %v1447, 7
  %v1449 = vsub.s32 1, %v1448
  %v1450 = vrot.slane %v1441, %v1449
  %v1451 = vlaneseq
  %v1452 = vshrl.u32 %v1451, 7
  %v1453 = vsub.s32 2, %v1452
  %v1454 = vrot.slane %v1441, %v1453
  %v1458 = vadd.f32 %v1405, %v1446
  %v1459 = vadd.f32 %v1406, %v1450
  %v1460 = vadd.f32 %v1407, %v1454
  %v1461 = vadd.f32 %v1408, %v1446
  %v1462 = vadd.f32 %v1409, %v1450
  %v1463 = vadd.f32 %v1410, %v1454
  %v1464 = vadd.f32 %v1411, %v1446
  %v1465 = vadd.f32 %v1412, %v1450
  %v1466 = vadd.f32 %v1413, %v1454
  %v1467 = vadd.f32 %v1414, %v1446
  %v1468 = vadd.f32 %v1415, %v1450
  %v1469 = vadd.f32 %v1416, %v1454
  %v1470 = vadd.f32 %v1417, %v1446
  %v1471 = vadd.f32 %v1418, %v1450
  %v1472 = vadd.f32 %v1419, %v1454
  %v1473 = vadd.f32 %v1420, %v1446
  %v1474 = vadd.f32 %v1421, %v1450
  %v1475 = vadd.f32 %v1422, %v1454
  %v1476 = vadd.f32 %v1423, %v1446
  %v1477 = vadd.f32 %v1424, %v1450
  %v1478 = vadd.f32 %v1425, %v1454
  %v1479 = vadd.f32 %v1426, %v1446
  %v1480 = vadd.f32 %v1427, %v1450
  %v1481 = vadd.f32 %v1428, %v1454
  %v1482 = vadd.f32 %v1429, %v1446
  %v1483 = vadd.f32 %v1430, %v1450
  %v1484 = vadd.f32 %v1431, %v1454
  %v1485 = vadd.f32 %v1432, %v1446
  %v1486 = vadd.f32 %v1433, %v1450
  %v1487 = vadd.f32 %v1434, %v1454
  %v1488 = vadd.f32 %v1435, %v1446
  %v1489 = vadd.f32 %v1436, %v1450
  %v1490 = vadd.f32 %v1437, %v1454
  %v1491 = vadd.f32 %v1438, %v1446
  %v1492 = vadd.f32 %v1439, %v1450
  %v1493 = vadd.f32 %v1440, %v1454
  %v1494 = vpack.c.bf16 %v1461, %v1458
  %v1495 = vpack.c.bf16 %v1462, %v1459
  %v1496 = vpack.c.bf16 %v1463, %v1460
  %v1497 = vpack.c.bf16 %v1467, %v1464
  %v1498 = vpack.c.bf16 %v1468, %v1465
  %v1499 = vpack.c.bf16 %v1469, %v1466
  %v1500 = vpack.c.bf16 %v1473, %v1470
  %v1501 = vpack.c.bf16 %v1474, %v1471
  %v1502 = vpack.c.bf16 %v1475, %v1472
  %v1503 = vpack.c.bf16 %v1479, %v1476
  %v1504 = vpack.c.bf16 %v1480, %v1477
  %v1505 = vpack.c.bf16 %v1481, %v1478
  %v1506 = vpack.c.bf16 %v1485, %v1482
  %v1507 = vpack.c.bf16 %v1486, %v1483
  %v1508 = vpack.c.bf16 %v1487, %v1484
  %v1509 = vpack.c.bf16 %v1491, %v1488
  %v1510 = vpack.c.bf16 %v1492, %v1489
  %v1511 = vpack.c.bf16 %v1493, %v1490
  %v1512 = vld [vmem:[%s5] sm:$0xf]
  %v1513 = vld [vmem:[%s5 + $0x4] sm:$0xf]
  %v1514 = vld [vmem:[%s5 + $0x8] sm:$0xf]
  %v1515 = vld [vmem:[%s5 + $0xc] sm:$0xf]
  %v1516 = vld [vmem:[%s5 + $0x10] sm:$0xf]
  %v1517 = vld [vmem:[%s5 + $0x14] sm:$0xf]
  %v1518 = vld [vmem:[%s5 + $0x18] sm:$0xf]
  %v1519 = vld [vmem:[%s5 + $0x1c] sm:$0xf]
  %v1520 = vld [vmem:[%s5 + $0x20] sm:$0xf]
  %v1521 = vld [vmem:[%s5 + $0x24] sm:$0xf]
  %v1522 = vld [vmem:[%s5 + $0x28] sm:$0xf]
  %v1523 = vld [vmem:[%s5 + $0x2c] sm:$0xf]
  %v1524 = vld [vmem:[%s5 + $0x30] sm:$0xf]
  %v1525 = vld [vmem:[%s5 + $0x34] sm:$0xf]
  %v1526 = vld [vmem:[%s5 + $0x38] sm:$0xf]
  %v1527 = vld [vmem:[%s5 + $0x3c] sm:$0xf]
  %v1528 = vld [vmem:[%s5 + $0x40] sm:$0xf]
  %v1529 = vld [vmem:[%s5 + $0x44] sm:$0xf]
  %v1530 = vld [vmem:[%s5 + $0x48] sm:$0xf]
  %v1531 = vld [vmem:[%s5 + $0x4c] sm:$0xf]
  %v1532 = vld [vmem:[%s5 + $0x50] sm:$0xf]
  %v1533 = vld [vmem:[%s5 + $0x54] sm:$0xf]
  %v1534 = vld [vmem:[%s5 + $0x58] sm:$0xf]
  %v1535 = vld [vmem:[%s5 + $0x5c] sm:$0xf]
  %v1536 = vld [vmem:[%s5 + $0x60] sm:$0xf]
  %v1537 = vld [vmem:[%s5 + $0x64] sm:$0xf]
  %v1538 = vld [vmem:[%s5 + $0x68] sm:$0xf]
  %v1539 = vld [vmem:[%s5 + $0x6c] sm:$0xf]
  %v1540 = vld [vmem:[%s5 + $0x70] sm:$0xf]
  %v1541 = vld [vmem:[%s5 + $0x74] sm:$0xf]
  %v1542 = vld [vmem:[%s5 + $0x78] sm:$0xf]
  %v1543 = vld [vmem:[%s5 + $0x7c] sm:$0xf]
  %v1544 = vld [vmem:[%s5 + $0x80] sm:$0xf]
  %v1545 = vld [vmem:[%s5 + $0x84] sm:$0xf]
  %v1546 = vld [vmem:[%s5 + $0x88] sm:$0xf]
  %v1547 = vld [vmem:[%s5 + $0x8c] sm:$0xf]
  %v1548 = vld [vmem:[%s5 + $0x90] sm:$0xf]
  %v1549 = vld [vmem:[%s5 + $0x94] sm:$0xf]
  %v1550 = vld [vmem:[%s5 + $0x98] sm:$0xf]
  %v1551 = vld [vmem:[%s5 + $0x9c] sm:$0xf]
  %v1552 = vld [vmem:[%s5 + $0xa0] sm:$0xf]
  %v1553 = vld [vmem:[%s5 + $0xa4] sm:$0xf]
  %v1554 = vld [vmem:[%s5 + $0xa8] sm:$0xf]
  %v1555 = vld [vmem:[%s5 + $0xac] sm:$0xf]
  %v1556 = vld [vmem:[%s5 + $0xb0] sm:$0xf]
  %v1557 = vld [vmem:[%s5 + $0xb4] sm:$0xf]
  %v1558 = vld [vmem:[%s5 + $0xb8] sm:$0xf]
  %v1559 = vld [vmem:[%s5 + $0xbc] sm:$0xf]
  %v1560 = vld [vmem:[%s5 + $0xc0] sm:$0xf]
  %v1561 = vld [vmem:[%s5 + $0xc4] sm:$0xf]
  %v1562 = vld [vmem:[%s5 + $0xc8] sm:$0xf]
  %v1563 = vld [vmem:[%s5 + $0xcc] sm:$0xf]
  %v1564 = vld [vmem:[%s5 + $0xd0] sm:$0xf]
  %v1565 = vld [vmem:[%s5 + $0xd4] sm:$0xf]
  %v1566 = vld [vmem:[%s5 + $0xd8] sm:$0xf]
  %v1567 = vld [vmem:[%s5 + $0xdc] sm:$0xf]
  %v1568 = vld [vmem:[%s5 + $0xe0] sm:$0xf]
  %v1569 = vld [vmem:[%s5 + $0xe4] sm:$0xf]
  %v1570 = vld [vmem:[%s5 + $0xe8] sm:$0xf]
  %v1571 = vld [vmem:[%s5 + $0xec] sm:$0xf]
  %v1572 = vld [vmem:[%s5 + $0xf0] sm:$0xf]
  %v1573 = vld [vmem:[%s5 + $0xf4] sm:$0xf]
  %v1574 = vld [vmem:[%s5 + $0xf8] sm:$0xf]
  %v1575 = vld [vmem:[%s5 + $0xfc] sm:$0xf]
  %v1576 = vld [vmem:[%s5 + $0x100] sm:$0xf]
  %v1577 = vld [vmem:[%s5 + $0x104] sm:$0xf]
  %v1578 = vld [vmem:[%s5 + $0x108] sm:$0xf]
  %v1579 = vld [vmem:[%s5 + $0x10c] sm:$0xf]
  %v1580 = vld [vmem:[%s5 + $0x110] sm:$0xf]
  %v1581 = vld [vmem:[%s5 + $0x114] sm:$0xf]
  %v1582 = vld [vmem:[%s5 + $0x118] sm:$0xf]
  %v1583 = vld [vmem:[%s5 + $0x11c] sm:$0xf]
  %v1584 = vld [vmem:[%s5 + $0x120] sm:$0xf]
  %v1585 = vld [vmem:[%s5 + $0x124] sm:$0xf]
  %v1586 = vld [vmem:[%s5 + $0x128] sm:$0xf]
  %v1587 = vld [vmem:[%s5 + $0x12c] sm:$0xf]
  %v1588 = vld [vmem:[%s5 + $0x130] sm:$0xf]
  %v1589 = vld [vmem:[%s5 + $0x134] sm:$0xf]
  %v1590 = vld [vmem:[%s5 + $0x138] sm:$0xf]
  %v1591 = vld [vmem:[%s5 + $0x13c] sm:$0xf]
  %v1592 = vld [vmem:[%s5 + $0x140] sm:$0xf]
  %v1593 = vld [vmem:[%s5 + $0x144] sm:$0xf]
  %v1594 = vld [vmem:[%s5 + $0x148] sm:$0xf]
  %v1595 = vld [vmem:[%s5 + $0x14c] sm:$0xf]
  %v1596 = vld [vmem:[%s5 + $0x150] sm:$0xf]
  %v1597 = vld [vmem:[%s5 + $0x154] sm:$0xf]
  %v1598 = vld [vmem:[%s5 + $0x158] sm:$0xf]
  %v1599 = vld [vmem:[%s5 + $0x15c] sm:$0xf]
  %v1600 = vld [vmem:[%s5 + $0x160] sm:$0xf]
  %v1601 = vld [vmem:[%s5 + $0x164] sm:$0xf]
  %v1602 = vld [vmem:[%s5 + $0x168] sm:$0xf]
  %v1603 = vld [vmem:[%s5 + $0x16c] sm:$0xf]
  %v1604 = vld [vmem:[%s5 + $0x170] sm:$0xf]
  %v1605 = vld [vmem:[%s5 + $0x174] sm:$0xf]
  %v1606 = vld [vmem:[%s5 + $0x178] sm:$0xf]
  %v1607 = vld [vmem:[%s5 + $0x17c] sm:$0xf]
  %v1608 = vld [vmem:[%s5 + $0x180] sm:$0xf]
  %v1609 = vld [vmem:[%s5 + $0x184] sm:$0xf]
  %v1610 = vld [vmem:[%s5 + $0x188] sm:$0xf]
  %v1611 = vld [vmem:[%s5 + $0x18c] sm:$0xf]
  %v1612 = vld [vmem:[%s5 + $0x190] sm:$0xf]
  %v1613 = vld [vmem:[%s5 + $0x194] sm:$0xf]
  %v1614 = vld [vmem:[%s5 + $0x198] sm:$0xf]
  %v1615 = vld [vmem:[%s5 + $0x19c] sm:$0xf]
  %v1616 = vld [vmem:[%s5 + $0x1a0] sm:$0xf]
  %v1617 = vld [vmem:[%s5 + $0x1a4] sm:$0xf]
  %v1618 = vld [vmem:[%s5 + $0x1a8] sm:$0xf]
  %v1619 = vld [vmem:[%s5 + $0x1ac] sm:$0xf]
  %v1620 = vld [vmem:[%s5 + $0x1b0] sm:$0xf]
  %v1621 = vld [vmem:[%s5 + $0x1b4] sm:$0xf]
  %v1622 = vld [vmem:[%s5 + $0x1b8] sm:$0xf]
  %v1623 = vld [vmem:[%s5 + $0x1bc] sm:$0xf]
  %v1624 = vld [vmem:[%s5 + $0x1c0] sm:$0xf]
  %v1625 = vld [vmem:[%s5 + $0x1c4] sm:$0xf]
  %v1626 = vld [vmem:[%s5 + $0x1c8] sm:$0xf]
  %v1627 = vld [vmem:[%s5 + $0x1cc] sm:$0xf]
  %v1628 = vld [vmem:[%s5 + $0x1d0] sm:$0xf]
  %v1629 = vld [vmem:[%s5 + $0x1d4] sm:$0xf]
  %v1630 = vld [vmem:[%s5 + $0x1d8] sm:$0xf]
  %v1631 = vld [vmem:[%s5 + $0x1dc] sm:$0xf]
  %v1632 = vld [vmem:[%s5 + $0x1e0] sm:$0xf]
  %v1633 = vld [vmem:[%s5 + $0x1e4] sm:$0xf]
  %v1634 = vld [vmem:[%s5 + $0x1e8] sm:$0xf]
  %v1635 = vld [vmem:[%s5 + $0x1ec] sm:$0xf]
  %v1636 = vld [vmem:[%s5 + $0x1f0] sm:$0xf]
  %v1637 = vld [vmem:[%s5 + $0x1f4] sm:$0xf]
  %v1638 = vld [vmem:[%s5 + $0x1f8] sm:$0xf]
  %v1639 = vld [vmem:[%s5 + $0x1fc] sm:$0xf]
  %v1640 = vld [vmem:[%s5 + $0x200] sm:$0xf]
  %v1641 = vld [vmem:[%s5 + $0x204] sm:$0xf]
  %v1642 = vld [vmem:[%s5 + $0x208] sm:$0xf]
  %v1643 = vld [vmem:[%s5 + $0x20c] sm:$0xf]
  %v1644 = vld [vmem:[%s5 + $0x210] sm:$0xf]
  %v1645 = vld [vmem:[%s5 + $0x214] sm:$0xf]
  %v1646 = vld [vmem:[%s5 + $0x218] sm:$0xf]
  %v1647 = vld [vmem:[%s5 + $0x21c] sm:$0xf]
  %v1648 = vld [vmem:[%s5 + $0x220] sm:$0xf]
  %v1649 = vld [vmem:[%s5 + $0x224] sm:$0xf]
  %v1650 = vld [vmem:[%s5 + $0x228] sm:$0xf]
  %v1651 = vld [vmem:[%s5 + $0x22c] sm:$0xf]
  %v1652 = vld [vmem:[%s5 + $0x230] sm:$0xf]
  %v1653 = vld [vmem:[%s5 + $0x234] sm:$0xf]
  %v1654 = vld [vmem:[%s5 + $0x238] sm:$0xf]
  %v1655 = vld [vmem:[%s5 + $0x23c] sm:$0xf]
  %v1656 = vld [vmem:[%s5 + $0x240] sm:$0xf]
  %v1657 = vld [vmem:[%s5 + $0x244] sm:$0xf]
  %v1658 = vld [vmem:[%s5 + $0x248] sm:$0xf]
  %v1659 = vld [vmem:[%s5 + $0x24c] sm:$0xf]
  %v1660 = vld [vmem:[%s5 + $0x250] sm:$0xf]
  %v1661 = vld [vmem:[%s5 + $0x254] sm:$0xf]
  %v1662 = vld [vmem:[%s5 + $0x258] sm:$0xf]
  %v1663 = vld [vmem:[%s5 + $0x25c] sm:$0xf]
  %v1664 = vld [vmem:[%s5 + $0x260] sm:$0xf]
  %v1665 = vld [vmem:[%s5 + $0x264] sm:$0xf]
  %v1666 = vld [vmem:[%s5 + $0x268] sm:$0xf]
  %v1667 = vld [vmem:[%s5 + $0x26c] sm:$0xf]
  %v1668 = vld [vmem:[%s5 + $0x270] sm:$0xf]
  %v1669 = vld [vmem:[%s5 + $0x274] sm:$0xf]
  %v1670 = vld [vmem:[%s5 + $0x278] sm:$0xf]
  %v1671 = vld [vmem:[%s5 + $0x27c] sm:$0xf]
  %v1672 = vld [vmem:[%s5 + $0x280] sm:$0xf]
  %v1673 = vld [vmem:[%s5 + $0x284] sm:$0xf]
  %v1674 = vld [vmem:[%s5 + $0x288] sm:$0xf]
  %v1675 = vld [vmem:[%s5 + $0x28c] sm:$0xf]
  %v1676 = vld [vmem:[%s5 + $0x290] sm:$0xf]
  %v1677 = vld [vmem:[%s5 + $0x294] sm:$0xf]
  %v1678 = vld [vmem:[%s5 + $0x298] sm:$0xf]
  %v1679 = vld [vmem:[%s5 + $0x29c] sm:$0xf]
  %v1680 = vld [vmem:[%s5 + $0x2a0] sm:$0xf]
  %v1681 = vld [vmem:[%s5 + $0x2a4] sm:$0xf]
  %v1682 = vld [vmem:[%s5 + $0x2a8] sm:$0xf]
  %v1683 = vld [vmem:[%s5 + $0x2ac] sm:$0xf]
  %v1684 = vld [vmem:[%s5 + $0x2b0] sm:$0xf]
  %v1685 = vld [vmem:[%s5 + $0x2b4] sm:$0xf]
  %v1686 = vld [vmem:[%s5 + $0x2b8] sm:$0xf]
  %v1687 = vld [vmem:[%s5 + $0x2bc] sm:$0xf]
  %v1688 = vld [vmem:[%s5 + $0x2c0] sm:$0xf]
  %v1689 = vld [vmem:[%s5 + $0x2c4] sm:$0xf]
  %v1690 = vld [vmem:[%s5 + $0x2c8] sm:$0xf]
  %v1691 = vld [vmem:[%s5 + $0x2cc] sm:$0xf]
  %v1692 = vld [vmem:[%s5 + $0x2d0] sm:$0xf]
  %v1693 = vld [vmem:[%s5 + $0x2d4] sm:$0xf]
  %v1694 = vld [vmem:[%s5 + $0x2d8] sm:$0xf]
  %v1695 = vld [vmem:[%s5 + $0x2dc] sm:$0xf]
  %v1696 = vld [vmem:[%s5 + $0x2e0] sm:$0xf]
  %v1697 = vld [vmem:[%s5 + $0x2e4] sm:$0xf]
  %v1698 = vld [vmem:[%s5 + $0x2e8] sm:$0xf]
  %v1699 = vld [vmem:[%s5 + $0x2ec] sm:$0xf]
  %v1700 = vld [vmem:[%s5 + $0x2f0] sm:$0xf]
  %v1701 = vld [vmem:[%s5 + $0x2f4] sm:$0xf]
  %v1702 = vld [vmem:[%s5 + $0x2f8] sm:$0xf]
  %v1703 = vld [vmem:[%s5 + $0x2fc] sm:$0xf]
  %v1704 = vld [vmem:[%s5 + $0x300] sm:$0xf]
  %v1705 = vld [vmem:[%s5 + $0x304] sm:$0xf]
  %v1706 = vld [vmem:[%s5 + $0x308] sm:$0xf]
  %v1707 = vld [vmem:[%s5 + $0x30c] sm:$0xf]
  %v1708 = vld [vmem:[%s5 + $0x310] sm:$0xf]
  %v1709 = vld [vmem:[%s5 + $0x314] sm:$0xf]
  %v1710 = vld [vmem:[%s5 + $0x318] sm:$0xf]
  %v1711 = vld [vmem:[%s5 + $0x31c] sm:$0xf]
  %v1712 = vld [vmem:[%s5 + $0x320] sm:$0xf]
  %v1713 = vld [vmem:[%s5 + $0x324] sm:$0xf]
  %v1714 = vld [vmem:[%s5 + $0x328] sm:$0xf]
  %v1715 = vld [vmem:[%s5 + $0x32c] sm:$0xf]
  %v1716 = vld [vmem:[%s5 + $0x330] sm:$0xf]
  %v1717 = vld [vmem:[%s5 + $0x334] sm:$0xf]
  %v1718 = vld [vmem:[%s5 + $0x338] sm:$0xf]
  %v1719 = vld [vmem:[%s5 + $0x33c] sm:$0xf]
  %v1720 = vld [vmem:[%s5 + $0x340] sm:$0xf]
  %v1721 = vld [vmem:[%s5 + $0x344] sm:$0xf]
  %v1722 = vld [vmem:[%s5 + $0x348] sm:$0xf]
  %v1723 = vld [vmem:[%s5 + $0x34c] sm:$0xf]
  %v1724 = vld [vmem:[%s5 + $0x350] sm:$0xf]
  %v1725 = vld [vmem:[%s5 + $0x354] sm:$0xf]
  %v1726 = vld [vmem:[%s5 + $0x358] sm:$0xf]
  %v1727 = vld [vmem:[%s5 + $0x35c] sm:$0xf]
  %v1728 = vld [vmem:[%s5 + $0x360] sm:$0xf]
  %v1729 = vld [vmem:[%s5 + $0x364] sm:$0xf]
  %v1730 = vld [vmem:[%s5 + $0x368] sm:$0xf]
  %v1731 = vld [vmem:[%s5 + $0x36c] sm:$0xf]
  %v1732 = vld [vmem:[%s5 + $0x370] sm:$0xf]
  %v1733 = vld [vmem:[%s5 + $0x374] sm:$0xf]
  %v1734 = vld [vmem:[%s5 + $0x378] sm:$0xf]
  %v1735 = vld [vmem:[%s5 + $0x37c] sm:$0xf]
  %v1736 = vld [vmem:[%s5 + $0x380] sm:$0xf]
  %v1737 = vld [vmem:[%s5 + $0x384] sm:$0xf]
  %v1738 = vld [vmem:[%s5 + $0x388] sm:$0xf]
  %v1739 = vld [vmem:[%s5 + $0x38c] sm:$0xf]
  %v1740 = vld [vmem:[%s5 + $0x390] sm:$0xf]
  %v1741 = vld [vmem:[%s5 + $0x394] sm:$0xf]
  %v1742 = vld [vmem:[%s5 + $0x398] sm:$0xf]
  %v1743 = vld [vmem:[%s5 + $0x39c] sm:$0xf]
  %v1744 = vld [vmem:[%s5 + $0x3a0] sm:$0xf]
  %v1745 = vld [vmem:[%s5 + $0x3a4] sm:$0xf]
  %v1746 = vld [vmem:[%s5 + $0x3a8] sm:$0xf]
  %v1747 = vld [vmem:[%s5 + $0x3ac] sm:$0xf]
  %v1748 = vld [vmem:[%s5 + $0x3b0] sm:$0xf]
  %v1749 = vld [vmem:[%s5 + $0x3b4] sm:$0xf]
  %v1750 = vld [vmem:[%s5 + $0x3b8] sm:$0xf]
  %v1751 = vld [vmem:[%s5 + $0x3bc] sm:$0xf]
  %v1992 = vunpack.c.l.b16 %v1512
  %v1993 = vunpack.c.l.b16 %v1513
  %v1994 = vunpack.c.l.b16 %v1514
  %v1995 = vunpack.c.l.b16 %v1515
  %v1996 = vunpack.c.l.b16 %v1516
  %v1997 = vunpack.c.l.b16 %v1517
  %v1998 = vunpack.c.l.b16 %v1518
  %v1999 = vunpack.c.l.b16 %v1519
  %v2000 = vunpack.c.l.b16 %v1520
  %v2001 = vunpack.c.l.b16 %v1521
  %v2002 = vunpack.c.l.b16 %v1522
  %v2003 = vunpack.c.l.b16 %v1523
  %v2004 = vunpack.c.l.b16 %v1524
  %v2005 = vunpack.c.l.b16 %v1525
  %v2006 = vunpack.c.l.b16 %v1526
  %v2007 = vunpack.c.l.b16 %v1527
  %v2008 = vunpack.c.l.b16 %v1528
  %v2009 = vunpack.c.l.b16 %v1529
  %v2010 = vunpack.c.l.b16 %v1530
  %v2011 = vunpack.c.l.b16 %v1531
  %v2012 = vunpack.c.l.b16 %v1532
  %v2013 = vunpack.c.l.b16 %v1533
  %v2014 = vunpack.c.l.b16 %v1534
  %v2015 = vunpack.c.l.b16 %v1535
  %v2016 = vunpack.c.l.b16 %v1536
  %v2017 = vunpack.c.l.b16 %v1537
  %v2018 = vunpack.c.l.b16 %v1538
  %v2019 = vunpack.c.l.b16 %v1539
  %v2020 = vunpack.c.l.b16 %v1540
  %v2021 = vunpack.c.l.b16 %v1541
  %v2022 = vunpack.c.l.b16 %v1542
  %v2023 = vunpack.c.l.b16 %v1543
  %v2024 = vunpack.c.l.b16 %v1544
  %v2025 = vunpack.c.l.b16 %v1545
  %v2026 = vunpack.c.l.b16 %v1546
  %v2027 = vunpack.c.l.b16 %v1547
  %v2028 = vunpack.c.l.b16 %v1548
  %v2029 = vunpack.c.l.b16 %v1549
  %v2030 = vunpack.c.l.b16 %v1550
  %v2031 = vunpack.c.l.b16 %v1551
  %v2032 = vunpack.c.l.b16 %v1552
  %v2033 = vunpack.c.l.b16 %v1553
  %v2034 = vunpack.c.l.b16 %v1554
  %v2035 = vunpack.c.l.b16 %v1555
  %v2036 = vunpack.c.l.b16 %v1556
  %v2037 = vunpack.c.l.b16 %v1557
  %v2038 = vunpack.c.l.b16 %v1558
  %v2039 = vunpack.c.l.b16 %v1559
  %v2040 = vunpack.c.l.b16 %v1560
  %v2041 = vunpack.c.l.b16 %v1561
  %v2042 = vunpack.c.l.b16 %v1562
  %v2043 = vunpack.c.l.b16 %v1563
  %v2044 = vunpack.c.l.b16 %v1564
  %v2045 = vunpack.c.l.b16 %v1565
  %v2046 = vunpack.c.l.b16 %v1566
  %v2047 = vunpack.c.l.b16 %v1567
  %v2048 = vunpack.c.l.b16 %v1568
  %v2049 = vunpack.c.l.b16 %v1569
  %v2050 = vunpack.c.l.b16 %v1570
  %v2051 = vunpack.c.l.b16 %v1571
  %v2052 = vunpack.c.l.b16 %v1572
  %v2053 = vunpack.c.l.b16 %v1573
  %v2054 = vunpack.c.l.b16 %v1574
  %v2055 = vunpack.c.l.b16 %v1575
  %v2056 = vunpack.c.l.b16 %v1576
  %v2057 = vunpack.c.l.b16 %v1577
  %v2058 = vunpack.c.l.b16 %v1578
  %v2059 = vunpack.c.l.b16 %v1579
  %v2060 = vunpack.c.l.b16 %v1580
  %v2061 = vunpack.c.l.b16 %v1581
  %v2062 = vunpack.c.l.b16 %v1582
  %v2063 = vunpack.c.l.b16 %v1583
  %v2064 = vunpack.c.l.b16 %v1584
  %v2065 = vunpack.c.l.b16 %v1585
  %v2066 = vunpack.c.l.b16 %v1586
  %v2067 = vunpack.c.l.b16 %v1587
  %v2068 = vunpack.c.l.b16 %v1588
  %v2069 = vunpack.c.l.b16 %v1589
  %v2070 = vunpack.c.l.b16 %v1590
  %v2071 = vunpack.c.l.b16 %v1591
  %v2072 = vunpack.c.l.b16 %v1592
  %v2073 = vunpack.c.l.b16 %v1593
  %v2074 = vunpack.c.l.b16 %v1594
  %v2075 = vunpack.c.l.b16 %v1595
  %v2076 = vunpack.c.l.b16 %v1596
  %v2077 = vunpack.c.l.b16 %v1597
  %v2078 = vunpack.c.l.b16 %v1598
  %v2079 = vunpack.c.l.b16 %v1599
  %v2080 = vunpack.c.l.b16 %v1600
  %v2081 = vunpack.c.l.b16 %v1601
  %v2082 = vunpack.c.l.b16 %v1602
  %v2083 = vunpack.c.l.b16 %v1603
  %v2084 = vunpack.c.l.b16 %v1604
  %v2085 = vunpack.c.l.b16 %v1605
  %v2086 = vunpack.c.l.b16 %v1606
  %v2087 = vunpack.c.l.b16 %v1607
  %v2088 = vunpack.c.l.b16 %v1608
  %v2089 = vunpack.c.l.b16 %v1609
  %v2090 = vunpack.c.l.b16 %v1610
  %v2091 = vunpack.c.l.b16 %v1611
  %v2092 = vunpack.c.l.b16 %v1612
  %v2093 = vunpack.c.l.b16 %v1613
  %v2094 = vunpack.c.l.b16 %v1614
  %v2095 = vunpack.c.l.b16 %v1615
  %v2096 = vunpack.c.l.b16 %v1616
  %v2097 = vunpack.c.l.b16 %v1617
  %v2098 = vunpack.c.l.b16 %v1618
  %v2099 = vunpack.c.l.b16 %v1619
  %v2100 = vunpack.c.l.b16 %v1620
  %v2101 = vunpack.c.l.b16 %v1621
  %v2102 = vunpack.c.l.b16 %v1622
  %v2103 = vunpack.c.l.b16 %v1623
  %v2104 = vunpack.c.l.b16 %v1624
  %v2105 = vunpack.c.l.b16 %v1625
  %v2106 = vunpack.c.l.b16 %v1626
  %v2107 = vunpack.c.l.b16 %v1627
  %v2108 = vunpack.c.l.b16 %v1628
  %v2109 = vunpack.c.l.b16 %v1629
  %v2110 = vunpack.c.l.b16 %v1630
  %v2111 = vunpack.c.l.b16 %v1631
  %v2112 = vunpack.c.l.b16 %v1632
  %v2113 = vunpack.c.l.b16 %v1633
  %v2114 = vunpack.c.l.b16 %v1634
  %v2115 = vunpack.c.l.b16 %v1635
  %v2116 = vunpack.c.l.b16 %v1636
  %v2117 = vunpack.c.l.b16 %v1637
  %v2118 = vunpack.c.l.b16 %v1638
  %v2119 = vunpack.c.l.b16 %v1639
  %v2120 = vunpack.c.l.b16 %v1640
  %v2121 = vunpack.c.l.b16 %v1641
  %v2122 = vunpack.c.l.b16 %v1642
  %v2123 = vunpack.c.l.b16 %v1643
  %v2124 = vunpack.c.l.b16 %v1644
  %v2125 = vunpack.c.l.b16 %v1645
  %v2126 = vunpack.c.l.b16 %v1646
  %v2127 = vunpack.c.l.b16 %v1647
  %v2128 = vunpack.c.l.b16 %v1648
  %v2129 = vunpack.c.l.b16 %v1649
  %v2130 = vunpack.c.l.b16 %v1650
  %v2131 = vunpack.c.l.b16 %v1651
  %v2132 = vunpack.c.l.b16 %v1652
  %v2133 = vunpack.c.l.b16 %v1653
  %v2134 = vunpack.c.l.b16 %v1654
  %v2135 = vunpack.c.l.b16 %v1655
  %v2136 = vunpack.c.l.b16 %v1656
  %v2137 = vunpack.c.l.b16 %v1657
  %v2138 = vunpack.c.l.b16 %v1658
  %v2139 = vunpack.c.l.b16 %v1659
  %v2140 = vunpack.c.l.b16 %v1660
  %v2141 = vunpack.c.l.b16 %v1661
  %v2142 = vunpack.c.l.b16 %v1662
  %v2143 = vunpack.c.l.b16 %v1663
  %v2144 = vunpack.c.l.b16 %v1664
  %v2145 = vunpack.c.l.b16 %v1665
  %v2146 = vunpack.c.l.b16 %v1666
  %v2147 = vunpack.c.l.b16 %v1667
  %v2148 = vunpack.c.l.b16 %v1668
  %v2149 = vunpack.c.l.b16 %v1669
  %v2150 = vunpack.c.l.b16 %v1670
  %v2151 = vunpack.c.l.b16 %v1671
  %v2152 = vunpack.c.l.b16 %v1672
  %v2153 = vunpack.c.l.b16 %v1673
  %v2154 = vunpack.c.l.b16 %v1674
  %v2155 = vunpack.c.l.b16 %v1675
  %v2156 = vunpack.c.l.b16 %v1676
  %v2157 = vunpack.c.l.b16 %v1677
  %v2158 = vunpack.c.l.b16 %v1678
  %v2159 = vunpack.c.l.b16 %v1679
  %v2160 = vunpack.c.l.b16 %v1680
  %v2161 = vunpack.c.l.b16 %v1681
  %v2162 = vunpack.c.l.b16 %v1682
  %v2163 = vunpack.c.l.b16 %v1683
  %v2164 = vunpack.c.l.b16 %v1684
  %v2165 = vunpack.c.l.b16 %v1685
  %v2166 = vunpack.c.l.b16 %v1686
  %v2167 = vunpack.c.l.b16 %v1687
  %v2168 = vunpack.c.l.b16 %v1688
  %v2169 = vunpack.c.l.b16 %v1689
  %v2170 = vunpack.c.l.b16 %v1690
  %v2171 = vunpack.c.l.b16 %v1691
  %v2172 = vunpack.c.l.b16 %v1692
  %v2173 = vunpack.c.l.b16 %v1693
  %v2174 = vunpack.c.l.b16 %v1694
  %v2175 = vunpack.c.l.b16 %v1695
  %v2176 = vunpack.c.l.b16 %v1696
  %v2177 = vunpack.c.l.b16 %v1697
  %v2178 = vunpack.c.l.b16 %v1698
  %v2179 = vunpack.c.l.b16 %v1699
  %v2180 = vunpack.c.l.b16 %v1700
  %v2181 = vunpack.c.l.b16 %v1701
  %v2182 = vunpack.c.l.b16 %v1702
  %v2183 = vunpack.c.l.b16 %v1703
  %v2184 = vunpack.c.l.b16 %v1704
  %v2185 = vunpack.c.l.b16 %v1705
  %v2186 = vunpack.c.l.b16 %v1706
  %v2187 = vunpack.c.l.b16 %v1707
  %v2188 = vunpack.c.l.b16 %v1708
  %v2189 = vunpack.c.l.b16 %v1709
  %v2190 = vunpack.c.l.b16 %v1710
  %v2191 = vunpack.c.l.b16 %v1711
  %v2192 = vunpack.c.l.b16 %v1712
  %v2193 = vunpack.c.l.b16 %v1713
  %v2194 = vunpack.c.l.b16 %v1714
  %v2195 = vunpack.c.l.b16 %v1715
  %v2196 = vunpack.c.l.b16 %v1716
  %v2197 = vunpack.c.l.b16 %v1717
  %v2198 = vunpack.c.l.b16 %v1718
  %v2199 = vunpack.c.l.b16 %v1719
  %v2200 = vunpack.c.l.b16 %v1720
  %v2201 = vunpack.c.l.b16 %v1721
  %v2202 = vunpack.c.l.b16 %v1722
  %v2203 = vunpack.c.l.b16 %v1723
  %v2204 = vunpack.c.l.b16 %v1724
  %v2205 = vunpack.c.l.b16 %v1725
  %v2206 = vunpack.c.l.b16 %v1726
  %v2207 = vunpack.c.l.b16 %v1727
  %v2208 = vunpack.c.l.b16 %v1728
  %v2209 = vunpack.c.l.b16 %v1729
  %v2210 = vunpack.c.l.b16 %v1730
  %v2211 = vunpack.c.l.b16 %v1731
  %v2212 = vunpack.c.l.b16 %v1732
  %v2213 = vunpack.c.l.b16 %v1733
  %v2214 = vunpack.c.l.b16 %v1734
  %v2215 = vunpack.c.l.b16 %v1735
  %v2216 = vunpack.c.l.b16 %v1736
  %v2217 = vunpack.c.l.b16 %v1737
  %v2218 = vunpack.c.l.b16 %v1738
  %v2219 = vunpack.c.l.b16 %v1739
  %v2220 = vunpack.c.l.b16 %v1740
  %v2221 = vunpack.c.l.b16 %v1741
  %v2222 = vunpack.c.l.b16 %v1742
  %v2223 = vunpack.c.l.b16 %v1743
  %v2224 = vunpack.c.l.b16 %v1744
  %v2225 = vunpack.c.l.b16 %v1745
  %v2226 = vunpack.c.l.b16 %v1746
  %v2227 = vunpack.c.l.b16 %v1747
  %v2228 = vunpack.c.l.b16 %v1748
  %v2229 = vunpack.c.l.b16 %v1749
  %v2230 = vunpack.c.l.b16 %v1750
  %v2231 = vunpack.c.l.b16 %v1751
  %v2232 = vpack.c.b16 %v1993, %v1992
  %v2233 = vpack.c.b16 %v1995, %v1994
  %v2234 = vpack.c.b16 %v1997, %v1996
  %v2235 = vpack.c.b16 %v1999, %v1998
  %v2236 = vpack.c.b16 %v2001, %v2000
  %v2237 = vpack.c.b16 %v2003, %v2002
  %v2238 = vpack.c.b16 %v2005, %v2004
  %v2239 = vpack.c.b16 %v2007, %v2006
  %v2240 = vpack.c.b16 %v2009, %v2008
  %v2241 = vpack.c.b16 %v2011, %v2010
  %v2242 = vpack.c.b16 %v2013, %v2012
  %v2243 = vpack.c.b16 %v2015, %v2014
  %v2244 = vpack.c.b16 %v2017, %v2016
  %v2245 = vpack.c.b16 %v2019, %v2018
  %v2246 = vpack.c.b16 %v2021, %v2020
  %v2247 = vpack.c.b16 %v2023, %v2022
  %v2248 = vpack.c.b16 %v2025, %v2024
  %v2249 = vpack.c.b16 %v2027, %v2026
  %v2250 = vpack.c.b16 %v2029, %v2028
  %v2251 = vpack.c.b16 %v2031, %v2030
  %v2252 = vpack.c.b16 %v2033, %v2032
  %v2253 = vpack.c.b16 %v2035, %v2034
  %v2254 = vpack.c.b16 %v2037, %v2036
  %v2255 = vpack.c.b16 %v2039, %v2038
  %v2256 = vpack.c.b16 %v2041, %v2040
  %v2257 = vpack.c.b16 %v2043, %v2042
  %v2258 = vpack.c.b16 %v2045, %v2044
  %v2259 = vpack.c.b16 %v2047, %v2046
  %v2260 = vpack.c.b16 %v2049, %v2048
  %v2261 = vpack.c.b16 %v2051, %v2050
  %v2262 = vpack.c.b16 %v2053, %v2052
  %v2263 = vpack.c.b16 %v2055, %v2054
  %v2264 = vpack.c.b16 %v2057, %v2056
  %v2265 = vpack.c.b16 %v2059, %v2058
  %v2266 = vpack.c.b16 %v2061, %v2060
  %v2267 = vpack.c.b16 %v2063, %v2062
  %v2268 = vpack.c.b16 %v2065, %v2064
  %v2269 = vpack.c.b16 %v2067, %v2066
  %v2270 = vpack.c.b16 %v2069, %v2068
  %v2271 = vpack.c.b16 %v2071, %v2070
  %v2272 = vpack.c.b16 %v2073, %v2072
  %v2273 = vpack.c.b16 %v2075, %v2074
  %v2274 = vpack.c.b16 %v2077, %v2076
  %v2275 = vpack.c.b16 %v2079, %v2078
  %v2276 = vpack.c.b16 %v2081, %v2080
  %v2277 = vpack.c.b16 %v2083, %v2082
  %v2278 = vpack.c.b16 %v2085, %v2084
  %v2279 = vpack.c.b16 %v2087, %v2086
  %v2280 = vpack.c.b16 %v2089, %v2088
  %v2281 = vpack.c.b16 %v2091, %v2090
  %v2282 = vpack.c.b16 %v2093, %v2092
  %v2283 = vpack.c.b16 %v2095, %v2094
  %v2284 = vpack.c.b16 %v2097, %v2096
  %v2285 = vpack.c.b16 %v2099, %v2098
  %v2286 = vpack.c.b16 %v2101, %v2100
  %v2287 = vpack.c.b16 %v2103, %v2102
  %v2288 = vpack.c.b16 %v2105, %v2104
  %v2289 = vpack.c.b16 %v2107, %v2106
  %v2290 = vpack.c.b16 %v2109, %v2108
  %v2291 = vpack.c.b16 %v2111, %v2110
  %v2292 = vpack.c.b16 %v2113, %v2112
  %v2293 = vpack.c.b16 %v2115, %v2114
  %v2294 = vpack.c.b16 %v2117, %v2116
  %v2295 = vpack.c.b16 %v2119, %v2118
  %v2296 = vpack.c.b16 %v2121, %v2120
  %v2297 = vpack.c.b16 %v2123, %v2122
  %v2298 = vpack.c.b16 %v2125, %v2124
  %v2299 = vpack.c.b16 %v2127, %v2126
  %v2300 = vpack.c.b16 %v2129, %v2128
  %v2301 = vpack.c.b16 %v2131, %v2130
  %v2302 = vpack.c.b16 %v2133, %v2132
  %v2303 = vpack.c.b16 %v2135, %v2134
  %v2304 = vpack.c.b16 %v2137, %v2136
  %v2305 = vpack.c.b16 %v2139, %v2138
  %v2306 = vpack.c.b16 %v2141, %v2140
  %v2307 = vpack.c.b16 %v2143, %v2142
  %v2308 = vpack.c.b16 %v2145, %v2144
  %v2309 = vpack.c.b16 %v2147, %v2146
  %v2310 = vpack.c.b16 %v2149, %v2148
  %v2311 = vpack.c.b16 %v2151, %v2150
  %v2312 = vpack.c.b16 %v2153, %v2152
  %v2313 = vpack.c.b16 %v2155, %v2154
  %v2314 = vpack.c.b16 %v2157, %v2156
  %v2315 = vpack.c.b16 %v2159, %v2158
  %v2316 = vpack.c.b16 %v2161, %v2160
  %v2317 = vpack.c.b16 %v2163, %v2162
  %v2318 = vpack.c.b16 %v2165, %v2164
  %v2319 = vpack.c.b16 %v2167, %v2166
  %v2320 = vpack.c.b16 %v2169, %v2168
  %v2321 = vpack.c.b16 %v2171, %v2170
  %v2322 = vpack.c.b16 %v2173, %v2172
  %v2323 = vpack.c.b16 %v2175, %v2174
  %v2324 = vpack.c.b16 %v2177, %v2176
  %v2325 = vpack.c.b16 %v2179, %v2178
  %v2326 = vpack.c.b16 %v2181, %v2180
  %v2327 = vpack.c.b16 %v2183, %v2182
  %v2328 = vpack.c.b16 %v2185, %v2184
  %v2329 = vpack.c.b16 %v2187, %v2186
  %v2330 = vpack.c.b16 %v2189, %v2188
  %v2331 = vpack.c.b16 %v2191, %v2190
  %v2332 = vpack.c.b16 %v2193, %v2192
  %v2333 = vpack.c.b16 %v2195, %v2194
  %v2334 = vpack.c.b16 %v2197, %v2196
  %v2335 = vpack.c.b16 %v2199, %v2198
  %v2336 = vpack.c.b16 %v2201, %v2200
  %v2337 = vpack.c.b16 %v2203, %v2202
  %v2338 = vpack.c.b16 %v2205, %v2204
  %v2339 = vpack.c.b16 %v2207, %v2206
  %v2340 = vpack.c.b16 %v2209, %v2208
  %v2341 = vpack.c.b16 %v2211, %v2210
  %v2342 = vpack.c.b16 %v2213, %v2212
  %v2343 = vpack.c.b16 %v2215, %v2214
  %v2344 = vpack.c.b16 %v2217, %v2216
  %v2345 = vpack.c.b16 %v2219, %v2218
  %v2346 = vpack.c.b16 %v2221, %v2220
  %v2347 = vpack.c.b16 %v2223, %v2222
  %v2348 = vpack.c.b16 %v2225, %v2224
  %v2349 = vpack.c.b16 %v2227, %v2226
  %v2350 = vpack.c.b16 %v2229, %v2228
  %v2351 = vpack.c.b16 %v2231, %v2230
  %2472 = vmatprep.subr.bf16.mxu0 0
  %2473 = vmatpush1.bf16.msra.mxu0 %v2239
  %2474 = vmatprep.subr.bf16.mxu0 0
  %2475 = vmatpush1.bf16.msra.mxu0 %v2238
  %2476 = vmatprep.subr.bf16.mxu0 0
  %2477 = vmatpush1.bf16.msra.mxu0 %v2237
  %2478 = vmatprep.subr.bf16.mxu0 0
  %2479 = vmatpush1.bf16.msra.mxu0 %v2236
  %2480 = vmatprep.subr.bf16.mxu0 0
  %2481 = vmatpush1.bf16.msra.mxu0 %v2235
  %2482 = vmatprep.subr.bf16.mxu0 0
  %2483 = vmatpush1.bf16.msra.mxu0 %v2234
  %2484 = vmatprep.subr.bf16.mxu0 0
  %2485 = vmatpush1.bf16.msra.mxu0 %v2233
  %2486 = vmatprep.subr.bf16.mxu0 0
  %2487 = vmatpush1.bf16.msra.mxu0 %v2232
  %2488 = vmatprep.subr.bf16.mxu0 0
  %2489 = vmatpush2.bf16.msra.mxu0 %v2247
  %2490 = vmatprep.subr.bf16.mxu0 0
  %2491 = vmatpush2.bf16.msra.mxu0 %v2246
  %2492 = vmatprep.subr.bf16.mxu0 0
  %2493 = vmatpush2.bf16.msra.mxu0 %v2245
  %2494 = vmatprep.subr.bf16.mxu0 0
  %2495 = vmatpush2.bf16.msra.mxu0 %v2244
  %2496 = vmatprep.subr.bf16.mxu0 0
  %2497 = vmatpush2.bf16.msra.mxu0 %v2243
  %2498 = vmatprep.subr.bf16.mxu0 0
  %2499 = vmatpush2.bf16.msra.mxu0 %v2242
  %2500 = vmatprep.subr.bf16.mxu0 0
  %2501 = vmatpush2.bf16.msra.mxu0 %v2241
  %2502 = vmatprep.subr.bf16.mxu0 0
  %2503 = vmatpush2.bf16.msra.mxu0 %v2240
  %2504 = vmatprep.mubr.bf16.mxu0 %v1495
  %2505 = vmatmul.mubr.bf16.gmra.mxu0 %v1494
  %v2506 = vpop.f32.mrf.mxu0
  %v2507 = vadd.f32 0.0, %v2506
  %v2508 = vpop.f32.mrf.mxu0
  %v2509 = vpop.f32.mrf.mxu0
  %v2510 = vadd.f32 0.0, %v2509
  %v2511 = vpop.f32.mrf.mxu0
  %2512 = vmatprep.mubr.bf16.mxu0 %v1498
  %2513 = vmatmul.mubr.bf16.gmra.mxu0 %v1497
  %v2514 = vpop.f32.mrf.mxu0
  %v2515 = vadd.f32 0.0, %v2514
  %v2516 = vpop.f32.mrf.mxu0
  %v2517 = vpop.f32.mrf.mxu0
  %v2518 = vadd.f32 0.0, %v2517
  %v2519 = vpop.f32.mrf.mxu0
  %2520 = vdwg.mxu0
  %2521 = vmatprep.subr.bf16.mxu0 0
  %2522 = vmatpush1.bf16.msra.mxu0 %v2255
  %2523 = vmatprep.subr.bf16.mxu0 0
  %2524 = vmatpush1.bf16.msra.mxu0 %v2254
  %2525 = vmatprep.subr.bf16.mxu0 0
  %2526 = vmatpush1.bf16.msra.mxu0 %v2253
  %2527 = vmatprep.subr.bf16.mxu0 0
  %2528 = vmatpush1.bf16.msra.mxu0 %v2252
  %2529 = vmatprep.subr.bf16.mxu0 0
  %2530 = vmatpush1.bf16.msra.mxu0 %v2251
  %2531 = vmatprep.subr.bf16.mxu0 0
  %2532 = vmatpush1.bf16.msra.mxu0 %v2250
  %2533 = vmatprep.subr.bf16.mxu0 0
  %2534 = vmatpush1.bf16.msra.mxu0 %v2249
  %2535 = vmatprep.subr.bf16.mxu0 0
  %2536 = vmatpush1.bf16.msra.mxu0 %v2248
  %2537 = vmatprep.subr.bf16.mxu0 0
  %2538 = vmatpush2.bf16.msra.mxu0 %v2263
  %2539 = vmatprep.subr.bf16.mxu0 0
  %2540 = vmatpush2.bf16.msra.mxu0 %v2262
  %2541 = vmatprep.subr.bf16.mxu0 0
  %2542 = vmatpush2.bf16.msra.mxu0 %v2261
  %2543 = vmatprep.subr.bf16.mxu0 0
  %2544 = vmatpush2.bf16.msra.mxu0 %v2260
  %2545 = vmatprep.subr.bf16.mxu0 0
  %2546 = vmatpush2.bf16.msra.mxu0 %v2259
  %2547 = vmatprep.subr.bf16.mxu0 0
  %2548 = vmatpush2.bf16.msra.mxu0 %v2258
  %2549 = vmatprep.subr.bf16.mxu0 0
  %2550 = vmatpush2.bf16.msra.mxu0 %v2257
  %2551 = vmatprep.subr.bf16.mxu0 0
  %2552 = vmatpush2.bf16.msra.mxu0 %v2256
  %2553 = vmatprep.mubr.bf16.mxu0 %v1497
  %2554 = vmatmul.mubr.bf16.gmra.mxu0 %v1496
  %v2555 = vpop.f32.mrf.mxu0
  %v2556 = vadd.f32 %v2507, %v2555
  %v2557 = vpop.f32.mrf.mxu0
  %v2558 = vpop.f32.mrf.mxu0
  %v2559 = vadd.f32 %v2510, %v2558
  %v2560 = vpop.f32.mrf.mxu0
  %2561 = vmatprep.mubr.bf16.mxu0 %v1500
  %2562 = vmatmul.mubr.bf16.gmra.mxu0 %v1499
  %v2563 = vpop.f32.mrf.mxu0
  %v2564 = vadd.f32 %v2515, %v2563
  %v2565 = vpop.f32.mrf.mxu0
  %v2566 = vpop.f32.mrf.mxu0
  %v2567 = vadd.f32 %v2518, %v2566
  %v2568 = vpop.f32.mrf.mxu0
  %2569 = vdwg.mxu0
  %2570 = vmatprep.subr.bf16.mxu0 0
  %2571 = vmatpush1.bf16.msra.mxu0 %v2271
  %2572 = vmatprep.subr.bf16.mxu0 0
  %2573 = vmatpush1.bf16.msra.mxu0 %v2270
  %2574 = vmatprep.subr.bf16.mxu0 0
  %2575 = vmatpush1.bf16.msra.mxu0 %v2269
  %2576 = vmatprep.subr.bf16.mxu0 0
  %2577 = vmatpush1.bf16.msra.mxu0 %v2268
  %2578 = vmatprep.subr.bf16.mxu0 0
  %2579 = vmatpush1.bf16.msra.mxu0 %v2267
  %2580 = vmatprep.subr.bf16.mxu0 0
  %2581 = vmatpush1.bf16.msra.mxu0 %v2266
  %2582 = vmatprep.subr.bf16.mxu0 0
  %2583 = vmatpush1.bf16.msra.mxu0 %v2265
  %2584 = vmatprep.subr.bf16.mxu0 0
  %2585 = vmatpush1.bf16.msra.mxu0 %v2264
  %2586 = vmatprep.subr.bf16.mxu0 0
  %2587 = vmatpush2.bf16.msra.mxu0 %v2279
  %2588 = vmatprep.subr.bf16.mxu0 0
  %2589 = vmatpush2.bf16.msra.mxu0 %v2278
  %2590 = vmatprep.subr.bf16.mxu0 0
  %2591 = vmatpush2.bf16.msra.mxu0 %v2277
  %2592 = vmatprep.subr.bf16.mxu0 0
  %2593 = vmatpush2.bf16.msra.mxu0 %v2276
  %2594 = vmatprep.subr.bf16.mxu0 0
  %2595 = vmatpush2.bf16.msra.mxu0 %v2275
  %2596 = vmatprep.subr.bf16.mxu0 0
  %2597 = vmatpush2.bf16.msra.mxu0 %v2274
  %2598 = vmatprep.subr.bf16.mxu0 0
  %2599 = vmatpush2.bf16.msra.mxu0 %v2273
  %2600 = vmatprep.subr.bf16.mxu0 0
  %2601 = vmatpush2.bf16.msra.mxu0 %v2272
  %2602 = vmatprep.mubr.bf16.mxu0 %v1499
  %2603 = vmatmul.mubr.bf16.gmra.mxu0 %v1498
  %v2604 = vpop.f32.mrf.mxu0
  %v2605 = vadd.f32 %v2556, %v2604
  %v2606 = vpop.f32.mrf.mxu0
  %v2607 = vpop.f32.mrf.mxu0
  %v2608 = vadd.f32 %v2559, %v2607
  %v2609 = vpop.f32.mrf.mxu0
  %2610 = vmatprep.mubr.bf16.mxu0 %v1502
  %2611 = vmatmul.mubr.bf16.gmra.mxu0 %v1501
  %v2612 = vpop.f32.mrf.mxu0
  %v2613 = vadd.f32 %v2564, %v2612
  %v2614 = vpop.f32.mrf.mxu0
  %v2615 = vpop.f32.mrf.mxu0
  %v2616 = vadd.f32 %v2567, %v2615
  %v2617 = vpop.f32.mrf.mxu0
  %2618 = vdwg.mxu0
  %2619 = vmatprep.subr.bf16.mxu0 0
  %2620 = vmatpush1.bf16.msra.mxu0 %v2287
  %2621 = vmatprep.subr.bf16.mxu0 0
  %2622 = vmatpush1.bf16.msra.mxu0 %v2286
  %2623 = vmatprep.subr.bf16.mxu0 0
  %2624 = vmatpush1.bf16.msra.mxu0 %v2285
  %2625 = vmatprep.subr.bf16.mxu0 0
  %2626 = vmatpush1.bf16.msra.mxu0 %v2284
  %2627 = vmatprep.subr.bf16.mxu0 0
  %2628 = vmatpush1.bf16.msra.mxu0 %v2283
  %2629 = vmatprep.subr.bf16.mxu0 0
  %2630 = vmatpush1.bf16.msra.mxu0 %v2282
  %2631 = vmatprep.subr.bf16.mxu0 0
  %2632 = vmatpush1.bf16.msra.mxu0 %v2281
  %2633 = vmatprep.subr.bf16.mxu0 0
  %2634 = vmatpush1.bf16.msra.mxu0 %v2280
  %2635 = vmatprep.subr.bf16.mxu0 0
  %2636 = vmatpush2.bf16.msra.mxu0 %v2295
  %2637 = vmatprep.subr.bf16.mxu0 0
  %2638 = vmatpush2.bf16.msra.mxu0 %v2294
  %2639 = vmatprep.subr.bf16.mxu0 0
  %2640 = vmatpush2.bf16.msra.mxu0 %v2293
  %2641 = vmatprep.subr.bf16.mxu0 0
  %2642 = vmatpush2.bf16.msra.mxu0 %v2292
  %2643 = vmatprep.subr.bf16.mxu0 0
  %2644 = vmatpush2.bf16.msra.mxu0 %v2291
  %2645 = vmatprep.subr.bf16.mxu0 0
  %2646 = vmatpush2.bf16.msra.mxu0 %v2290
  %2647 = vmatprep.subr.bf16.mxu0 0
  %2648 = vmatpush2.bf16.msra.mxu0 %v2289
  %2649 = vmatprep.subr.bf16.mxu0 0
  %2650 = vmatpush2.bf16.msra.mxu0 %v2288
  %2651 = vmatprep.mubr.bf16.mxu0 %v1501
  %2652 = vmatmul.mubr.bf16.gmra.mxu0 %v1500
  %v2653 = vpop.f32.mrf.mxu0
  %v2654 = vadd.f32 %v2605, %v2653
  %v2655 = vpop.f32.mrf.mxu0
  %v2656 = vpop.f32.mrf.mxu0
  %v2657 = vadd.f32 %v2608, %v2656
  %v2658 = vpop.f32.mrf.mxu0
  %2659 = vmatprep.mubr.bf16.mxu0 %v1504
  %2660 = vmatmul.mubr.bf16.gmra.mxu0 %v1503
  %v2661 = vpop.f32.mrf.mxu0
  %v2662 = vadd.f32 %v2613, %v2661
  %v2663 = vpop.f32.mrf.mxu0
  %v2664 = vpop.f32.mrf.mxu0
  %v2665 = vadd.f32 %v2616, %v2664
  %v2666 = vpop.f32.mrf.mxu0
  %2667 = vdwg.mxu0
  %2668 = vmatprep.subr.bf16.mxu0 0
  %2669 = vmatpush1.bf16.msra.mxu0 %v2303
  %2670 = vmatprep.subr.bf16.mxu0 0
  %2671 = vmatpush1.bf16.msra.mxu0 %v2302
  %2672 = vmatprep.subr.bf16.mxu0 0
  %2673 = vmatpush1.bf16.msra.mxu0 %v2301
  %2674 = vmatprep.subr.bf16.mxu0 0
  %2675 = vmatpush1.bf16.msra.mxu0 %v2300
  %2676 = vmatprep.subr.bf16.mxu0 0
  %2677 = vmatpush1.bf16.msra.mxu0 %v2299
  %2678 = vmatprep.subr.bf16.mxu0 0
  %2679 = vmatpush1.bf16.msra.mxu0 %v2298
  %2680 = vmatprep.subr.bf16.mxu0 0
  %2681 = vmatpush1.bf16.msra.mxu0 %v2297
  %2682 = vmatprep.subr.bf16.mxu0 0
  %2683 = vmatpush1.bf16.msra.mxu0 %v2296
  %2684 = vmatprep.subr.bf16.mxu0 0
  %2685 = vmatpush2.bf16.msra.mxu0 %v2311
  %2686 = vmatprep.subr.bf16.mxu0 0
  %2687 = vmatpush2.bf16.msra.mxu0 %v2310
  %2688 = vmatprep.subr.bf16.mxu0 0
  %2689 = vmatpush2.bf16.msra.mxu0 %v2309
  %2690 = vmatprep.subr.bf16.mxu0 0
  %2691 = vmatpush2.bf16.msra.mxu0 %v2308
  %2692 = vmatprep.subr.bf16.mxu0 0
  %2693 = vmatpush2.bf16.msra.mxu0 %v2307
  %2694 = vmatprep.subr.bf16.mxu0 0
  %2695 = vmatpush2.bf16.msra.mxu0 %v2306
  %2696 = vmatprep.subr.bf16.mxu0 0
  %2697 = vmatpush2.bf16.msra.mxu0 %v2305
  %2698 = vmatprep.subr.bf16.mxu0 0
  %2699 = vmatpush2.bf16.msra.mxu0 %v2304
  %2700 = vmatprep.mubr.bf16.mxu0 %v1503
  %2701 = vmatmul.mubr.bf16.gmra.mxu0 %v1502
  %v2702 = vpop.f32.mrf.mxu0
  %v2703 = vadd.f32 %v2654, %v2702
  %v2704 = vpop.f32.mrf.mxu0
  %v2705 = vpop.f32.mrf.mxu0
  %v2706 = vadd.f32 %v2657, %v2705
  %v2707 = vpop.f32.mrf.mxu0
  %2708 = vmatprep.mubr.bf16.mxu0 %v1506
  %2709 = vmatmul.mubr.bf16.gmra.mxu0 %v1505
  %v2710 = vpop.f32.mrf.mxu0
  %v2711 = vadd.f32 %v2662, %v2710
  %v2712 = vpop.f32.mrf.mxu0
  %v2713 = vpop.f32.mrf.mxu0
  %v2714 = vadd.f32 %v2665, %v2713
  %v2715 = vpop.f32.mrf.mxu0
  %2716 = vdwg.mxu0
  %2717 = vmatprep.subr.bf16.mxu0 0
  %2718 = vmatpush1.bf16.msra.mxu0 %v2319
  %2719 = vmatprep.subr.bf16.mxu0 0
  %2720 = vmatpush1.bf16.msra.mxu0 %v2318
  %2721 = vmatprep.subr.bf16.mxu0 0
  %2722 = vmatpush1.bf16.msra.mxu0 %v2317
  %2723 = vmatprep.subr.bf16.mxu0 0
  %2724 = vmatpush1.bf16.msra.mxu0 %v2316
  %2725 = vmatprep.subr.bf16.mxu0 0
  %2726 = vmatpush1.bf16.msra.mxu0 %v2315
  %2727 = vmatprep.subr.bf16.mxu0 0
  %2728 = vmatpush1.bf16.msra.mxu0 %v2314
  %2729 = vmatprep.subr.bf16.mxu0 0
  %2730 = vmatpush1.bf16.msra.mxu0 %v2313
  %2731 = vmatprep.subr.bf16.mxu0 0
  %2732 = vmatpush1.bf16.msra.mxu0 %v2312
  %2733 = vmatprep.subr.bf16.mxu0 0
  %2734 = vmatpush2.bf16.msra.mxu0 %v2327
  %2735 = vmatprep.subr.bf16.mxu0 0
  %2736 = vmatpush2.bf16.msra.mxu0 %v2326
  %2737 = vmatprep.subr.bf16.mxu0 0
  %2738 = vmatpush2.bf16.msra.mxu0 %v2325
  %2739 = vmatprep.subr.bf16.mxu0 0
  %2740 = vmatpush2.bf16.msra.mxu0 %v2324
  %2741 = vmatprep.subr.bf16.mxu0 0
  %2742 = vmatpush2.bf16.msra.mxu0 %v2323
  %2743 = vmatprep.subr.bf16.mxu0 0
  %2744 = vmatpush2.bf16.msra.mxu0 %v2322
  %2745 = vmatprep.subr.bf16.mxu0 0
  %2746 = vmatpush2.bf16.msra.mxu0 %v2321
  %2747 = vmatprep.subr.bf16.mxu0 0
  %2748 = vmatpush2.bf16.msra.mxu0 %v2320
  %2749 = vmatprep.mubr.bf16.mxu0 %v1505
  %2750 = vmatmul.mubr.bf16.gmra.mxu0 %v1504
  %v2751 = vpop.f32.mrf.mxu0
  %v2752 = vadd.f32 %v2703, %v2751
  %v2753 = vpop.f32.mrf.mxu0
  %v2754 = vpop.f32.mrf.mxu0
  %v2755 = vadd.f32 %v2706, %v2754
  %v2756 = vpop.f32.mrf.mxu0
  %2757 = vmatprep.mubr.bf16.mxu0 %v1508
  %2758 = vmatmul.mubr.bf16.gmra.mxu0 %v1507
  %v2759 = vpop.f32.mrf.mxu0
  %v2760 = vadd.f32 %v2711, %v2759
  %v2761 = vpop.f32.mrf.mxu0
  %v2762 = vpop.f32.mrf.mxu0
  %v2763 = vadd.f32 %v2714, %v2762
  %v2764 = vpop.f32.mrf.mxu0
  %2765 = vdwg.mxu0
  %2766 = vmatprep.subr.bf16.mxu0 0
  %2767 = vmatpush1.bf16.msra.mxu0 %v2335
  %2768 = vmatprep.subr.bf16.mxu0 0
  %2769 = vmatpush1.bf16.msra.mxu0 %v2334
  %2770 = vmatprep.subr.bf16.mxu0 0
  %2771 = vmatpush1.bf16.msra.mxu0 %v2333
  %2772 = vmatprep.subr.bf16.mxu0 0
  %2773 = vmatpush1.bf16.msra.mxu0 %v2332
  %2774 = vmatprep.subr.bf16.mxu0 0
  %2775 = vmatpush1.bf16.msra.mxu0 %v2331
  %2776 = vmatprep.subr.bf16.mxu0 0
  %2777 = vmatpush1.bf16.msra.mxu0 %v2330
  %2778 = vmatprep.subr.bf16.mxu0 0
  %2779 = vmatpush1.bf16.msra.mxu0 %v2329
  %2780 = vmatprep.subr.bf16.mxu0 0
  %2781 = vmatpush1.bf16.msra.mxu0 %v2328
  %2782 = vmatprep.subr.bf16.mxu0 0
  %2783 = vmatpush2.bf16.msra.mxu0 %v2343
  %2784 = vmatprep.subr.bf16.mxu0 0
  %2785 = vmatpush2.bf16.msra.mxu0 %v2342
  %2786 = vmatprep.subr.bf16.mxu0 0
  %2787 = vmatpush2.bf16.msra.mxu0 %v2341
  %2788 = vmatprep.subr.bf16.mxu0 0
  %2789 = vmatpush2.bf16.msra.mxu0 %v2340
  %2790 = vmatprep.subr.bf16.mxu0 0
  %2791 = vmatpush2.bf16.msra.mxu0 %v2339
  %2792 = vmatprep.subr.bf16.mxu0 0
  %2793 = vmatpush2.bf16.msra.mxu0 %v2338
  %2794 = vmatprep.subr.bf16.mxu0 0
  %2795 = vmatpush2.bf16.msra.mxu0 %v2337
  %2796 = vmatprep.subr.bf16.mxu0 0
  %2797 = vmatpush2.bf16.msra.mxu0 %v2336
  %2798 = vmatprep.mubr.bf16.mxu0 %v1507
  %2799 = vmatmul.mubr.bf16.gmra.mxu0 %v1506
  %v2800 = vpop.f32.mrf.mxu0
  %v2801 = vadd.f32 %v2752, %v2800
  %v2802 = vpop.f32.mrf.mxu0
  %v2803 = vpop.f32.mrf.mxu0
  %v2804 = vadd.f32 %v2755, %v2803
  %v2805 = vpop.f32.mrf.mxu0
  %2806 = vmatprep.mubr.bf16.mxu0 %v1510
  %2807 = vmatmul.mubr.bf16.gmra.mxu0 %v1509
  %v2808 = vpop.f32.mrf.mxu0
  %v2809 = vadd.f32 %v2760, %v2808
  %v2810 = vpop.f32.mrf.mxu0
  %v2811 = vpop.f32.mrf.mxu0
  %v2812 = vadd.f32 %v2763, %v2811
  %v2813 = vpop.f32.mrf.mxu0
  %2814 = vdwg.mxu0
  %2815 = vmatprep.subr.bf16.mxu0 0
  %2816 = vmatpush1.bf16.msra.mxu0 %v2351
  %2817 = vmatprep.subr.bf16.mxu0 0
  %2818 = vmatpush1.bf16.msra.mxu0 %v2350
  %2819 = vmatprep.subr.bf16.mxu0 0
  %2820 = vmatpush1.bf16.msra.mxu0 %v2349
  %2821 = vmatprep.subr.bf16.mxu0 0
  %2822 = vmatpush1.bf16.msra.mxu0 %v2348
  %2823 = vmatprep.subr.bf16.mxu0 0
  %2824 = vmatpush1.bf16.msra.mxu0 %v2347
  %2825 = vmatprep.subr.bf16.mxu0 0
  %2826 = vmatpush1.bf16.msra.mxu0 %v2346
  %2827 = vmatprep.subr.bf16.mxu0 0
  %2828 = vmatpush1.bf16.msra.mxu0 %v2345
  %2829 = vmatprep.subr.bf16.mxu0 0
  %2830 = vmatpush1.bf16.msra.mxu0 %v2344
  %2831 = vmatprep.subr.bf16.mxu0 0
  %2832 = vmatpush2.bf16.msra.mxu0 0
  %2833 = vmatprep.subr.bf16.mxu0 0
  %2834 = vmatpush2.bf16.msra.mxu0 0
  %2835 = vmatprep.subr.bf16.mxu0 0
  %2836 = vmatpush2.bf16.msra.mxu0 0
  %2837 = vmatprep.subr.bf16.mxu0 0
  %2838 = vmatpush2.bf16.msra.mxu0 0
  %2839 = vmatprep.subr.bf16.mxu0 0
  %2840 = vmatpush2.bf16.msra.mxu0 0
  %2841 = vmatprep.subr.bf16.mxu0 0
  %2842 = vmatpush2.bf16.msra.mxu0 0
  %2843 = vmatprep.subr.bf16.mxu0 0
  %2844 = vmatpush2.bf16.msra.mxu0 0
  %2845 = vmatprep.subr.bf16.mxu0 0
  %2846 = vmatpush2.bf16.msra.mxu0 0
  %2847 = vmatprep.mubr.bf16.mxu0 0
  %2848 = vmatmul.mubr.bf16.gmra.mxu0 %v1508
  %v2849 = vpop.f32.mrf.mxu0
  %v2850 = vadd.f32 %v2801, %v2849
  %v2851 = vpop.f32.mrf.mxu0
  %v2852 = vpop.f32.mrf.mxu0
  %v2853 = vadd.f32 %v2804, %v2852
  %v2854 = vpop.f32.mrf.mxu0
  %2855 = vmatprep.mubr.bf16.mxu0 0
  %2856 = vmatmul.mubr.bf16.gmra.mxu0 %v1511
  %v2857 = vpop.f32.mrf.mxu0
  %v2858 = vadd.f32 %v2809, %v2857
  %v2859 = vpop.f32.mrf.mxu0
  %v2860 = vpop.f32.mrf.mxu0
  %v2861 = vadd.f32 %v2812, %v2860
  %v2862 = vpop.f32.mrf.mxu0
  %2863 = vdwg.mxu0
  %2866 = vrot.lane.b32.xlu0 %v2850, 96
  %v2867 = vpop.permute.xlu0 %2866
  %2868 = vrot.lane.b32.xlu0 %v2853, 96
  %v2869 = vpop.permute.xlu0 %2868
  %v2872 = vmax.f32 %v2850, %v2867
  %v2873 = vmax.f32 %v2853, %v2869
  %2876 = vrot.lane.b32.xlu0 %v2858, 96
  %v2877 = vpop.permute.xlu0 %2876
  %2878 = vrot.lane.b32.xlu0 %v2861, 96
  %v2879 = vpop.permute.xlu0 %2878
  %v2882 = vmax.f32 %v2858, %v2877
  %v2883 = vmax.f32 %v2861, %v2879
  %v2884 = vmax.f32 %v2872, %v2882
  %v2885 = vmax.f32 %v2873, %v2883
  %v2886 = vld [vmem:[%s6] sm:$0x1]
  %v2888 = vlaneseq
  %v2889 = vshrl.u32 %v2888, 7
  %v2890 = vsub.s32 0, %v2889
  %v2891 = vrot.slane %v2886, %v2890
  %v2893 = vadd.f32 %v2884, %v2891
  %v2894 = vadd.f32 %v2885, %v2891
  %v2895 = vmul.f32 %v2893, 0.01
  %v2896 = vmul.f32 %v2894, 0.01
  %v2897 = vmax.f32 %v2893, %v2895
  %v2898 = vmax.f32 %v2894, %v2896
  %v2899 = vpack.c.bf16 %v2898, %v2897
  %v2900 = vld [vmem:[%s7] sm:$0xff]
  %v2901 = vld [vmem:[%s7 + $0x8] sm:$0xff]
  %v2902 = vld [vmem:[%s7 + $0x10] sm:$0xff]
  %v2903 = vld [vmem:[%s7 + $0x18] sm:$0xff]
  %v2904 = vld [vmem:[%s7 + $0x20] sm:$0xff]
  %v2905 = vld [vmem:[%s7 + $0x28] sm:$0xff]
  %v2906 = vld [vmem:[%s7 + $0x30] sm:$0xff]
  %v2907 = vld [vmem:[%s7 + $0x38] sm:$0xff]
  %v2908 = vld [vmem:[%s7 + $0x40] sm:$0xff]
  %v2909 = vld [vmem:[%s7 + $0x48] sm:$0xff]
  %v2910 = vld [vmem:[%s7 + $0x50] sm:$0xff]
  %v2911 = vld [vmem:[%s7 + $0x58] sm:$0xff]
  %v2912 = vld [vmem:[%s7 + $0x60] sm:$0xff]
  %v2913 = vld [vmem:[%s7 + $0x68] sm:$0xff]
  %v2914 = vld [vmem:[%s7 + $0x70] sm:$0xff]
  %v2915 = vld [vmem:[%s7 + $0x78] sm:$0xff]
  %v2916 = vld [vmem:[%s8] sm:$0xff]
  %v2918 = vlaneseq
  %v2919 = vshrl.u32 %v2918, 7
  %v2920 = vsub.s32 0, %v2919
  %v2921 = vrot.slane %v2916, %v2920
  %v2922 = vlaneseq
  %v2923 = vshrl.u32 %v2922, 7
  %v2924 = vsub.s32 1, %v2923
  %v2925 = vrot.slane %v2916, %v2924
  %v2926 = vlaneseq
  %v2927 = vshrl.u32 %v2926, 7
  %v2928 = vsub.s32 2, %v2927
  %v2929 = vrot.slane %v2916, %v2928
  %v2930 = vlaneseq
  %v2931 = vshrl.u32 %v2930, 7
  %v2932 = vsub.s32 3, %v2931
  %v2933 = vrot.slane %v2916, %v2932
  %v2934 = vlaneseq
  %v2935 = vshrl.u32 %v2934, 7
  %v2936 = vsub.s32 4, %v2935
  %v2937 = vrot.slane %v2916, %v2936
  %v2938 = vlaneseq
  %v2939 = vshrl.u32 %v2938, 7
  %v2940 = vsub.s32 5, %v2939
  %v2941 = vrot.slane %v2916, %v2940
  %v2942 = vlaneseq
  %v2943 = vshrl.u32 %v2942, 7
  %v2944 = vsub.s32 6, %v2943
  %v2945 = vrot.slane %v2916, %v2944
  %v2946 = vlaneseq
  %v2947 = vshrl.u32 %v2946, 7
  %v2948 = vsub.s32 7, %v2947
  %v2949 = vrot.slane %v2916, %v2948
  %v2974 = vunpack.c.l.b16 %v2900
  %v2975 = vunpack.c.h.b16 %v2900
  %v2976 = vunpack.c.l.b16 %v2901
  %v2977 = vunpack.c.h.b16 %v2901
  %v2978 = vunpack.c.l.b16 %v2902
  %v2979 = vunpack.c.h.b16 %v2902
  %v2980 = vunpack.c.l.b16 %v2903
  %v2981 = vunpack.c.h.b16 %v2903
  %v2982 = vunpack.c.l.b16 %v2904
  %v2983 = vunpack.c.h.b16 %v2904
  %v2984 = vunpack.c.l.b16 %v2905
  %v2985 = vunpack.c.h.b16 %v2905
  %v2986 = vunpack.c.l.b16 %v2906
  %v2987 = vunpack.c.h.b16 %v2906
  %v2988 = vunpack.c.l.b16 %v2907
  %v2989 = vunpack.c.h.b16 %v2907
  %v2990 = vunpack.c.l.b16 %v2908
  %v2991 = vunpack.c.h.b16 %v2908
  %v2992 = vunpack.c.l.b16 %v2909
  %v2993 = vunpack.c.h.b16 %v2909
  %v2994 = vunpack.c.l.b16 %v2910
  %v2995 = vunpack.c.h.b16 %v2910
  %v2996 = vunpack.c.l.b16 %v2911
  %v2997 = vunpack.c.h.b16 %v2911
  %v2998 = vunpack.c.l.b16 %v2912
  %v2999 = vunpack.c.h.b16 %v2912
  %v3000 = vunpack.c.l.b16 %v2913
  %v3001 = vunpack.c.h.b16 %v2913
  %v3002 = vunpack.c.l.b16 %v2914
  %v3003 = vunpack.c.h.b16 %v2914
  %v3004 = vunpack.c.l.b16 %v2915
  %v3005 = vunpack.c.h.b16 %v2915
  %v3006 = vpack.c.b16 %v2982, %v2974
  %v3007 = vpack.c.b16 %v2983, %v2975
  %v3008 = vpack.c.b16 %v2984, %v2976
  %v3009 = vpack.c.b16 %v2985, %v2977
  %v3010 = vpack.c.b16 %v2986, %v2978
  %v3011 = vpack.c.b16 %v2987, %v2979
  %v3012 = vpack.c.b16 %v2988, %v2980
  %v3013 = vpack.c.b16 %v2989, %v2981
  %v3014 = vpack.c.b16 %v2998, %v2990
  %v3015 = vpack.c.b16 %v2999, %v2991
  %v3016 = vpack.c.b16 %v3000, %v2992
  %v3017 = vpack.c.b16 %v3001, %v2993
  %v3018 = vpack.c.b16 %v3002, %v2994
  %v3019 = vpack.c.b16 %v3003, %v2995
  %v3020 = vpack.c.b16 %v3004, %v2996
  %v3021 = vpack.c.b16 %v3005, %v2997
  %v3039 = vsel %vm241, %v2899, 0
  %3041 = vmatprep.subr.bf16.mxu0 0
  %3042 = vmatpush1.bf16.msra.mxu0 0
  %3043 = vmatprep.subr.bf16.mxu0 0
  %3044 = vmatpush1.bf16.msra.mxu0 0
  %3045 = vmatprep.subr.bf16.mxu0 0
  %3046 = vmatpush1.bf16.msra.mxu0 0
  %3047 = vmatprep.subr.bf16.mxu0 0
  %3048 = vmatpush1.bf16.msra.mxu0 0
  %3049 = vmatprep.subr.bf16.mxu0 0
  %3050 = vmatpush1.bf16.msra.mxu0 0
  %3051 = vmatprep.subr.bf16.mxu0 0
  %3052 = vmatpush1.bf16.msra.mxu0 0
  %3053 = vmatprep.subr.bf16.mxu0 %v3015
  %3054 = vmatpush1.bf16.msra.mxu0 %v3014
  %3055 = vmatprep.subr.bf16.mxu0 %v3007
  %3056 = vmatpush1.bf16.msra.mxu0 %v3006
  %3057 = vmatprep.subr.bf16.mxu0 0
  %3058 = vmatpush2.bf16.msra.mxu0 0
  %3059 = vmatprep.subr.bf16.mxu0 0
  %3060 = vmatpush2.bf16.msra.mxu0 0
  %3061 = vmatprep.subr.bf16.mxu0 0
  %3062 = vmatpush2.bf16.msra.mxu0 0
  %3063 = vmatprep.subr.bf16.mxu0 0
  %3064 = vmatpush2.bf16.msra.mxu0 0
  %3065 = vmatprep.subr.bf16.mxu0 0
  %3066 = vmatpush2.bf16.msra.mxu0 0
  %3067 = vmatprep.subr.bf16.mxu0 0
  %3068 = vmatpush2.bf16.msra.mxu0 0
  %3069 = vmatprep.subr.bf16.mxu0 0
  %3070 = vmatpush2.bf16.msra.mxu0 0
  %3071 = vmatprep.subr.bf16.mxu0 0
  %3072 = vmatpush2.bf16.msra.mxu0 0
  %3073 = vmatprep.mubr.bf16.mxu0 0
  %3074 = vmatmul.mubr.bf16.gmra.mxu0 %v3039
  %v3075 = vpop.f32.mrf.mxu0
  %v3076 = vadd.f32 %v2921, %v3075
  %v3077 = vpop.f32.mrf.mxu0
  %v3078 = vadd.f32 %v2925, %v3077
  %v3079 = vpop.f32.mrf.mxu0
  %v3080 = vadd.f32 %v2921, %v3079
  %v3081 = vpop.f32.mrf.mxu0
  %v3082 = vadd.f32 %v2925, %v3081
  %3083 = vdwg.mxu0
  %3084 = vmatprep.subr.bf16.mxu0 0
  %3085 = vmatpush1.bf16.msra.mxu0 0
  %3086 = vmatprep.subr.bf16.mxu0 0
  %3087 = vmatpush1.bf16.msra.mxu0 0
  %3088 = vmatprep.subr.bf16.mxu0 0
  %3089 = vmatpush1.bf16.msra.mxu0 0
  %3090 = vmatprep.subr.bf16.mxu0 0
  %3091 = vmatpush1.bf16.msra.mxu0 0
  %3092 = vmatprep.subr.bf16.mxu0 0
  %3093 = vmatpush1.bf16.msra.mxu0 0
  %3094 = vmatprep.subr.bf16.mxu0 0
  %3095 = vmatpush1.bf16.msra.mxu0 0
  %3096 = vmatprep.subr.bf16.mxu0 %v3017
  %3097 = vmatpush1.bf16.msra.mxu0 %v3016
  %3098 = vmatprep.subr.bf16.mxu0 %v3009
  %3099 = vmatpush1.bf16.msra.mxu0 %v3008
  %3100 = vmatprep.subr.bf16.mxu0 0
  %3101 = vmatpush2.bf16.msra.mxu0 0
  %3102 = vmatprep.subr.bf16.mxu0 0
  %3103 = vmatpush2.bf16.msra.mxu0 0
  %3104 = vmatprep.subr.bf16.mxu0 0
  %3105 = vmatpush2.bf16.msra.mxu0 0
  %3106 = vmatprep.subr.bf16.mxu0 0
  %3107 = vmatpush2.bf16.msra.mxu0 0
  %3108 = vmatprep.subr.bf16.mxu0 0
  %3109 = vmatpush2.bf16.msra.mxu0 0
  %3110 = vmatprep.subr.bf16.mxu0 0
  %3111 = vmatpush2.bf16.msra.mxu0 0
  %3112 = vmatprep.subr.bf16.mxu0 0
  %3113 = vmatpush2.bf16.msra.mxu0 0
  %3114 = vmatprep.subr.bf16.mxu0 0
  %3115 = vmatpush2.bf16.msra.mxu0 0
  %3116 = vmatprep.mubr.bf16.mxu0 0
  %3117 = vmatmul.mubr.bf16.gmra.mxu0 %v3039
  %v3118 = vpop.f32.mrf.mxu0
  %v3119 = vadd.f32 %v2929, %v3118
  %v3120 = vpop.f32.mrf.mxu0
  %v3121 = vadd.f32 %v2933, %v3120
  %v3122 = vpop.f32.mrf.mxu0
  %v3123 = vadd.f32 %v2929, %v3122
  %v3124 = vpop.f32.mrf.mxu0
  %v3125 = vadd.f32 %v2933, %v3124
  %3126 = vdwg.mxu0
  %3127 = vmatprep.subr.bf16.mxu0 0
  %3128 = vmatpush1.bf16.msra.mxu0 0
  %3129 = vmatprep.subr.bf16.mxu0 0
  %3130 = vmatpush1.bf16.msra.mxu0 0
  %3131 = vmatprep.subr.bf16.mxu0 0
  %3132 = vmatpush1.bf16.msra.mxu0 0
  %3133 = vmatprep.subr.bf16.mxu0 0
  %3134 = vmatpush1.bf16.msra.mxu0 0
  %3135 = vmatprep.subr.bf16.mxu0 0
  %3136 = vmatpush1.bf16.msra.mxu0 0
  %3137 = vmatprep.subr.bf16.mxu0 0
  %3138 = vmatpush1.bf16.msra.mxu0 0
  %3139 = vmatprep.subr.bf16.mxu0 %v3019
  %3140 = vmatpush1.bf16.msra.mxu0 %v3018
  %3141 = vmatprep.subr.bf16.mxu0 %v3011
  %3142 = vmatpush1.bf16.msra.mxu0 %v3010
  %3143 = vmatprep.subr.bf16.mxu0 0
  %3144 = vmatpush2.bf16.msra.mxu0 0
  %3145 = vmatprep.subr.bf16.mxu0 0
  %3146 = vmatpush2.bf16.msra.mxu0 0
  %3147 = vmatprep.subr.bf16.mxu0 0
  %3148 = vmatpush2.bf16.msra.mxu0 0
  %3149 = vmatprep.subr.bf16.mxu0 0
  %3150 = vmatpush2.bf16.msra.mxu0 0
  %3151 = vmatprep.subr.bf16.mxu0 0
  %3152 = vmatpush2.bf16.msra.mxu0 0
  %3153 = vmatprep.subr.bf16.mxu0 0
  %3154 = vmatpush2.bf16.msra.mxu0 0
  %3155 = vmatprep.subr.bf16.mxu0 0
  %3156 = vmatpush2.bf16.msra.mxu0 0
  %3157 = vmatprep.subr.bf16.mxu0 0
  %3158 = vmatpush2.bf16.msra.mxu0 0
  %3159 = vmatprep.mubr.bf16.mxu0 0
  %3160 = vmatmul.mubr.bf16.gmra.mxu0 %v3039
  %v3161 = vpop.f32.mrf.mxu0
  %v3162 = vadd.f32 %v2937, %v3161
  %v3163 = vpop.f32.mrf.mxu0
  %v3164 = vadd.f32 %v2941, %v3163
  %v3165 = vpop.f32.mrf.mxu0
  %v3166 = vadd.f32 %v2937, %v3165
  %v3167 = vpop.f32.mrf.mxu0
  %v3168 = vadd.f32 %v2941, %v3167
  %3169 = vdwg.mxu0
  %3170 = vmatprep.subr.bf16.mxu0 0
  %3171 = vmatpush1.bf16.msra.mxu0 0
  %3172 = vmatprep.subr.bf16.mxu0 0
  %3173 = vmatpush1.bf16.msra.mxu0 0
  %3174 = vmatprep.subr.bf16.mxu0 0
  %3175 = vmatpush1.bf16.msra.mxu0 0
  %3176 = vmatprep.subr.bf16.mxu0 0
  %3177 = vmatpush1.bf16.msra.mxu0 0
  %3178 = vmatprep.subr.bf16.mxu0 0
  %3179 = vmatpush1.bf16.msra.mxu0 0
  %3180 = vmatprep.subr.bf16.mxu0 0
  %3181 = vmatpush1.bf16.msra.mxu0 0
  %3182 = vmatprep.subr.bf16.mxu0 %v3021
  %3183 = vmatpush1.bf16.msra.mxu0 %v3020
  %3184 = vmatprep.subr.bf16.mxu0 %v3013
  %3185 = vmatpush1.bf16.msra.mxu0 %v3012
  %3186 = vmatprep.subr.bf16.mxu0 0
  %3187 = vmatpush2.bf16.msra.mxu0 0
  %3188 = vmatprep.subr.bf16.mxu0 0
  %3189 = vmatpush2.bf16.msra.mxu0 0
  %3190 = vmatprep.subr.bf16.mxu0 0
  %3191 = vmatpush2.bf16.msra.mxu0 0
  %3192 = vmatprep.subr.bf16.mxu0 0
  %3193 = vmatpush2.bf16.msra.mxu0 0
  %3194 = vmatprep.subr.bf16.mxu0 0
  %3195 = vmatpush2.bf16.msra.mxu0 0
  %3196 = vmatprep.subr.bf16.mxu0 0
  %3197 = vmatpush2.bf16.msra.mxu0 0
  %3198 = vmatprep.subr.bf16.mxu0 0
  %3199 = vmatpush2.bf16.msra.mxu0 0
  %3200 = vmatprep.subr.bf16.mxu0 0
  %3201 = vmatpush2.bf16.msra.mxu0 0
  %3202 = vmatprep.mubr.bf16.mxu0 0
  %3203 = vmatmul.mubr.bf16.gmra.mxu0 %v3039
  %v3204 = vpop.f32.mrf.mxu0
  %v3205 = vadd.f32 %v2945, %v3204
  %v3206 = vpop.f32.mrf.mxu0
  %v3207 = vadd.f32 %v2949, %v3206
  %v3208 = vpop.f32.mrf.mxu0
  %v3209 = vadd.f32 %v2945, %v3208
  %v3210 = vpop.f32.mrf.mxu0
  %v3211 = vadd.f32 %v2949, %v3210
  %3212 = vdwg.mxu0
  %v3213 = vld [vmem:[%s1] sm:$0xff]
  %v3214 = vld [vmem:[%s1 + $0x8] sm:$0xff]
  %v3215 = vpack.c.bf16 %v3214, %v3213
  %v3216 = vld [vmem:[%s9] sm:$0xff]
  %v3217 = vld [vmem:[%s9 + $0x8] sm:$0xff]
  %v3218 = vld [vmem:[%s9 + $0x10] sm:$0xff]
  %v3219 = vld [vmem:[%s9 + $0x18] sm:$0xff]
  %v3220 = vld [vmem:[%s9 + $0x20] sm:$0xff]
  %v3221 = vld [vmem:[%s9 + $0x28] sm:$0xff]
  %v3222 = vld [vmem:[%s9 + $0x30] sm:$0xff]
  %v3223 = vld [vmem:[%s9 + $0x38] sm:$0xff]
  %v3224 = vld [vmem:[%s10] sm:$0xff]
  %v3226 = vlaneseq
  %v3227 = vshrl.u32 %v3226, 7
  %v3228 = vsub.s32 0, %v3227
  %v3229 = vrot.slane %v3224, %v3228
  %v3230 = vlaneseq
  %v3231 = vshrl.u32 %v3230, 7
  %v3232 = vsub.s32 1, %v3231
  %v3233 = vrot.slane %v3224, %v3232
  %v3234 = vlaneseq
  %v3235 = vshrl.u32 %v3234, 7
  %v3236 = vsub.s32 2, %v3235
  %v3237 = vrot.slane %v3224, %v3236
  %v3238 = vlaneseq
  %v3239 = vshrl.u32 %v3238, 7
  %v3240 = vsub.s32 3, %v3239
  %v3241 = vrot.slane %v3224, %v3240
  %v3242 = vlaneseq
  %v3243 = vshrl.u32 %v3242, 7
  %v3244 = vsub.s32 4, %v3243
  %v3245 = vrot.slane %v3224, %v3244
  %v3246 = vlaneseq
  %v3247 = vshrl.u32 %v3246, 7
  %v3248 = vsub.s32 5, %v3247
  %v3249 = vrot.slane %v3224, %v3248
  %v3250 = vlaneseq
  %v3251 = vshrl.u32 %v3250, 7
  %v3252 = vsub.s32 6, %v3251
  %v3253 = vrot.slane %v3224, %v3252
  %v3254 = vlaneseq
  %v3255 = vshrl.u32 %v3254, 7
  %v3256 = vsub.s32 7, %v3255
  %v3257 = vrot.slane %v3224, %v3256
  %v3274 = vunpack.c.l.b16 %v3216
  %v3275 = vunpack.c.h.b16 %v3216
  %v3276 = vunpack.c.l.b16 %v3217
  %v3277 = vunpack.c.h.b16 %v3217
  %v3278 = vunpack.c.l.b16 %v3218
  %v3279 = vunpack.c.h.b16 %v3218
  %v3280 = vunpack.c.l.b16 %v3219
  %v3281 = vunpack.c.h.b16 %v3219
  %v3282 = vunpack.c.l.b16 %v3220
  %v3283 = vunpack.c.h.b16 %v3220
  %v3284 = vunpack.c.l.b16 %v3221
  %v3285 = vunpack.c.h.b16 %v3221
  %v3286 = vunpack.c.l.b16 %v3222
  %v3287 = vunpack.c.h.b16 %v3222
  %v3288 = vunpack.c.l.b16 %v3223
  %v3289 = vunpack.c.h.b16 %v3223
  %v3290 = vpack.c.b16 %v3282, %v3274
  %v3291 = vpack.c.b16 %v3283, %v3275
  %v3292 = vpack.c.b16 %v3284, %v3276
  %v3293 = vpack.c.b16 %v3285, %v3277
  %v3294 = vpack.c.b16 %v3286, %v3278
  %v3295 = vpack.c.b16 %v3287, %v3279
  %v3296 = vpack.c.b16 %v3288, %v3280
  %v3297 = vpack.c.b16 %v3289, %v3281
  %vm3306 = vcmask 130048
  %v3308 = vsel %vm3306, %v3215, 0
  %3310 = vmatprep.subr.bf16.mxu0 0
  %3311 = vmatpush1.bf16.msra.mxu0 0
  %3312 = vmatprep.subr.bf16.mxu0 0
  %3313 = vmatpush1.bf16.msra.mxu0 0
  %3314 = vmatprep.subr.bf16.mxu0 0
  %3315 = vmatpush1.bf16.msra.mxu0 0
  %3316 = vmatprep.subr.bf16.mxu0 0
  %3317 = vmatpush1.bf16.msra.mxu0 0
  %3318 = vmatprep.subr.bf16.mxu0 0
  %3319 = vmatpush1.bf16.msra.mxu0 0
  %3320 = vmatprep.subr.bf16.mxu0 0
  %3321 = vmatpush1.bf16.msra.mxu0 0
  %3322 = vmatprep.subr.bf16.mxu0 0
  %3323 = vmatpush1.bf16.msra.mxu0 0
  %3324 = vmatprep.subr.bf16.mxu0 %v3291
  %3325 = vmatpush1.bf16.msra.mxu0 %v3290
  %3326 = vmatprep.subr.bf16.mxu0 0
  %3327 = vmatpush2.bf16.msra.mxu0 0
  %3328 = vmatprep.subr.bf16.mxu0 0
  %3329 = vmatpush2.bf16.msra.mxu0 0
  %3330 = vmatprep.subr.bf16.mxu0 0
  %3331 = vmatpush2.bf16.msra.mxu0 0
  %3332 = vmatprep.subr.bf16.mxu0 0
  %3333 = vmatpush2.bf16.msra.mxu0 0
  %3334 = vmatprep.subr.bf16.mxu0 0
  %3335 = vmatpush2.bf16.msra.mxu0 0
  %3336 = vmatprep.subr.bf16.mxu0 0
  %3337 = vmatpush2.bf16.msra.mxu0 0
  %3338 = vmatprep.subr.bf16.mxu0 0
  %3339 = vmatpush2.bf16.msra.mxu0 0
  %3340 = vmatprep.subr.bf16.mxu0 0
  %3341 = vmatpush2.bf16.msra.mxu0 0
  %3342 = vmatprep.mubr.bf16.mxu0 0
  %3343 = vmatmul.mubr.bf16.gmra.mxu0 %v3308
  %v3344 = vpop.f32.mrf.mxu0
  %v3345 = vadd.f32 %v3229, %v3344
  %v3346 = vpop.f32.mrf.mxu0
  %v3347 = vadd.f32 %v3233, %v3346
  %v3348 = vpop.f32.mrf.mxu0
  %v3349 = vadd.f32 %v3229, %v3348
  %v3350 = vpop.f32.mrf.mxu0
  %v3351 = vadd.f32 %v3233, %v3350
  %3352 = vdwg.mxu0
  %3353 = vmatprep.subr.bf16.mxu0 0
  %3354 = vmatpush1.bf16.msra.mxu0 0
  %3355 = vmatprep.subr.bf16.mxu0 0
  %3356 = vmatpush1.bf16.msra.mxu0 0
  %3357 = vmatprep.subr.bf16.mxu0 0
  %3358 = vmatpush1.bf16.msra.mxu0 0
  %3359 = vmatprep.subr.bf16.mxu0 0
  %3360 = vmatpush1.bf16.msra.mxu0 0
  %3361 = vmatprep.subr.bf16.mxu0 0
  %3362 = vmatpush1.bf16.msra.mxu0 0
  %3363 = vmatprep.subr.bf16.mxu0 0
  %3364 = vmatpush1.bf16.msra.mxu0 0
  %3365 = vmatprep.subr.bf16.mxu0 0
  %3366 = vmatpush1.bf16.msra.mxu0 0
  %3367 = vmatprep.subr.bf16.mxu0 %v3293
  %3368 = vmatpush1.bf16.msra.mxu0 %v3292
  %3369 = vmatprep.subr.bf16.mxu0 0
  %3370 = vmatpush2.bf16.msra.mxu0 0
  %3371 = vmatprep.subr.bf16.mxu0 0
  %3372 = vmatpush2.bf16.msra.mxu0 0
  %3373 = vmatprep.subr.bf16.mxu0 0
  %3374 = vmatpush2.bf16.msra.mxu0 0
  %3375 = vmatprep.subr.bf16.mxu0 0
  %3376 = vmatpush2.bf16.msra.mxu0 0
  %3377 = vmatprep.subr.bf16.mxu0 0
  %3378 = vmatpush2.bf16.msra.mxu0 0
  %3379 = vmatprep.subr.bf16.mxu0 0
  %3380 = vmatpush2.bf16.msra.mxu0 0
  %3381 = vmatprep.subr.bf16.mxu0 0
  %3382 = vmatpush2.bf16.msra.mxu0 0
  %3383 = vmatprep.subr.bf16.mxu0 0
  %3384 = vmatpush2.bf16.msra.mxu0 0
  %3385 = vmatprep.mubr.bf16.mxu0 0
  %3386 = vmatmul.mubr.bf16.gmra.mxu0 %v3308
  %v3387 = vpop.f32.mrf.mxu0
  %v3388 = vadd.f32 %v3237, %v3387
  %v3389 = vpop.f32.mrf.mxu0
  %v3390 = vadd.f32 %v3241, %v3389
  %v3391 = vpop.f32.mrf.mxu0
  %v3392 = vadd.f32 %v3237, %v3391
  %v3393 = vpop.f32.mrf.mxu0
  %v3394 = vadd.f32 %v3241, %v3393
  %3395 = vdwg.mxu0
  %3396 = vmatprep.subr.bf16.mxu0 0
  %3397 = vmatpush1.bf16.msra.mxu0 0
  %3398 = vmatprep.subr.bf16.mxu0 0
  %3399 = vmatpush1.bf16.msra.mxu0 0
  %3400 = vmatprep.subr.bf16.mxu0 0
  %3401 = vmatpush1.bf16.msra.mxu0 0
  %3402 = vmatprep.subr.bf16.mxu0 0
  %3403 = vmatpush1.bf16.msra.mxu0 0
  %3404 = vmatprep.subr.bf16.mxu0 0
  %3405 = vmatpush1.bf16.msra.mxu0 0
  %3406 = vmatprep.subr.bf16.mxu0 0
  %3407 = vmatpush1.bf16.msra.mxu0 0
  %3408 = vmatprep.subr.bf16.mxu0 0
  %3409 = vmatpush1.bf16.msra.mxu0 0
  %3410 = vmatprep.subr.bf16.mxu0 %v3295
  %3411 = vmatpush1.bf16.msra.mxu0 %v3294
  %3412 = vmatprep.subr.bf16.mxu0 0
  %3413 = vmatpush2.bf16.msra.mxu0 0
  %3414 = vmatprep.subr.bf16.mxu0 0
  %3415 = vmatpush2.bf16.msra.mxu0 0
  %3416 = vmatprep.subr.bf16.mxu0 0
  %3417 = vmatpush2.bf16.msra.mxu0 0
  %3418 = vmatprep.subr.bf16.mxu0 0
  %3419 = vmatpush2.bf16.msra.mxu0 0
  %3420 = vmatprep.subr.bf16.mxu0 0
  %3421 = vmatpush2.bf16.msra.mxu0 0
  %3422 = vmatprep.subr.bf16.mxu0 0
  %3423 = vmatpush2.bf16.msra.mxu0 0
  %3424 = vmatprep.subr.bf16.mxu0 0
  %3425 = vmatpush2.bf16.msra.mxu0 0
  %3426 = vmatprep.subr.bf16.mxu0 0
  %3427 = vmatpush2.bf16.msra.mxu0 0
  %3428 = vmatprep.mubr.bf16.mxu0 0
  %3429 = vmatmul.mubr.bf16.gmra.mxu0 %v3308
  %v3430 = vpop.f32.mrf.mxu0
  %v3431 = vadd.f32 %v3245, %v3430
  %v3432 = vpop.f32.mrf.mxu0
  %v3433 = vadd.f32 %v3249, %v3432
  %v3434 = vpop.f32.mrf.mxu0
  %v3435 = vadd.f32 %v3245, %v3434
  %v3436 = vpop.f32.mrf.mxu0
  %v3437 = vadd.f32 %v3249, %v3436
  %3438 = vdwg.mxu0
  %3439 = vmatprep.subr.bf16.mxu0 0
  %3440 = vmatpush1.bf16.msra.mxu0 0
  %3441 = vmatprep.subr.bf16.mxu0 0
  %3442 = vmatpush1.bf16.msra.mxu0 0
  %3443 = vmatprep.subr.bf16.mxu0 0
  %3444 = vmatpush1.bf16.msra.mxu0 0
  %3445 = vmatprep.subr.bf16.mxu0 0
  %3446 = vmatpush1.bf16.msra.mxu0 0
  %3447 = vmatprep.subr.bf16.mxu0 0
  %3448 = vmatpush1.bf16.msra.mxu0 0
  %3449 = vmatprep.subr.bf16.mxu0 0
  %3450 = vmatpush1.bf16.msra.mxu0 0
  %3451 = vmatprep.subr.bf16.mxu0 0
  %3452 = vmatpush1.bf16.msra.mxu0 0
  %3453 = vmatprep.subr.bf16.mxu0 %v3297
  %3454 = vmatpush1.bf16.msra.mxu0 %v3296
  %3455 = vmatprep.subr.bf16.mxu0 0
  %3456 = vmatpush2.bf16.msra.mxu0 0
  %3457 = vmatprep.subr.bf16.mxu0 0
  %3458 = vmatpush2.bf16.msra.mxu0 0
  %3459 = vmatprep.subr.bf16.mxu0 0
  %3460 = vmatpush2.bf16.msra.mxu0 0
  %3461 = vmatprep.subr.bf16.mxu0 0
  %3462 = vmatpush2.bf16.msra.mxu0 0
  %3463 = vmatprep.subr.bf16.mxu0 0
  %3464 = vmatpush2.bf16.msra.mxu0 0
  %3465 = vmatprep.subr.bf16.mxu0 0
  %3466 = vmatpush2.bf16.msra.mxu0 0
  %3467 = vmatprep.subr.bf16.mxu0 0
  %3468 = vmatpush2.bf16.msra.mxu0 0
  %3469 = vmatprep.subr.bf16.mxu0 0
  %3470 = vmatpush2.bf16.msra.mxu0 0
  %3471 = vmatprep.mubr.bf16.mxu0 0
  %3472 = vmatmul.mubr.bf16.gmra.mxu0 %v3308
  %v3473 = vpop.f32.mrf.mxu0
  %v3474 = vadd.f32 %v3253, %v3473
  %v3475 = vpop.f32.mrf.mxu0
  %v3476 = vadd.f32 %v3257, %v3475
  %v3477 = vpop.f32.mrf.mxu0
  %v3478 = vadd.f32 %v3253, %v3477
  %v3479 = vpop.f32.mrf.mxu0
  %v3480 = vadd.f32 %v3257, %v3479
  %3481 = vdwg.mxu0
  %v3482 = vld [vmem:[%s2] sm:$0xff]
  %v3483 = vld [vmem:[%s2 + $0x8] sm:$0xff]
  %v3484 = vpack.c.bf16 %v3483, %v3482
  %v3485 = vld [vmem:[%s11] sm:$0xff]
  %v3486 = vld [vmem:[%s11 + $0x8] sm:$0xff]
  %v3487 = vld [vmem:[%s11 + $0x10] sm:$0xff]
  %v3488 = vld [vmem:[%s11 + $0x18] sm:$0xff]
  %v3489 = vld [vmem:[%s12] sm:$0xff]
  %v3491 = vlaneseq
  %v3492 = vshrl.u32 %v3491, 7
  %v3493 = vsub.s32 0, %v3492
  %v3494 = vrot.slane %v3489, %v3493
  %v3495 = vlaneseq
  %v3496 = vshrl.u32 %v3495, 7
  %v3497 = vsub.s32 1, %v3496
  %v3498 = vrot.slane %v3489, %v3497
  %v3499 = vlaneseq
  %v3500 = vshrl.u32 %v3499, 7
  %v3501 = vsub.s32 2, %v3500
  %v3502 = vrot.slane %v3489, %v3501
  %v3503 = vlaneseq
  %v3504 = vshrl.u32 %v3503, 7
  %v3505 = vsub.s32 3, %v3504
  %v3506 = vrot.slane %v3489, %v3505
  %v3507 = vlaneseq
  %v3508 = vshrl.u32 %v3507, 7
  %v3509 = vsub.s32 4, %v3508
  %v3510 = vrot.slane %v3489, %v3509
  %v3511 = vlaneseq
  %v3512 = vshrl.u32 %v3511, 7
  %v3513 = vsub.s32 5, %v3512
  %v3514 = vrot.slane %v3489, %v3513
  %v3515 = vlaneseq
  %v3516 = vshrl.u32 %v3515, 7
  %v3517 = vsub.s32 6, %v3516
  %v3518 = vrot.slane %v3489, %v3517
  %v3519 = vlaneseq
  %v3520 = vshrl.u32 %v3519, 7
  %v3521 = vsub.s32 7, %v3520
  %v3522 = vrot.slane %v3489, %v3521
  %v3535 = vunpack.c.l.b16 %v3485
  %v3536 = vunpack.c.h.b16 %v3485
  %v3537 = vunpack.c.l.b16 %v3486
  %v3538 = vunpack.c.h.b16 %v3486
  %v3539 = vunpack.c.l.b16 %v3487
  %v3540 = vunpack.c.h.b16 %v3487
  %v3541 = vunpack.c.l.b16 %v3488
  %v3542 = vunpack.c.h.b16 %v3488
  %v3543 = vpack.c.b16 %v3535, %v3535
  %v3544 = vpack.c.b16 %v3536, %v3536
  %v3545 = vpack.c.b16 %v3537, %v3537
  %v3546 = vpack.c.b16 %v3538, %v3538
  %v3547 = vpack.c.b16 %v3539, %v3539
  %v3548 = vpack.c.b16 %v3540, %v3540
  %v3549 = vpack.c.b16 %v3541, %v3541
  %v3550 = vpack.c.b16 %v3542, %v3542
  %vm3551 = vcmask 64512
  %v3553 = vsel %vm3551, %v3484, 0
  %vm3555 = vcmask 1043456
  %v3557 = vsel %vm3555, %v3543, 0
  %v3560 = vsel %vm3555, %v3544, 0
  %v3563 = vsel %vm3555, %v3545, 0
  %v3566 = vsel %vm3555, %v3546, 0
  %v3569 = vsel %vm3555, %v3547, 0
  %v3572 = vsel %vm3555, %v3548, 0
  %v3575 = vsel %vm3555, %v3549, 0
  %v3578 = vsel %vm3555, %v3550, 0
  %3580 = vmatprep.subr.bf16.mxu0 0
  %3581 = vmatpush1.bf16.msra.mxu0 0
  %3582 = vmatprep.subr.bf16.mxu0 0
  %3583 = vmatpush1.bf16.msra.mxu0 0
  %3584 = vmatprep.subr.bf16.mxu0 0
  %3585 = vmatpush1.bf16.msra.mxu0 0
  %3586 = vmatprep.subr.bf16.mxu0 0
  %3587 = vmatpush1.bf16.msra.mxu0 0
  %3588 = vmatprep.subr.bf16.mxu0 0
  %3589 = vmatpush1.bf16.msra.mxu0 0
  %3590 = vmatprep.subr.bf16.mxu0 0
  %3591 = vmatpush1.bf16.msra.mxu0 0
  %3592 = vmatprep.subr.bf16.mxu0 0
  %3593 = vmatpush1.bf16.msra.mxu0 0
  %3594 = vmatprep.subr.bf16.mxu0 %v3560
  %3595 = vmatpush1.bf16.msra.mxu0 %v3557
  %3596 = vmatprep.subr.bf16.mxu0 0
  %3597 = vmatpush2.bf16.msra.mxu0 0
  %3598 = vmatprep.subr.bf16.mxu0 0
  %3599 = vmatpush2.bf16.msra.mxu0 0
  %3600 = vmatprep.subr.bf16.mxu0 0
  %3601 = vmatpush2.bf16.msra.mxu0 0
  %3602 = vmatprep.subr.bf16.mxu0 0
  %3603 = vmatpush2.bf16.msra.mxu0 0
  %3604 = vmatprep.subr.bf16.mxu0 0
  %3605 = vmatpush2.bf16.msra.mxu0 0
  %3606 = vmatprep.subr.bf16.mxu0 0
  %3607 = vmatpush2.bf16.msra.mxu0 0
  %3608 = vmatprep.subr.bf16.mxu0 0
  %3609 = vmatpush2.bf16.msra.mxu0 0
  %3610 = vmatprep.subr.bf16.mxu0 0
  %3611 = vmatpush2.bf16.msra.mxu0 0
  %3612 = vmatprep.mubr.bf16.mxu0 0
  %3613 = vmatmul.mubr.bf16.gmra.mxu0 %v3553
  %v3614 = vpop.f32.mrf.mxu0
  %v3615 = vadd.f32 %v3494, %v3614
  %v3616 = vpop.f32.mrf.mxu0
  %v3617 = vadd.f32 %v3498, %v3616
  %v3618 = vpop.f32.mrf.mxu0
  %v3619 = vadd.f32 %v3494, %v3618
  %v3620 = vpop.f32.mrf.mxu0
  %v3621 = vadd.f32 %v3498, %v3620
  %3622 = vdwg.mxu0
  %3623 = vmatprep.subr.bf16.mxu0 0
  %3624 = vmatpush1.bf16.msra.mxu0 0
  %3625 = vmatprep.subr.bf16.mxu0 0
  %3626 = vmatpush1.bf16.msra.mxu0 0
  %3627 = vmatprep.subr.bf16.mxu0 0
  %3628 = vmatpush1.bf16.msra.mxu0 0
  %3629 = vmatprep.subr.bf16.mxu0 0
  %3630 = vmatpush1.bf16.msra.mxu0 0
  %3631 = vmatprep.subr.bf16.mxu0 0
  %3632 = vmatpush1.bf16.msra.mxu0 0
  %3633 = vmatprep.subr.bf16.mxu0 0
  %3634 = vmatpush1.bf16.msra.mxu0 0
  %3635 = vmatprep.subr.bf16.mxu0 0
  %3636 = vmatpush1.bf16.msra.mxu0 0
  %3637 = vmatprep.subr.bf16.mxu0 %v3566
  %3638 = vmatpush1.bf16.msra.mxu0 %v3563
  %3639 = vmatprep.subr.bf16.mxu0 0
  %3640 = vmatpush2.bf16.msra.mxu0 0
  %3641 = vmatprep.subr.bf16.mxu0 0
  %3642 = vmatpush2.bf16.msra.mxu0 0
  %3643 = vmatprep.subr.bf16.mxu0 0
  %3644 = vmatpush2.bf16.msra.mxu0 0
  %3645 = vmatprep.subr.bf16.mxu0 0
  %3646 = vmatpush2.bf16.msra.mxu0 0
  %3647 = vmatprep.subr.bf16.mxu0 0
  %3648 = vmatpush2.bf16.msra.mxu0 0
  %3649 = vmatprep.subr.bf16.mxu0 0
  %3650 = vmatpush2.bf16.msra.mxu0 0
  %3651 = vmatprep.subr.bf16.mxu0 0
  %3652 = vmatpush2.bf16.msra.mxu0 0
  %3653 = vmatprep.subr.bf16.mxu0 0
  %3654 = vmatpush2.bf16.msra.mxu0 0
  %3655 = vmatprep.mubr.bf16.mxu0 0
  %3656 = vmatmul.mubr.bf16.gmra.mxu0 %v3553
  %v3657 = vpop.f32.mrf.mxu0
  %v3658 = vadd.f32 %v3502, %v3657
  %v3659 = vpop.f32.mrf.mxu0
  %v3660 = vadd.f32 %v3506, %v3659
  %v3661 = vpop.f32.mrf.mxu0
  %v3662 = vadd.f32 %v3502, %v3661
  %v3663 = vpop.f32.mrf.mxu0
  %v3664 = vadd.f32 %v3506, %v3663
  %3665 = vdwg.mxu0
  %3666 = vmatprep.subr.bf16.mxu0 0
  %3667 = vmatpush1.bf16.msra.mxu0 0
  %3668 = vmatprep.subr.bf16.mxu0 0
  %3669 = vmatpush1.bf16.msra.mxu0 0
  %3670 = vmatprep.subr.bf16.mxu0 0
  %3671 = vmatpush1.bf16.msra.mxu0 0
  %3672 = vmatprep.subr.bf16.mxu0 0
  %3673 = vmatpush1.bf16.msra.mxu0 0
  %3674 = vmatprep.subr.bf16.mxu0 0
  %3675 = vmatpush1.bf16.msra.mxu0 0
  %3676 = vmatprep.subr.bf16.mxu0 0
  %3677 = vmatpush1.bf16.msra.mxu0 0
  %3678 = vmatprep.subr.bf16.mxu0 0
  %3679 = vmatpush1.bf16.msra.mxu0 0
  %3680 = vmatprep.subr.bf16.mxu0 %v3572
  %3681 = vmatpush1.bf16.msra.mxu0 %v3569
  %3682 = vmatprep.subr.bf16.mxu0 0
  %3683 = vmatpush2.bf16.msra.mxu0 0
  %3684 = vmatprep.subr.bf16.mxu0 0
  %3685 = vmatpush2.bf16.msra.mxu0 0
  %3686 = vmatprep.subr.bf16.mxu0 0
  %3687 = vmatpush2.bf16.msra.mxu0 0
  %3688 = vmatprep.subr.bf16.mxu0 0
  %3689 = vmatpush2.bf16.msra.mxu0 0
  %3690 = vmatprep.subr.bf16.mxu0 0
  %3691 = vmatpush2.bf16.msra.mxu0 0
  %3692 = vmatprep.subr.bf16.mxu0 0
  %3693 = vmatpush2.bf16.msra.mxu0 0
  %3694 = vmatprep.subr.bf16.mxu0 0
  %3695 = vmatpush2.bf16.msra.mxu0 0
  %3696 = vmatprep.subr.bf16.mxu0 0
  %3697 = vmatpush2.bf16.msra.mxu0 0
  %3698 = vmatprep.mubr.bf16.mxu0 0
  %3699 = vmatmul.mubr.bf16.gmra.mxu0 %v3553
  %v3700 = vpop.f32.mrf.mxu0
  %v3701 = vadd.f32 %v3510, %v3700
  %v3702 = vpop.f32.mrf.mxu0
  %v3703 = vadd.f32 %v3514, %v3702
  %v3704 = vpop.f32.mrf.mxu0
  %v3705 = vadd.f32 %v3510, %v3704
  %v3706 = vpop.f32.mrf.mxu0
  %v3707 = vadd.f32 %v3514, %v3706
  %3708 = vdwg.mxu0
  %3709 = vmatprep.subr.bf16.mxu0 0
  %3710 = vmatpush1.bf16.msra.mxu0 0
  %3711 = vmatprep.subr.bf16.mxu0 0
  %3712 = vmatpush1.bf16.msra.mxu0 0
  %3713 = vmatprep.subr.bf16.mxu0 0
  %3714 = vmatpush1.bf16.msra.mxu0 0
  %3715 = vmatprep.subr.bf16.mxu0 0
  %3716 = vmatpush1.bf16.msra.mxu0 0
  %3717 = vmatprep.subr.bf16.mxu0 0
  %3718 = vmatpush1.bf16.msra.mxu0 0
  %3719 = vmatprep.subr.bf16.mxu0 0
  %3720 = vmatpush1.bf16.msra.mxu0 0
  %3721 = vmatprep.subr.bf16.mxu0 0
  %3722 = vmatpush1.bf16.msra.mxu0 0
  %3723 = vmatprep.subr.bf16.mxu0 %v3578
  %3724 = vmatpush1.bf16.msra.mxu0 %v3575
  %3725 = vmatprep.subr.bf16.mxu0 0
  %3726 = vmatpush2.bf16.msra.mxu0 0
  %3727 = vmatprep.subr.bf16.mxu0 0
  %3728 = vmatpush2.bf16.msra.mxu0 0
  %3729 = vmatprep.subr.bf16.mxu0 0
  %3730 = vmatpush2.bf16.msra.mxu0 0
  %3731 = vmatprep.subr.bf16.mxu0 0
  %3732 = vmatpush2.bf16.msra.mxu0 0
  %3733 = vmatprep.subr.bf16.mxu0 0
  %3734 = vmatpush2.bf16.msra.mxu0 0
  %3735 = vmatprep.subr.bf16.mxu0 0
  %3736 = vmatpush2.bf16.msra.mxu0 0
  %3737 = vmatprep.subr.bf16.mxu0 0
  %3738 = vmatpush2.bf16.msra.mxu0 0
  %3739 = vmatprep.subr.bf16.mxu0 0
  %3740 = vmatpush2.bf16.msra.mxu0 0
  %3741 = vmatprep.mubr.bf16.mxu0 0
  %3742 = vmatmul.mubr.bf16.gmra.mxu0 %v3553
  %v3743 = vpop.f32.mrf.mxu0
  %v3744 = vadd.f32 %v3518, %v3743
  %v3745 = vpop.f32.mrf.mxu0
  %v3746 = vadd.f32 %v3522, %v3745
  %v3747 = vpop.f32.mrf.mxu0
  %v3748 = vadd.f32 %v3518, %v3747
  %v3749 = vpop.f32.mrf.mxu0
  %v3750 = vadd.f32 %v3522, %v3749
  %3751 = vdwg.mxu0
  %v3752 = vmul.f32 %v3076, 0.01
  %v3753 = vmul.f32 %v3078, 0.01
  %v3754 = vmul.f32 %v3119, 0.01
  %v3755 = vmul.f32 %v3121, 0.01
  %v3756 = vmul.f32 %v3162, 0.01
  %v3757 = vmul.f32 %v3164, 0.01
  %v3758 = vmul.f32 %v3205, 0.01
  %v3759 = vmul.f32 %v3207, 0.01
  %v3760 = vmul.f32 %v3080, 0.01
  %v3761 = vmul.f32 %v3082, 0.01
  %v3762 = vmul.f32 %v3123, 0.01
  %v3763 = vmul.f32 %v3125, 0.01
  %v3764 = vmul.f32 %v3166, 0.01
  %v3765 = vmul.f32 %v3168, 0.01
  %v3766 = vmul.f32 %v3209, 0.01
  %v3767 = vmul.f32 %v3211, 0.01
  %v3768 = vmax.f32 %v3076, %v3752
  %v3769 = vmax.f32 %v3078, %v3753
  %v3770 = vmax.f32 %v3119, %v3754
  %v3771 = vmax.f32 %v3121, %v3755
  %v3772 = vmax.f32 %v3162, %v3756
  %v3773 = vmax.f32 %v3164, %v3757
  %v3774 = vmax.f32 %v3205, %v3758
  %v3775 = vmax.f32 %v3207, %v3759
  %v3776 = vmax.f32 %v3080, %v3760
  %v3777 = vmax.f32 %v3082, %v3761
  %v3778 = vmax.f32 %v3123, %v3762
  %v3779 = vmax.f32 %v3125, %v3763
  %v3780 = vmax.f32 %v3166, %v3764
  %v3781 = vmax.f32 %v3168, %v3765
  %v3782 = vmax.f32 %v3209, %v3766
  %v3783 = vmax.f32 %v3211, %v3767
  %v3784 = vpack.c.bf16 %v3776, %v3768
  %v3785 = vpack.c.bf16 %v3777, %v3769
  %v3786 = vpack.c.bf16 %v3778, %v3770
  %v3787 = vpack.c.bf16 %v3779, %v3771
  %v3788 = vpack.c.bf16 %v3780, %v3772
  %v3789 = vpack.c.bf16 %v3781, %v3773
  %v3790 = vpack.c.bf16 %v3782, %v3774
  %v3791 = vpack.c.bf16 %v3783, %v3775
  %v3792 = vld [vmem:[%s13] sm:$0xf]
  %v3793 = vld [vmem:[%s13 + $0x4] sm:$0xf]
  %v3794 = vld [vmem:[%s13 + $0x8] sm:$0xf]
  %v3795 = vld [vmem:[%s13 + $0xc] sm:$0xf]
  %v3796 = vld [vmem:[%s13 + $0x10] sm:$0xf]
  %v3797 = vld [vmem:[%s13 + $0x14] sm:$0xf]
  %v3798 = vld [vmem:[%s13 + $0x18] sm:$0xf]
  %v3799 = vld [vmem:[%s13 + $0x1c] sm:$0xf]
  %v3800 = vld [vmem:[%s13 + $0x20] sm:$0xf]
  %v3801 = vld [vmem:[%s13 + $0x24] sm:$0xf]
  %v3802 = vld [vmem:[%s13 + $0x28] sm:$0xf]
  %v3803 = vld [vmem:[%s13 + $0x2c] sm:$0xf]
  %v3804 = vld [vmem:[%s13 + $0x30] sm:$0xf]
  %v3805 = vld [vmem:[%s13 + $0x34] sm:$0xf]
  %v3806 = vld [vmem:[%s13 + $0x38] sm:$0xf]
  %v3807 = vld [vmem:[%s13 + $0x3c] sm:$0xf]
  %v3808 = vld [vmem:[%s13 + $0x40] sm:$0xf]
  %v3809 = vld [vmem:[%s13 + $0x44] sm:$0xf]
  %v3810 = vld [vmem:[%s13 + $0x48] sm:$0xf]
  %v3811 = vld [vmem:[%s13 + $0x4c] sm:$0xf]
  %v3812 = vld [vmem:[%s13 + $0x50] sm:$0xf]
  %v3813 = vld [vmem:[%s13 + $0x54] sm:$0xf]
  %v3814 = vld [vmem:[%s13 + $0x58] sm:$0xf]
  %v3815 = vld [vmem:[%s13 + $0x5c] sm:$0xf]
  %v3816 = vld [vmem:[%s13 + $0x60] sm:$0xf]
  %v3817 = vld [vmem:[%s13 + $0x64] sm:$0xf]
  %v3818 = vld [vmem:[%s13 + $0x68] sm:$0xf]
  %v3819 = vld [vmem:[%s13 + $0x6c] sm:$0xf]
  %v3820 = vld [vmem:[%s13 + $0x70] sm:$0xf]
  %v3821 = vld [vmem:[%s13 + $0x74] sm:$0xf]
  %v3822 = vld [vmem:[%s13 + $0x78] sm:$0xf]
  %v3823 = vld [vmem:[%s13 + $0x7c] sm:$0xf]
  %v3824 = vld [vmem:[%s13 + $0x80] sm:$0xf]
  %v3825 = vld [vmem:[%s13 + $0x84] sm:$0xf]
  %v3826 = vld [vmem:[%s13 + $0x88] sm:$0xf]
  %v3827 = vld [vmem:[%s13 + $0x8c] sm:$0xf]
  %v3828 = vld [vmem:[%s13 + $0x90] sm:$0xf]
  %v3829 = vld [vmem:[%s13 + $0x94] sm:$0xf]
  %v3830 = vld [vmem:[%s13 + $0x98] sm:$0xf]
  %v3831 = vld [vmem:[%s13 + $0x9c] sm:$0xf]
  %v3832 = vld [vmem:[%s13 + $0xa0] sm:$0xf]
  %v3833 = vld [vmem:[%s13 + $0xa4] sm:$0xf]
  %v3834 = vld [vmem:[%s13 + $0xa8] sm:$0xf]
  %v3835 = vld [vmem:[%s13 + $0xac] sm:$0xf]
  %v3836 = vld [vmem:[%s13 + $0xb0] sm:$0xf]
  %v3837 = vld [vmem:[%s13 + $0xb4] sm:$0xf]
  %v3838 = vld [vmem:[%s13 + $0xb8] sm:$0xf]
  %v3839 = vld [vmem:[%s13 + $0xbc] sm:$0xf]
  %v3840 = vld [vmem:[%s13 + $0xc0] sm:$0xf]
  %v3841 = vld [vmem:[%s13 + $0xc4] sm:$0xf]
  %v3842 = vld [vmem:[%s13 + $0xc8] sm:$0xf]
  %v3843 = vld [vmem:[%s13 + $0xcc] sm:$0xf]
  %v3844 = vld [vmem:[%s13 + $0xd0] sm:$0xf]
  %v3845 = vld [vmem:[%s13 + $0xd4] sm:$0xf]
  %v3846 = vld [vmem:[%s13 + $0xd8] sm:$0xf]
  %v3847 = vld [vmem:[%s13 + $0xdc] sm:$0xf]
  %v3848 = vld [vmem:[%s13 + $0xe0] sm:$0xf]
  %v3849 = vld [vmem:[%s13 + $0xe4] sm:$0xf]
  %v3850 = vld [vmem:[%s13 + $0xe8] sm:$0xf]
  %v3851 = vld [vmem:[%s13 + $0xec] sm:$0xf]
  %v3852 = vld [vmem:[%s13 + $0xf0] sm:$0xf]
  %v3853 = vld [vmem:[%s13 + $0xf4] sm:$0xf]
  %v3854 = vld [vmem:[%s13 + $0xf8] sm:$0xf]
  %v3855 = vld [vmem:[%s13 + $0xfc] sm:$0xf]
  %v3856 = vld [vmem:[%s13 + $0x100] sm:$0xf]
  %v3857 = vld [vmem:[%s13 + $0x104] sm:$0xf]
  %v3858 = vld [vmem:[%s13 + $0x108] sm:$0xf]
  %v3859 = vld [vmem:[%s13 + $0x10c] sm:$0xf]
  %v3860 = vld [vmem:[%s13 + $0x110] sm:$0xf]
  %v3861 = vld [vmem:[%s13 + $0x114] sm:$0xf]
  %v3862 = vld [vmem:[%s13 + $0x118] sm:$0xf]
  %v3863 = vld [vmem:[%s13 + $0x11c] sm:$0xf]
  %v3864 = vld [vmem:[%s13 + $0x120] sm:$0xf]
  %v3865 = vld [vmem:[%s13 + $0x124] sm:$0xf]
  %v3866 = vld [vmem:[%s13 + $0x128] sm:$0xf]
  %v3867 = vld [vmem:[%s13 + $0x12c] sm:$0xf]
  %v3868 = vld [vmem:[%s13 + $0x130] sm:$0xf]
  %v3869 = vld [vmem:[%s13 + $0x134] sm:$0xf]
  %v3870 = vld [vmem:[%s13 + $0x138] sm:$0xf]
  %v3871 = vld [vmem:[%s13 + $0x13c] sm:$0xf]
  %v3872 = vld [vmem:[%s13 + $0x140] sm:$0xf]
  %v3873 = vld [vmem:[%s13 + $0x144] sm:$0xf]
  %v3874 = vld [vmem:[%s13 + $0x148] sm:$0xf]
  %v3875 = vld [vmem:[%s13 + $0x14c] sm:$0xf]
  %v3876 = vld [vmem:[%s13 + $0x150] sm:$0xf]
  %v3877 = vld [vmem:[%s13 + $0x154] sm:$0xf]
  %v3878 = vld [vmem:[%s13 + $0x158] sm:$0xf]
  %v3879 = vld [vmem:[%s13 + $0x15c] sm:$0xf]
  %v3880 = vld [vmem:[%s13 + $0x160] sm:$0xf]
  %v3881 = vld [vmem:[%s13 + $0x164] sm:$0xf]
  %v3882 = vld [vmem:[%s13 + $0x168] sm:$0xf]
  %v3883 = vld [vmem:[%s13 + $0x16c] sm:$0xf]
  %v3884 = vld [vmem:[%s13 + $0x170] sm:$0xf]
  %v3885 = vld [vmem:[%s13 + $0x174] sm:$0xf]
  %v3886 = vld [vmem:[%s13 + $0x178] sm:$0xf]
  %v3887 = vld [vmem:[%s13 + $0x17c] sm:$0xf]
  %v3888 = vld [vmem:[%s13 + $0x180] sm:$0xf]
  %v3889 = vld [vmem:[%s13 + $0x184] sm:$0xf]
  %v3890 = vld [vmem:[%s13 + $0x188] sm:$0xf]
  %v3891 = vld [vmem:[%s13 + $0x18c] sm:$0xf]
  %v3892 = vld [vmem:[%s13 + $0x190] sm:$0xf]
  %v3893 = vld [vmem:[%s13 + $0x194] sm:$0xf]
  %v3894 = vld [vmem:[%s13 + $0x198] sm:$0xf]
  %v3895 = vld [vmem:[%s13 + $0x19c] sm:$0xf]
  %v3896 = vld [vmem:[%s13 + $0x1a0] sm:$0xf]
  %v3897 = vld [vmem:[%s13 + $0x1a4] sm:$0xf]
  %v3898 = vld [vmem:[%s13 + $0x1a8] sm:$0xf]
  %v3899 = vld [vmem:[%s13 + $0x1ac] sm:$0xf]
  %v3900 = vld [vmem:[%s13 + $0x1b0] sm:$0xf]
  %v3901 = vld [vmem:[%s13 + $0x1b4] sm:$0xf]
  %v3902 = vld [vmem:[%s13 + $0x1b8] sm:$0xf]
  %v3903 = vld [vmem:[%s13 + $0x1bc] sm:$0xf]
  %v3904 = vld [vmem:[%s13 + $0x1c0] sm:$0xf]
  %v3905 = vld [vmem:[%s13 + $0x1c4] sm:$0xf]
  %v3906 = vld [vmem:[%s13 + $0x1c8] sm:$0xf]
  %v3907 = vld [vmem:[%s13 + $0x1cc] sm:$0xf]
  %v3908 = vld [vmem:[%s13 + $0x1d0] sm:$0xf]
  %v3909 = vld [vmem:[%s13 + $0x1d4] sm:$0xf]
  %v3910 = vld [vmem:[%s13 + $0x1d8] sm:$0xf]
  %v3911 = vld [vmem:[%s13 + $0x1dc] sm:$0xf]
  %v3912 = vld [vmem:[%s13 + $0x1e0] sm:$0xf]
  %v3913 = vld [vmem:[%s13 + $0x1e4] sm:$0xf]
  %v3914 = vld [vmem:[%s13 + $0x1e8] sm:$0xf]
  %v3915 = vld [vmem:[%s13 + $0x1ec] sm:$0xf]
  %v3916 = vld [vmem:[%s13 + $0x1f0] sm:$0xf]
  %v3917 = vld [vmem:[%s13 + $0x1f4] sm:$0xf]
  %v3918 = vld [vmem:[%s13 + $0x1f8] sm:$0xf]
  %v3919 = vld [vmem:[%s13 + $0x1fc] sm:$0xf]
  %v3920 = vld [vmem:[%s14] sm:$0x1]
  %v3922 = vlaneseq
  %v3923 = vshrl.u32 %v3922, 7
  %v3924 = vsub.s32 0, %v3923
  %v3925 = vrot.slane %v3920, %v3924
  %v4055 = vunpack.c.l.b16 %v3792
  %v4056 = vunpack.c.l.b16 %v3793
  %v4057 = vunpack.c.l.b16 %v3794
  %v4058 = vunpack.c.l.b16 %v3795
  %v4059 = vunpack.c.l.b16 %v3796
  %v4060 = vunpack.c.l.b16 %v3797
  %v4061 = vunpack.c.l.b16 %v3798
  %v4062 = vunpack.c.l.b16 %v3799
  %v4063 = vunpack.c.l.b16 %v3800
  %v4064 = vunpack.c.l.b16 %v3801
  %v4065 = vunpack.c.l.b16 %v3802
  %v4066 = vunpack.c.l.b16 %v3803
  %v4067 = vunpack.c.l.b16 %v3804
  %v4068 = vunpack.c.l.b16 %v3805
  %v4069 = vunpack.c.l.b16 %v3806
  %v4070 = vunpack.c.l.b16 %v3807
  %v4071 = vunpack.c.l.b16 %v3808
  %v4072 = vunpack.c.l.b16 %v3809
  %v4073 = vunpack.c.l.b16 %v3810
  %v4074 = vunpack.c.l.b16 %v3811
  %v4075 = vunpack.c.l.b16 %v3812
  %v4076 = vunpack.c.l.b16 %v3813
  %v4077 = vunpack.c.l.b16 %v3814
  %v4078 = vunpack.c.l.b16 %v3815
  %v4079 = vunpack.c.l.b16 %v3816
  %v4080 = vunpack.c.l.b16 %v3817
  %v4081 = vunpack.c.l.b16 %v3818
  %v4082 = vunpack.c.l.b16 %v3819
  %v4083 = vunpack.c.l.b16 %v3820
  %v4084 = vunpack.c.l.b16 %v3821
  %v4085 = vunpack.c.l.b16 %v3822
  %v4086 = vunpack.c.l.b16 %v3823
  %v4087 = vunpack.c.l.b16 %v3824
  %v4088 = vunpack.c.l.b16 %v3825
  %v4089 = vunpack.c.l.b16 %v3826
  %v4090 = vunpack.c.l.b16 %v3827
  %v4091 = vunpack.c.l.b16 %v3828
  %v4092 = vunpack.c.l.b16 %v3829
  %v4093 = vunpack.c.l.b16 %v3830
  %v4094 = vunpack.c.l.b16 %v3831
  %v4095 = vunpack.c.l.b16 %v3832
  %v4096 = vunpack.c.l.b16 %v3833
  %v4097 = vunpack.c.l.b16 %v3834
  %v4098 = vunpack.c.l.b16 %v3835
  %v4099 = vunpack.c.l.b16 %v3836
  %v4100 = vunpack.c.l.b16 %v3837
  %v4101 = vunpack.c.l.b16 %v3838
  %v4102 = vunpack.c.l.b16 %v3839
  %v4103 = vunpack.c.l.b16 %v3840
  %v4104 = vunpack.c.l.b16 %v3841
  %v4105 = vunpack.c.l.b16 %v3842
  %v4106 = vunpack.c.l.b16 %v3843
  %v4107 = vunpack.c.l.b16 %v3844
  %v4108 = vunpack.c.l.b16 %v3845
  %v4109 = vunpack.c.l.b16 %v3846
  %v4110 = vunpack.c.l.b16 %v3847
  %v4111 = vunpack.c.l.b16 %v3848
  %v4112 = vunpack.c.l.b16 %v3849
  %v4113 = vunpack.c.l.b16 %v3850
  %v4114 = vunpack.c.l.b16 %v3851
  %v4115 = vunpack.c.l.b16 %v3852
  %v4116 = vunpack.c.l.b16 %v3853
  %v4117 = vunpack.c.l.b16 %v3854
  %v4118 = vunpack.c.l.b16 %v3855
  %v4119 = vunpack.c.l.b16 %v3856
  %v4120 = vunpack.c.l.b16 %v3857
  %v4121 = vunpack.c.l.b16 %v3858
  %v4122 = vunpack.c.l.b16 %v3859
  %v4123 = vunpack.c.l.b16 %v3860
  %v4124 = vunpack.c.l.b16 %v3861
  %v4125 = vunpack.c.l.b16 %v3862
  %v4126 = vunpack.c.l.b16 %v3863
  %v4127 = vunpack.c.l.b16 %v3864
  %v4128 = vunpack.c.l.b16 %v3865
  %v4129 = vunpack.c.l.b16 %v3866
  %v4130 = vunpack.c.l.b16 %v3867
  %v4131 = vunpack.c.l.b16 %v3868
  %v4132 = vunpack.c.l.b16 %v3869
  %v4133 = vunpack.c.l.b16 %v3870
  %v4134 = vunpack.c.l.b16 %v3871
  %v4135 = vunpack.c.l.b16 %v3872
  %v4136 = vunpack.c.l.b16 %v3873
  %v4137 = vunpack.c.l.b16 %v3874
  %v4138 = vunpack.c.l.b16 %v3875
  %v4139 = vunpack.c.l.b16 %v3876
  %v4140 = vunpack.c.l.b16 %v3877
  %v4141 = vunpack.c.l.b16 %v3878
  %v4142 = vunpack.c.l.b16 %v3879
  %v4143 = vunpack.c.l.b16 %v3880
  %v4144 = vunpack.c.l.b16 %v3881
  %v4145 = vunpack.c.l.b16 %v3882
  %v4146 = vunpack.c.l.b16 %v3883
  %v4147 = vunpack.c.l.b16 %v3884
  %v4148 = vunpack.c.l.b16 %v3885
  %v4149 = vunpack.c.l.b16 %v3886
  %v4150 = vunpack.c.l.b16 %v3887
  %v4151 = vunpack.c.l.b16 %v3888
  %v4152 = vunpack.c.l.b16 %v3889
  %v4153 = vunpack.c.l.b16 %v3890
  %v4154 = vunpack.c.l.b16 %v3891
  %v4155 = vunpack.c.l.b16 %v3892
  %v4156 = vunpack.c.l.b16 %v3893
  %v4157 = vunpack.c.l.b16 %v3894
  %v4158 = vunpack.c.l.b16 %v3895
  %v4159 = vunpack.c.l.b16 %v3896
  %v4160 = vunpack.c.l.b16 %v3897
  %v4161 = vunpack.c.l.b16 %v3898
  %v4162 = vunpack.c.l.b16 %v3899
  %v4163 = vunpack.c.l.b16 %v3900
  %v4164 = vunpack.c.l.b16 %v3901
  %v4165 = vunpack.c.l.b16 %v3902
  %v4166 = vunpack.c.l.b16 %v3903
  %v4167 = vunpack.c.l.b16 %v3904
  %v4168 = vunpack.c.l.b16 %v3905
  %v4169 = vunpack.c.l.b16 %v3906
  %v4170 = vunpack.c.l.b16 %v3907
  %v4171 = vunpack.c.l.b16 %v3908
  %v4172 = vunpack.c.l.b16 %v3909
  %v4173 = vunpack.c.l.b16 %v3910
  %v4174 = vunpack.c.l.b16 %v3911
  %v4175 = vunpack.c.l.b16 %v3912
  %v4176 = vunpack.c.l.b16 %v3913
  %v4177 = vunpack.c.l.b16 %v3914
  %v4178 = vunpack.c.l.b16 %v3915
  %v4179 = vunpack.c.l.b16 %v3916
  %v4180 = vunpack.c.l.b16 %v3917
  %v4181 = vunpack.c.l.b16 %v3918
  %v4182 = vunpack.c.l.b16 %v3919
  %v4183 = vpack.c.b16 %v4056, %v4055
  %v4184 = vpack.c.b16 %v4058, %v4057
  %v4185 = vpack.c.b16 %v4060, %v4059
  %v4186 = vpack.c.b16 %v4062, %v4061
  %v4187 = vpack.c.b16 %v4064, %v4063
  %v4188 = vpack.c.b16 %v4066, %v4065
  %v4189 = vpack.c.b16 %v4068, %v4067
  %v4190 = vpack.c.b16 %v4070, %v4069
  %v4191 = vpack.c.b16 %v4072, %v4071
  %v4192 = vpack.c.b16 %v4074, %v4073
  %v4193 = vpack.c.b16 %v4076, %v4075
  %v4194 = vpack.c.b16 %v4078, %v4077
  %v4195 = vpack.c.b16 %v4080, %v4079
  %v4196 = vpack.c.b16 %v4082, %v4081
  %v4197 = vpack.c.b16 %v4084, %v4083
  %v4198 = vpack.c.b16 %v4086, %v4085
  %v4199 = vpack.c.b16 %v4088, %v4087
  %v4200 = vpack.c.b16 %v4090, %v4089
  %v4201 = vpack.c.b16 %v4092, %v4091
  %v4202 = vpack.c.b16 %v4094, %v4093
  %v4203 = vpack.c.b16 %v4096, %v4095
  %v4204 = vpack.c.b16 %v4098, %v4097
  %v4205 = vpack.c.b16 %v4100, %v4099
  %v4206 = vpack.c.b16 %v4102, %v4101
  %v4207 = vpack.c.b16 %v4104, %v4103
  %v4208 = vpack.c.b16 %v4106, %v4105
  %v4209 = vpack.c.b16 %v4108, %v4107
  %v4210 = vpack.c.b16 %v4110, %v4109
  %v4211 = vpack.c.b16 %v4112, %v4111
  %v4212 = vpack.c.b16 %v4114, %v4113
  %v4213 = vpack.c.b16 %v4116, %v4115
  %v4214 = vpack.c.b16 %v4118, %v4117
  %v4215 = vpack.c.b16 %v4120, %v4119
  %v4216 = vpack.c.b16 %v4122, %v4121
  %v4217 = vpack.c.b16 %v4124, %v4123
  %v4218 = vpack.c.b16 %v4126, %v4125
  %v4219 = vpack.c.b16 %v4128, %v4127
  %v4220 = vpack.c.b16 %v4130, %v4129
  %v4221 = vpack.c.b16 %v4132, %v4131
  %v4222 = vpack.c.b16 %v4134, %v4133
  %v4223 = vpack.c.b16 %v4136, %v4135
  %v4224 = vpack.c.b16 %v4138, %v4137
  %v4225 = vpack.c.b16 %v4140, %v4139
  %v4226 = vpack.c.b16 %v4142, %v4141
  %v4227 = vpack.c.b16 %v4144, %v4143
  %v4228 = vpack.c.b16 %v4146, %v4145
  %v4229 = vpack.c.b16 %v4148, %v4147
  %v4230 = vpack.c.b16 %v4150, %v4149
  %v4231 = vpack.c.b16 %v4152, %v4151
  %v4232 = vpack.c.b16 %v4154, %v4153
  %v4233 = vpack.c.b16 %v4156, %v4155
  %v4234 = vpack.c.b16 %v4158, %v4157
  %v4235 = vpack.c.b16 %v4160, %v4159
  %v4236 = vpack.c.b16 %v4162, %v4161
  %v4237 = vpack.c.b16 %v4164, %v4163
  %v4238 = vpack.c.b16 %v4166, %v4165
  %v4239 = vpack.c.b16 %v4168, %v4167
  %v4240 = vpack.c.b16 %v4170, %v4169
  %v4241 = vpack.c.b16 %v4172, %v4171
  %v4242 = vpack.c.b16 %v4174, %v4173
  %v4243 = vpack.c.b16 %v4176, %v4175
  %v4244 = vpack.c.b16 %v4178, %v4177
  %v4245 = vpack.c.b16 %v4180, %v4179
  %v4246 = vpack.c.b16 %v4182, %v4181
  %4311 = vmatprep.subr.bf16.mxu0 0
  %4312 = vmatpush1.bf16.msra.mxu0 %v4190
  %4313 = vmatprep.subr.bf16.mxu0 0
  %4314 = vmatpush1.bf16.msra.mxu0 %v4189
  %4315 = vmatprep.subr.bf16.mxu0 0
  %4316 = vmatpush1.bf16.msra.mxu0 %v4188
  %4317 = vmatprep.subr.bf16.mxu0 0
  %4318 = vmatpush1.bf16.msra.mxu0 %v4187
  %4319 = vmatprep.subr.bf16.mxu0 0
  %4320 = vmatpush1.bf16.msra.mxu0 %v4186
  %4321 = vmatprep.subr.bf16.mxu0 0
  %4322 = vmatpush1.bf16.msra.mxu0 %v4185
  %4323 = vmatprep.subr.bf16.mxu0 0
  %4324 = vmatpush1.bf16.msra.mxu0 %v4184
  %4325 = vmatprep.subr.bf16.mxu0 0
  %4326 = vmatpush1.bf16.msra.mxu0 %v4183
  %4327 = vmatprep.subr.bf16.mxu0 0
  %4328 = vmatpush2.bf16.msra.mxu0 %v4198
  %4329 = vmatprep.subr.bf16.mxu0 0
  %4330 = vmatpush2.bf16.msra.mxu0 %v4197
  %4331 = vmatprep.subr.bf16.mxu0 0
  %4332 = vmatpush2.bf16.msra.mxu0 %v4196
  %4333 = vmatprep.subr.bf16.mxu0 0
  %4334 = vmatpush2.bf16.msra.mxu0 %v4195
  %4335 = vmatprep.subr.bf16.mxu0 0
  %4336 = vmatpush2.bf16.msra.mxu0 %v4194
  %4337 = vmatprep.subr.bf16.mxu0 0
  %4338 = vmatpush2.bf16.msra.mxu0 %v4193
  %4339 = vmatprep.subr.bf16.mxu0 0
  %4340 = vmatpush2.bf16.msra.mxu0 %v4192
  %4341 = vmatprep.subr.bf16.mxu0 0
  %4342 = vmatpush2.bf16.msra.mxu0 %v4191
  %4343 = vmatprep.mubr.bf16.mxu0 %v3785
  %4344 = vmatmul.mubr.bf16.gmra.mxu0 %v3784
  %v4345 = vpop.f32.mrf.mxu0
  %v4346 = vadd.f32 %v3925, %v4345
  %v4347 = vpop.f32.mrf.mxu0
  %v4348 = vpop.f32.mrf.mxu0
  %v4349 = vadd.f32 %v3925, %v4348
  %v4350 = vpop.f32.mrf.mxu0
  %4351 = vdwg.mxu0
  %4352 = vmatprep.subr.bf16.mxu0 0
  %4353 = vmatpush1.bf16.msra.mxu0 %v4206
  %4354 = vmatprep.subr.bf16.mxu0 0
  %4355 = vmatpush1.bf16.msra.mxu0 %v4205
  %4356 = vmatprep.subr.bf16.mxu0 0
  %4357 = vmatpush1.bf16.msra.mxu0 %v4204
  %4358 = vmatprep.subr.bf16.mxu0 0
  %4359 = vmatpush1.bf16.msra.mxu0 %v4203
  %4360 = vmatprep.subr.bf16.mxu0 0
  %4361 = vmatpush1.bf16.msra.mxu0 %v4202
  %4362 = vmatprep.subr.bf16.mxu0 0
  %4363 = vmatpush1.bf16.msra.mxu0 %v4201
  %4364 = vmatprep.subr.bf16.mxu0 0
  %4365 = vmatpush1.bf16.msra.mxu0 %v4200
  %4366 = vmatprep.subr.bf16.mxu0 0
  %4367 = vmatpush1.bf16.msra.mxu0 %v4199
  %4368 = vmatprep.subr.bf16.mxu0 0
  %4369 = vmatpush2.bf16.msra.mxu0 %v4214
  %4370 = vmatprep.subr.bf16.mxu0 0
  %4371 = vmatpush2.bf16.msra.mxu0 %v4213
  %4372 = vmatprep.subr.bf16.mxu0 0
  %4373 = vmatpush2.bf16.msra.mxu0 %v4212
  %4374 = vmatprep.subr.bf16.mxu0 0
  %4375 = vmatpush2.bf16.msra.mxu0 %v4211
  %4376 = vmatprep.subr.bf16.mxu0 0
  %4377 = vmatpush2.bf16.msra.mxu0 %v4210
  %4378 = vmatprep.subr.bf16.mxu0 0
  %4379 = vmatpush2.bf16.msra.mxu0 %v4209
  %4380 = vmatprep.subr.bf16.mxu0 0
  %4381 = vmatpush2.bf16.msra.mxu0 %v4208
  %4382 = vmatprep.subr.bf16.mxu0 0
  %4383 = vmatpush2.bf16.msra.mxu0 %v4207
  %4384 = vmatprep.mubr.bf16.mxu0 %v3787
  %4385 = vmatmul.mubr.bf16.gmra.mxu0 %v3786
  %v4386 = vpop.f32.mrf.mxu0
  %v4387 = vadd.f32 %v4346, %v4386
  %v4388 = vpop.f32.mrf.mxu0
  %v4389 = vpop.f32.mrf.mxu0
  %v4390 = vadd.f32 %v4349, %v4389
  %v4391 = vpop.f32.mrf.mxu0
  %4392 = vdwg.mxu0
  %4393 = vmatprep.subr.bf16.mxu0 0
  %4394 = vmatpush1.bf16.msra.mxu0 %v4222
  %4395 = vmatprep.subr.bf16.mxu0 0
  %4396 = vmatpush1.bf16.msra.mxu0 %v4221
  %4397 = vmatprep.subr.bf16.mxu0 0
  %4398 = vmatpush1.bf16.msra.mxu0 %v4220
  %4399 = vmatprep.subr.bf16.mxu0 0
  %4400 = vmatpush1.bf16.msra.mxu0 %v4219
  %4401 = vmatprep.subr.bf16.mxu0 0
  %4402 = vmatpush1.bf16.msra.mxu0 %v4218
  %4403 = vmatprep.subr.bf16.mxu0 0
  %4404 = vmatpush1.bf16.msra.mxu0 %v4217
  %4405 = vmatprep.subr.bf16.mxu0 0
  %4406 = vmatpush1.bf16.msra.mxu0 %v4216
  %4407 = vmatprep.subr.bf16.mxu0 0
  %4408 = vmatpush1.bf16.msra.mxu0 %v4215
  %4409 = vmatprep.subr.bf16.mxu0 0
  %4410 = vmatpush2.bf16.msra.mxu0 %v4230
  %4411 = vmatprep.subr.bf16.mxu0 0
  %4412 = vmatpush2.bf16.msra.mxu0 %v4229
  %4413 = vmatprep.subr.bf16.mxu0 0
  %4414 = vmatpush2.bf16.msra.mxu0 %v4228
  %4415 = vmatprep.subr.bf16.mxu0 0
  %4416 = vmatpush2.bf16.msra.mxu0 %v4227
  %4417 = vmatprep.subr.bf16.mxu0 0
  %4418 = vmatpush2.bf16.msra.mxu0 %v4226
  %4419 = vmatprep.subr.bf16.mxu0 0
  %4420 = vmatpush2.bf16.msra.mxu0 %v4225
  %4421 = vmatprep.subr.bf16.mxu0 0
  %4422 = vmatpush2.bf16.msra.mxu0 %v4224
  %4423 = vmatprep.subr.bf16.mxu0 0
  %4424 = vmatpush2.bf16.msra.mxu0 %v4223
  %4425 = vmatprep.mubr.bf16.mxu0 %v3789
  %4426 = vmatmul.mubr.bf16.gmra.mxu0 %v3788
  %v4427 = vpop.f32.mrf.mxu0
  %v4428 = vadd.f32 %v4387, %v4427
  %v4429 = vpop.f32.mrf.mxu0
  %v4430 = vpop.f32.mrf.mxu0
  %v4431 = vadd.f32 %v4390, %v4430
  %v4432 = vpop.f32.mrf.mxu0
  %4433 = vdwg.mxu0
  %4434 = vmatprep.subr.bf16.mxu0 0
  %4435 = vmatpush1.bf16.msra.mxu0 %v4238
  %4436 = vmatprep.subr.bf16.mxu0 0
  %4437 = vmatpush1.bf16.msra.mxu0 %v4237
  %4438 = vmatprep.subr.bf16.mxu0 0
  %4439 = vmatpush1.bf16.msra.mxu0 %v4236
  %4440 = vmatprep.subr.bf16.mxu0 0
  %4441 = vmatpush1.bf16.msra.mxu0 %v4235
  %4442 = vmatprep.subr.bf16.mxu0 0
  %4443 = vmatpush1.bf16.msra.mxu0 %v4234
  %4444 = vmatprep.subr.bf16.mxu0 0
  %4445 = vmatpush1.bf16.msra.mxu0 %v4233
  %4446 = vmatprep.subr.bf16.mxu0 0
  %4447 = vmatpush1.bf16.msra.mxu0 %v4232
  %4448 = vmatprep.subr.bf16.mxu0 0
  %4449 = vmatpush1.bf16.msra.mxu0 %v4231
  %4450 = vmatprep.subr.bf16.mxu0 0
  %4451 = vmatpush2.bf16.msra.mxu0 %v4246
  %4452 = vmatprep.subr.bf16.mxu0 0
  %4453 = vmatpush2.bf16.msra.mxu0 %v4245
  %4454 = vmatprep.subr.bf16.mxu0 0
  %4455 = vmatpush2.bf16.msra.mxu0 %v4244
  %4456 = vmatprep.subr.bf16.mxu0 0
  %4457 = vmatpush2.bf16.msra.mxu0 %v4243
  %4458 = vmatprep.subr.bf16.mxu0 0
  %4459 = vmatpush2.bf16.msra.mxu0 %v4242
  %4460 = vmatprep.subr.bf16.mxu0 0
  %4461 = vmatpush2.bf16.msra.mxu0 %v4241
  %4462 = vmatprep.subr.bf16.mxu0 0
  %4463 = vmatpush2.bf16.msra.mxu0 %v4240
  %4464 = vmatprep.subr.bf16.mxu0 0
  %4465 = vmatpush2.bf16.msra.mxu0 %v4239
  %4466 = vmatprep.mubr.bf16.mxu0 %v3791
  %4467 = vmatmul.mubr.bf16.gmra.mxu0 %v3790
  %v4468 = vpop.f32.mrf.mxu0
  %v4469 = vadd.f32 %v4428, %v4468
  %v4470 = vpop.f32.mrf.mxu0
  %v4471 = vpop.f32.mrf.mxu0
  %v4472 = vadd.f32 %v4431, %v4471
  %v4473 = vpop.f32.mrf.mxu0
  %4474 = vdwg.mxu0
  %v4475 = vmul.f32 %v3345, 0.01
  %v4476 = vmul.f32 %v3347, 0.01
  %v4477 = vmul.f32 %v3388, 0.01
  %v4478 = vmul.f32 %v3390, 0.01
  %v4479 = vmul.f32 %v3431, 0.01
  %v4480 = vmul.f32 %v3433, 0.01
  %v4481 = vmul.f32 %v3474, 0.01
  %v4482 = vmul.f32 %v3476, 0.01
  %v4483 = vmul.f32 %v3349, 0.01
  %v4484 = vmul.f32 %v3351, 0.01
  %v4485 = vmul.f32 %v3392, 0.01
  %v4486 = vmul.f32 %v3394, 0.01
  %v4487 = vmul.f32 %v3435, 0.01
  %v4488 = vmul.f32 %v3437, 0.01
  %v4489 = vmul.f32 %v3478, 0.01
  %v4490 = vmul.f32 %v3480, 0.01
  %v4491 = vmax.f32 %v3345, %v4475
  %v4492 = vmax.f32 %v3347, %v4476
  %v4493 = vmax.f32 %v3388, %v4477
  %v4494 = vmax.f32 %v3390, %v4478
  %v4495 = vmax.f32 %v3431, %v4479
  %v4496 = vmax.f32 %v3433, %v4480
  %v4497 = vmax.f32 %v3474, %v4481
  %v4498 = vmax.f32 %v3476, %v4482
  %v4499 = vmax.f32 %v3349, %v4483
  %v4500 = vmax.f32 %v3351, %v4484
  %v4501 = vmax.f32 %v3392, %v4485
  %v4502 = vmax.f32 %v3394, %v4486
  %v4503 = vmax.f32 %v3435, %v4487
  %v4504 = vmax.f32 %v3437, %v4488
  %v4505 = vmax.f32 %v3478, %v4489
  %v4506 = vmax.f32 %v3480, %v4490
  %v4507 = vpack.c.bf16 %v4499, %v4491
  %v4508 = vpack.c.bf16 %v4500, %v4492
  %v4509 = vpack.c.bf16 %v4501, %v4493
  %v4510 = vpack.c.bf16 %v4502, %v4494
  %v4511 = vpack.c.bf16 %v4503, %v4495
  %v4512 = vpack.c.bf16 %v4504, %v4496
  %v4513 = vpack.c.bf16 %v4505, %v4497
  %v4514 = vpack.c.bf16 %v4506, %v4498
  %4515 = vmatprep.subr.bf16.mxu0 0
  %4516 = vmatpush1.bf16.msra.mxu0 %v4190
  %4517 = vmatprep.subr.bf16.mxu0 0
  %4518 = vmatpush1.bf16.msra.mxu0 %v4189
  %4519 = vmatprep.subr.bf16.mxu0 0
  %4520 = vmatpush1.bf16.msra.mxu0 %v4188
  %4521 = vmatprep.subr.bf16.mxu0 0
  %4522 = vmatpush1.bf16.msra.mxu0 %v4187
  %4523 = vmatprep.subr.bf16.mxu0 0
  %4524 = vmatpush1.bf16.msra.mxu0 %v4186
  %4525 = vmatprep.subr.bf16.mxu0 0
  %4526 = vmatpush1.bf16.msra.mxu0 %v4185
  %4527 = vmatprep.subr.bf16.mxu0 0
  %4528 = vmatpush1.bf16.msra.mxu0 %v4184
  %4529 = vmatprep.subr.bf16.mxu0 0
  %4530 = vmatpush1.bf16.msra.mxu0 %v4183
  %4531 = vmatprep.subr.bf16.mxu0 0
  %4532 = vmatpush2.bf16.msra.mxu0 %v4198
  %4533 = vmatprep.subr.bf16.mxu0 0
  %4534 = vmatpush2.bf16.msra.mxu0 %v4197
  %4535 = vmatprep.subr.bf16.mxu0 0
  %4536 = vmatpush2.bf16.msra.mxu0 %v4196
  %4537 = vmatprep.subr.bf16.mxu0 0
  %4538 = vmatpush2.bf16.msra.mxu0 %v4195
  %4539 = vmatprep.subr.bf16.mxu0 0
  %4540 = vmatpush2.bf16.msra.mxu0 %v4194
  %4541 = vmatprep.subr.bf16.mxu0 0
  %4542 = vmatpush2.bf16.msra.mxu0 %v4193
  %4543 = vmatprep.subr.bf16.mxu0 0
  %4544 = vmatpush2.bf16.msra.mxu0 %v4192
  %4545 = vmatprep.subr.bf16.mxu0 0
  %4546 = vmatpush2.bf16.msra.mxu0 %v4191
  %4547 = vmatprep.mubr.bf16.mxu0 %v4508
  %4548 = vmatmul.mubr.bf16.gmra.mxu0 %v4507
  %v4549 = vpop.f32.mrf.mxu0
  %v4550 = vadd.f32 %v3925, %v4549
  %v4551 = vpop.f32.mrf.mxu0
  %v4552 = vpop.f32.mrf.mxu0
  %v4553 = vadd.f32 %v3925, %v4552
  %v4554 = vpop.f32.mrf.mxu0
  %4555 = vdwg.mxu0
  %4556 = vmatprep.subr.bf16.mxu0 0
  %4557 = vmatpush1.bf16.msra.mxu0 %v4206
  %4558 = vmatprep.subr.bf16.mxu0 0
  %4559 = vmatpush1.bf16.msra.mxu0 %v4205
  %4560 = vmatprep.subr.bf16.mxu0 0
  %4561 = vmatpush1.bf16.msra.mxu0 %v4204
  %4562 = vmatprep.subr.bf16.mxu0 0
  %4563 = vmatpush1.bf16.msra.mxu0 %v4203
  %4564 = vmatprep.subr.bf16.mxu0 0
  %4565 = vmatpush1.bf16.msra.mxu0 %v4202
  %4566 = vmatprep.subr.bf16.mxu0 0
  %4567 = vmatpush1.bf16.msra.mxu0 %v4201
  %4568 = vmatprep.subr.bf16.mxu0 0
  %4569 = vmatpush1.bf16.msra.mxu0 %v4200
  %4570 = vmatprep.subr.bf16.mxu0 0
  %4571 = vmatpush1.bf16.msra.mxu0 %v4199
  %4572 = vmatprep.subr.bf16.mxu0 0
  %4573 = vmatpush2.bf16.msra.mxu0 %v4214
  %4574 = vmatprep.subr.bf16.mxu0 0
  %4575 = vmatpush2.bf16.msra.mxu0 %v4213
  %4576 = vmatprep.subr.bf16.mxu0 0
  %4577 = vmatpush2.bf16.msra.mxu0 %v4212
  %4578 = vmatprep.subr.bf16.mxu0 0
  %4579 = vmatpush2.bf16.msra.mxu0 %v4211
  %4580 = vmatprep.subr.bf16.mxu0 0
  %4581 = vmatpush2.bf16.msra.mxu0 %v4210
  %4582 = vmatprep.subr.bf16.mxu0 0
  %4583 = vmatpush2.bf16.msra.mxu0 %v4209
  %4584 = vmatprep.subr.bf16.mxu0 0
  %4585 = vmatpush2.bf16.msra.mxu0 %v4208
  %4586 = vmatprep.subr.bf16.mxu0 0
  %4587 = vmatpush2.bf16.msra.mxu0 %v4207
  %4588 = vmatprep.mubr.bf16.mxu0 %v4510
  %4589 = vmatmul.mubr.bf16.gmra.mxu0 %v4509
  %v4590 = vpop.f32.mrf.mxu0
  %v4591 = vadd.f32 %v4550, %v4590
  %v4592 = vpop.f32.mrf.mxu0
  %v4593 = vpop.f32.mrf.mxu0
  %v4594 = vadd.f32 %v4553, %v4593
  %v4595 = vpop.f32.mrf.mxu0
  %4596 = vdwg.mxu0
  %4597 = vmatprep.subr.bf16.mxu0 0
  %4598 = vmatpush1.bf16.msra.mxu0 %v4222
  %4599 = vmatprep.subr.bf16.mxu0 0
  %4600 = vmatpush1.bf16.msra.mxu0 %v4221
  %4601 = vmatprep.subr.bf16.mxu0 0
  %4602 = vmatpush1.bf16.msra.mxu0 %v4220
  %4603 = vmatprep.subr.bf16.mxu0 0
  %4604 = vmatpush1.bf16.msra.mxu0 %v4219
  %4605 = vmatprep.subr.bf16.mxu0 0
  %4606 = vmatpush1.bf16.msra.mxu0 %v4218
  %4607 = vmatprep.subr.bf16.mxu0 0
  %4608 = vmatpush1.bf16.msra.mxu0 %v4217
  %4609 = vmatprep.subr.bf16.mxu0 0
  %4610 = vmatpush1.bf16.msra.mxu0 %v4216
  %4611 = vmatprep.subr.bf16.mxu0 0
  %4612 = vmatpush1.bf16.msra.mxu0 %v4215
  %4613 = vmatprep.subr.bf16.mxu0 0
  %4614 = vmatpush2.bf16.msra.mxu0 %v4230
  %4615 = vmatprep.subr.bf16.mxu0 0
  %4616 = vmatpush2.bf16.msra.mxu0 %v4229
  %4617 = vmatprep.subr.bf16.mxu0 0
  %4618 = vmatpush2.bf16.msra.mxu0 %v4228
  %4619 = vmatprep.subr.bf16.mxu0 0
  %4620 = vmatpush2.bf16.msra.mxu0 %v4227
  %4621 = vmatprep.subr.bf16.mxu0 0
  %4622 = vmatpush2.bf16.msra.mxu0 %v4226
  %4623 = vmatprep.subr.bf16.mxu0 0
  %4624 = vmatpush2.bf16.msra.mxu0 %v4225
  %4625 = vmatprep.subr.bf16.mxu0 0
  %4626 = vmatpush2.bf16.msra.mxu0 %v4224
  %4627 = vmatprep.subr.bf16.mxu0 0
  %4628 = vmatpush2.bf16.msra.mxu0 %v4223
  %4629 = vmatprep.mubr.bf16.mxu0 %v4512
  %4630 = vmatmul.mubr.bf16.gmra.mxu0 %v4511
  %v4631 = vpop.f32.mrf.mxu0
  %v4632 = vadd.f32 %v4591, %v4631
  %v4633 = vpop.f32.mrf.mxu0
  %v4634 = vpop.f32.mrf.mxu0
  %v4635 = vadd.f32 %v4594, %v4634
  %v4636 = vpop.f32.mrf.mxu0
  %4637 = vdwg.mxu0
  %4638 = vmatprep.subr.bf16.mxu0 0
  %4639 = vmatpush1.bf16.msra.mxu0 %v4238
  %4640 = vmatprep.subr.bf16.mxu0 0
  %4641 = vmatpush1.bf16.msra.mxu0 %v4237
  %4642 = vmatprep.subr.bf16.mxu0 0
  %4643 = vmatpush1.bf16.msra.mxu0 %v4236
  %4644 = vmatprep.subr.bf16.mxu0 0
  %4645 = vmatpush1.bf16.msra.mxu0 %v4235
  %4646 = vmatprep.subr.bf16.mxu0 0
  %4647 = vmatpush1.bf16.msra.mxu0 %v4234
  %4648 = vmatprep.subr.bf16.mxu0 0
  %4649 = vmatpush1.bf16.msra.mxu0 %v4233
  %4650 = vmatprep.subr.bf16.mxu0 0
  %4651 = vmatpush1.bf16.msra.mxu0 %v4232
  %4652 = vmatprep.subr.bf16.mxu0 0
  %4653 = vmatpush1.bf16.msra.mxu0 %v4231
  %4654 = vmatprep.subr.bf16.mxu0 0
  %4655 = vmatpush2.bf16.msra.mxu0 %v4246
  %4656 = vmatprep.subr.bf16.mxu0 0
  %4657 = vmatpush2.bf16.msra.mxu0 %v4245
  %4658 = vmatprep.subr.bf16.mxu0 0
  %4659 = vmatpush2.bf16.msra.mxu0 %v4244
  %4660 = vmatprep.subr.bf16.mxu0 0
  %4661 = vmatpush2.bf16.msra.mxu0 %v4243
  %4662 = vmatprep.subr.bf16.mxu0 0
  %4663 = vmatpush2.bf16.msra.mxu0 %v4242
  %4664 = vmatprep.subr.bf16.mxu0 0
  %4665 = vmatpush2.bf16.msra.mxu0 %v4241
  %4666 = vmatprep.subr.bf16.mxu0 0
  %4667 = vmatpush2.bf16.msra.mxu0 %v4240
  %4668 = vmatprep.subr.bf16.mxu0 0
  %4669 = vmatpush2.bf16.msra.mxu0 %v4239
  %4670 = vmatprep.mubr.bf16.mxu0 %v4514
  %4671 = vmatmul.mubr.bf16.gmra.mxu0 %v4513
  %v4672 = vpop.f32.mrf.mxu0
  %v4673 = vadd.f32 %v4632, %v4672
  %v4674 = vpop.f32.mrf.mxu0
  %v4675 = vpop.f32.mrf.mxu0
  %v4676 = vadd.f32 %v4635, %v4675
  %v4677 = vpop.f32.mrf.mxu0
  %4678 = vdwg.mxu0
  %v4679 = vmul.f32 %v3615, 0.01
  %v4680 = vmul.f32 %v3617, 0.01
  %v4681 = vmul.f32 %v3658, 0.01
  %v4682 = vmul.f32 %v3660, 0.01
  %v4683 = vmul.f32 %v3701, 0.01
  %v4684 = vmul.f32 %v3703, 0.01
  %v4685 = vmul.f32 %v3744, 0.01
  %v4686 = vmul.f32 %v3746, 0.01
  %v4687 = vmul.f32 %v3619, 0.01
  %v4688 = vmul.f32 %v3621, 0.01
  %v4689 = vmul.f32 %v3662, 0.01
  %v4690 = vmul.f32 %v3664, 0.01
  %v4691 = vmul.f32 %v3705, 0.01
  %v4692 = vmul.f32 %v3707, 0.01
  %v4693 = vmul.f32 %v3748, 0.01
  %v4694 = vmul.f32 %v3750, 0.01
  %v4695 = vmax.f32 %v3615, %v4679
  %v4696 = vmax.f32 %v3617, %v4680
  %v4697 = vmax.f32 %v3658, %v4681
  %v4698 = vmax.f32 %v3660, %v4682
  %v4699 = vmax.f32 %v3701, %v4683
  %v4700 = vmax.f32 %v3703, %v4684
  %v4701 = vmax.f32 %v3744, %v4685
  %v4702 = vmax.f32 %v3746, %v4686
  %v4703 = vmax.f32 %v3619, %v4687
  %v4704 = vmax.f32 %v3621, %v4688
  %v4705 = vmax.f32 %v3662, %v4689
  %v4706 = vmax.f32 %v3664, %v4690
  %v4707 = vmax.f32 %v3705, %v4691
  %v4708 = vmax.f32 %v3707, %v4692
  %v4709 = vmax.f32 %v3748, %v4693
  %v4710 = vmax.f32 %v3750, %v4694
  %v4711 = vpack.c.bf16 %v4703, %v4695
  %v4712 = vpack.c.bf16 %v4704, %v4696
  %v4713 = vpack.c.bf16 %v4705, %v4697
  %v4714 = vpack.c.bf16 %v4706, %v4698
  %v4715 = vpack.c.bf16 %v4707, %v4699
  %v4716 = vpack.c.bf16 %v4708, %v4700
  %v4717 = vpack.c.bf16 %v4709, %v4701
  %v4718 = vpack.c.bf16 %v4710, %v4702
  %v4719 = vld [vmem:[%s15] sm:$0xf]
  %v4720 = vld [vmem:[%s15 + $0x4] sm:$0xf]
  %v4721 = vld [vmem:[%s15 + $0x8] sm:$0xf]
  %v4722 = vld [vmem:[%s15 + $0xc] sm:$0xf]
  %v4723 = vld [vmem:[%s15 + $0x10] sm:$0xf]
  %v4724 = vld [vmem:[%s15 + $0x14] sm:$0xf]
  %v4725 = vld [vmem:[%s15 + $0x18] sm:$0xf]
  %v4726 = vld [vmem:[%s15 + $0x1c] sm:$0xf]
  %v4727 = vld [vmem:[%s15 + $0x20] sm:$0xf]
  %v4728 = vld [vmem:[%s15 + $0x24] sm:$0xf]
  %v4729 = vld [vmem:[%s15 + $0x28] sm:$0xf]
  %v4730 = vld [vmem:[%s15 + $0x2c] sm:$0xf]
  %v4731 = vld [vmem:[%s15 + $0x30] sm:$0xf]
  %v4732 = vld [vmem:[%s15 + $0x34] sm:$0xf]
  %v4733 = vld [vmem:[%s15 + $0x38] sm:$0xf]
  %v4734 = vld [vmem:[%s15 + $0x3c] sm:$0xf]
  %v4735 = vld [vmem:[%s15 + $0x40] sm:$0xf]
  %v4736 = vld [vmem:[%s15 + $0x44] sm:$0xf]
  %v4737 = vld [vmem:[%s15 + $0x48] sm:$0xf]
  %v4738 = vld [vmem:[%s15 + $0x4c] sm:$0xf]
  %v4739 = vld [vmem:[%s15 + $0x50] sm:$0xf]
  %v4740 = vld [vmem:[%s15 + $0x54] sm:$0xf]
  %v4741 = vld [vmem:[%s15 + $0x58] sm:$0xf]
  %v4742 = vld [vmem:[%s15 + $0x5c] sm:$0xf]
  %v4743 = vld [vmem:[%s15 + $0x60] sm:$0xf]
  %v4744 = vld [vmem:[%s15 + $0x64] sm:$0xf]
  %v4745 = vld [vmem:[%s15 + $0x68] sm:$0xf]
  %v4746 = vld [vmem:[%s15 + $0x6c] sm:$0xf]
  %v4747 = vld [vmem:[%s15 + $0x70] sm:$0xf]
  %v4748 = vld [vmem:[%s15 + $0x74] sm:$0xf]
  %v4749 = vld [vmem:[%s15 + $0x78] sm:$0xf]
  %v4750 = vld [vmem:[%s15 + $0x7c] sm:$0xf]
  %v4751 = vld [vmem:[%s15 + $0x80] sm:$0xf]
  %v4752 = vld [vmem:[%s15 + $0x84] sm:$0xf]
  %v4753 = vld [vmem:[%s15 + $0x88] sm:$0xf]
  %v4754 = vld [vmem:[%s15 + $0x8c] sm:$0xf]
  %v4755 = vld [vmem:[%s15 + $0x90] sm:$0xf]
  %v4756 = vld [vmem:[%s15 + $0x94] sm:$0xf]
  %v4757 = vld [vmem:[%s15 + $0x98] sm:$0xf]
  %v4758 = vld [vmem:[%s15 + $0x9c] sm:$0xf]
  %v4759 = vld [vmem:[%s15 + $0xa0] sm:$0xf]
  %v4760 = vld [vmem:[%s15 + $0xa4] sm:$0xf]
  %v4761 = vld [vmem:[%s15 + $0xa8] sm:$0xf]
  %v4762 = vld [vmem:[%s15 + $0xac] sm:$0xf]
  %v4763 = vld [vmem:[%s15 + $0xb0] sm:$0xf]
  %v4764 = vld [vmem:[%s15 + $0xb4] sm:$0xf]
  %v4765 = vld [vmem:[%s15 + $0xb8] sm:$0xf]
  %v4766 = vld [vmem:[%s15 + $0xbc] sm:$0xf]
  %v4767 = vld [vmem:[%s15 + $0xc0] sm:$0xf]
  %v4768 = vld [vmem:[%s15 + $0xc4] sm:$0xf]
  %v4769 = vld [vmem:[%s15 + $0xc8] sm:$0xf]
  %v4770 = vld [vmem:[%s15 + $0xcc] sm:$0xf]
  %v4771 = vld [vmem:[%s15 + $0xd0] sm:$0xf]
  %v4772 = vld [vmem:[%s15 + $0xd4] sm:$0xf]
  %v4773 = vld [vmem:[%s15 + $0xd8] sm:$0xf]
  %v4774 = vld [vmem:[%s15 + $0xdc] sm:$0xf]
  %v4775 = vld [vmem:[%s15 + $0xe0] sm:$0xf]
  %v4776 = vld [vmem:[%s15 + $0xe4] sm:$0xf]
  %v4777 = vld [vmem:[%s15 + $0xe8] sm:$0xf]
  %v4778 = vld [vmem:[%s15 + $0xec] sm:$0xf]
  %v4779 = vld [vmem:[%s15 + $0xf0] sm:$0xf]
  %v4780 = vld [vmem:[%s15 + $0xf4] sm:$0xf]
  %v4781 = vld [vmem:[%s15 + $0xf8] sm:$0xf]
  %v4782 = vld [vmem:[%s15 + $0xfc] sm:$0xf]
  %v4783 = vld [vmem:[%s15 + $0x100] sm:$0xf]
  %v4784 = vld [vmem:[%s15 + $0x104] sm:$0xf]
  %v4785 = vld [vmem:[%s15 + $0x108] sm:$0xf]
  %v4786 = vld [vmem:[%s15 + $0x10c] sm:$0xf]
  %v4787 = vld [vmem:[%s15 + $0x110] sm:$0xf]
  %v4788 = vld [vmem:[%s15 + $0x114] sm:$0xf]
  %v4789 = vld [vmem:[%s15 + $0x118] sm:$0xf]
  %v4790 = vld [vmem:[%s15 + $0x11c] sm:$0xf]
  %v4791 = vld [vmem:[%s15 + $0x120] sm:$0xf]
  %v4792 = vld [vmem:[%s15 + $0x124] sm:$0xf]
  %v4793 = vld [vmem:[%s15 + $0x128] sm:$0xf]
  %v4794 = vld [vmem:[%s15 + $0x12c] sm:$0xf]
  %v4795 = vld [vmem:[%s15 + $0x130] sm:$0xf]
  %v4796 = vld [vmem:[%s15 + $0x134] sm:$0xf]
  %v4797 = vld [vmem:[%s15 + $0x138] sm:$0xf]
  %v4798 = vld [vmem:[%s15 + $0x13c] sm:$0xf]
  %v4799 = vld [vmem:[%s15 + $0x140] sm:$0xf]
  %v4800 = vld [vmem:[%s15 + $0x144] sm:$0xf]
  %v4801 = vld [vmem:[%s15 + $0x148] sm:$0xf]
  %v4802 = vld [vmem:[%s15 + $0x14c] sm:$0xf]
  %v4803 = vld [vmem:[%s15 + $0x150] sm:$0xf]
  %v4804 = vld [vmem:[%s15 + $0x154] sm:$0xf]
  %v4805 = vld [vmem:[%s15 + $0x158] sm:$0xf]
  %v4806 = vld [vmem:[%s15 + $0x15c] sm:$0xf]
  %v4807 = vld [vmem:[%s15 + $0x160] sm:$0xf]
  %v4808 = vld [vmem:[%s15 + $0x164] sm:$0xf]
  %v4809 = vld [vmem:[%s15 + $0x168] sm:$0xf]
  %v4810 = vld [vmem:[%s15 + $0x16c] sm:$0xf]
  %v4811 = vld [vmem:[%s15 + $0x170] sm:$0xf]
  %v4812 = vld [vmem:[%s15 + $0x174] sm:$0xf]
  %v4813 = vld [vmem:[%s15 + $0x178] sm:$0xf]
  %v4814 = vld [vmem:[%s15 + $0x17c] sm:$0xf]
  %v4815 = vld [vmem:[%s15 + $0x180] sm:$0xf]
  %v4816 = vld [vmem:[%s15 + $0x184] sm:$0xf]
  %v4817 = vld [vmem:[%s15 + $0x188] sm:$0xf]
  %v4818 = vld [vmem:[%s15 + $0x18c] sm:$0xf]
  %v4819 = vld [vmem:[%s15 + $0x190] sm:$0xf]
  %v4820 = vld [vmem:[%s15 + $0x194] sm:$0xf]
  %v4821 = vld [vmem:[%s15 + $0x198] sm:$0xf]
  %v4822 = vld [vmem:[%s15 + $0x19c] sm:$0xf]
  %v4823 = vld [vmem:[%s15 + $0x1a0] sm:$0xf]
  %v4824 = vld [vmem:[%s15 + $0x1a4] sm:$0xf]
  %v4825 = vld [vmem:[%s15 + $0x1a8] sm:$0xf]
  %v4826 = vld [vmem:[%s15 + $0x1ac] sm:$0xf]
  %v4827 = vld [vmem:[%s15 + $0x1b0] sm:$0xf]
  %v4828 = vld [vmem:[%s15 + $0x1b4] sm:$0xf]
  %v4829 = vld [vmem:[%s15 + $0x1b8] sm:$0xf]
  %v4830 = vld [vmem:[%s15 + $0x1bc] sm:$0xf]
  %v4831 = vld [vmem:[%s15 + $0x1c0] sm:$0xf]
  %v4832 = vld [vmem:[%s15 + $0x1c4] sm:$0xf]
  %v4833 = vld [vmem:[%s15 + $0x1c8] sm:$0xf]
  %v4834 = vld [vmem:[%s15 + $0x1cc] sm:$0xf]
  %v4835 = vld [vmem:[%s15 + $0x1d0] sm:$0xf]
  %v4836 = vld [vmem:[%s15 + $0x1d4] sm:$0xf]
  %v4837 = vld [vmem:[%s15 + $0x1d8] sm:$0xf]
  %v4838 = vld [vmem:[%s15 + $0x1dc] sm:$0xf]
  %v4839 = vld [vmem:[%s15 + $0x1e0] sm:$0xf]
  %v4840 = vld [vmem:[%s15 + $0x1e4] sm:$0xf]
  %v4841 = vld [vmem:[%s15 + $0x1e8] sm:$0xf]
  %v4842 = vld [vmem:[%s15 + $0x1ec] sm:$0xf]
  %v4843 = vld [vmem:[%s15 + $0x1f0] sm:$0xf]
  %v4844 = vld [vmem:[%s15 + $0x1f4] sm:$0xf]
  %v4845 = vld [vmem:[%s15 + $0x1f8] sm:$0xf]
  %v4846 = vld [vmem:[%s15 + $0x1fc] sm:$0xf]
  %v4847 = vld [vmem:[%s16] sm:$0x1]
  %v4849 = vlaneseq
  %v4850 = vshrl.u32 %v4849, 7
  %v4851 = vsub.s32 0, %v4850
  %v4852 = vrot.slane %v4847, %v4851
  %v4982 = vunpack.c.l.b16 %v4719
  %v4983 = vunpack.c.l.b16 %v4720
  %v4984 = vunpack.c.l.b16 %v4721
  %v4985 = vunpack.c.l.b16 %v4722
  %v4986 = vunpack.c.l.b16 %v4723
  %v4987 = vunpack.c.l.b16 %v4724
  %v4988 = vunpack.c.l.b16 %v4725
  %v4989 = vunpack.c.l.b16 %v4726
  %v4990 = vunpack.c.l.b16 %v4727
  %v4991 = vunpack.c.l.b16 %v4728
  %v4992 = vunpack.c.l.b16 %v4729
  %v4993 = vunpack.c.l.b16 %v4730
  %v4994 = vunpack.c.l.b16 %v4731
  %v4995 = vunpack.c.l.b16 %v4732
  %v4996 = vunpack.c.l.b16 %v4733
  %v4997 = vunpack.c.l.b16 %v4734
  %v4998 = vunpack.c.l.b16 %v4735
  %v4999 = vunpack.c.l.b16 %v4736
  %v5000 = vunpack.c.l.b16 %v4737
  %v5001 = vunpack.c.l.b16 %v4738
  %v5002 = vunpack.c.l.b16 %v4739
  %v5003 = vunpack.c.l.b16 %v4740
  %v5004 = vunpack.c.l.b16 %v4741
  %v5005 = vunpack.c.l.b16 %v4742
  %v5006 = vunpack.c.l.b16 %v4743
  %v5007 = vunpack.c.l.b16 %v4744
  %v5008 = vunpack.c.l.b16 %v4745
  %v5009 = vunpack.c.l.b16 %v4746
  %v5010 = vunpack.c.l.b16 %v4747
  %v5011 = vunpack.c.l.b16 %v4748
  %v5012 = vunpack.c.l.b16 %v4749
  %v5013 = vunpack.c.l.b16 %v4750
  %v5014 = vunpack.c.l.b16 %v4751
  %v5015 = vunpack.c.l.b16 %v4752
  %v5016 = vunpack.c.l.b16 %v4753
  %v5017 = vunpack.c.l.b16 %v4754
  %v5018 = vunpack.c.l.b16 %v4755
  %v5019 = vunpack.c.l.b16 %v4756
  %v5020 = vunpack.c.l.b16 %v4757
  %v5021 = vunpack.c.l.b16 %v4758
  %v5022 = vunpack.c.l.b16 %v4759
  %v5023 = vunpack.c.l.b16 %v4760
  %v5024 = vunpack.c.l.b16 %v4761
  %v5025 = vunpack.c.l.b16 %v4762
  %v5026 = vunpack.c.l.b16 %v4763
  %v5027 = vunpack.c.l.b16 %v4764
  %v5028 = vunpack.c.l.b16 %v4765
  %v5029 = vunpack.c.l.b16 %v4766
  %v5030 = vunpack.c.l.b16 %v4767
  %v5031 = vunpack.c.l.b16 %v4768
  %v5032 = vunpack.c.l.b16 %v4769
  %v5033 = vunpack.c.l.b16 %v4770
  %v5034 = vunpack.c.l.b16 %v4771
  %v5035 = vunpack.c.l.b16 %v4772
  %v5036 = vunpack.c.l.b16 %v4773
  %v5037 = vunpack.c.l.b16 %v4774
  %v5038 = vunpack.c.l.b16 %v4775
  %v5039 = vunpack.c.l.b16 %v4776
  %v5040 = vunpack.c.l.b16 %v4777
  %v5041 = vunpack.c.l.b16 %v4778
  %v5042 = vunpack.c.l.b16 %v4779
  %v5043 = vunpack.c.l.b16 %v4780
  %v5044 = vunpack.c.l.b16 %v4781
  %v5045 = vunpack.c.l.b16 %v4782
  %v5046 = vunpack.c.l.b16 %v4783
  %v5047 = vunpack.c.l.b16 %v4784
  %v5048 = vunpack.c.l.b16 %v4785
  %v5049 = vunpack.c.l.b16 %v4786
  %v5050 = vunpack.c.l.b16 %v4787
  %v5051 = vunpack.c.l.b16 %v4788
  %v5052 = vunpack.c.l.b16 %v4789
  %v5053 = vunpack.c.l.b16 %v4790
  %v5054 = vunpack.c.l.b16 %v4791
  %v5055 = vunpack.c.l.b16 %v4792
  %v5056 = vunpack.c.l.b16 %v4793
  %v5057 = vunpack.c.l.b16 %v4794
  %v5058 = vunpack.c.l.b16 %v4795
  %v5059 = vunpack.c.l.b16 %v4796
  %v5060 = vunpack.c.l.b16 %v4797
  %v5061 = vunpack.c.l.b16 %v4798
  %v5062 = vunpack.c.l.b16 %v4799
  %v5063 = vunpack.c.l.b16 %v4800
  %v5064 = vunpack.c.l.b16 %v4801
  %v5065 = vunpack.c.l.b16 %v4802
  %v5066 = vunpack.c.l.b16 %v4803
  %v5067 = vunpack.c.l.b16 %v4804
  %v5068 = vunpack.c.l.b16 %v4805
  %v5069 = vunpack.c.l.b16 %v4806
  %v5070 = vunpack.c.l.b16 %v4807
  %v5071 = vunpack.c.l.b16 %v4808
  %v5072 = vunpack.c.l.b16 %v4809
  %v5073 = vunpack.c.l.b16 %v4810
  %v5074 = vunpack.c.l.b16 %v4811
  %v5075 = vunpack.c.l.b16 %v4812
  %v5076 = vunpack.c.l.b16 %v4813
  %v5077 = vunpack.c.l.b16 %v4814
  %v5078 = vunpack.c.l.b16 %v4815
  %v5079 = vunpack.c.l.b16 %v4816
  %v5080 = vunpack.c.l.b16 %v4817
  %v5081 = vunpack.c.l.b16 %v4818
  %v5082 = vunpack.c.l.b16 %v4819
  %v5083 = vunpack.c.l.b16 %v4820
  %v5084 = vunpack.c.l.b16 %v4821
  %v5085 = vunpack.c.l.b16 %v4822
  %v5086 = vunpack.c.l.b16 %v4823
  %v5087 = vunpack.c.l.b16 %v4824
  %v5088 = vunpack.c.l.b16 %v4825
  %v5089 = vunpack.c.l.b16 %v4826
  %v5090 = vunpack.c.l.b16 %v4827
  %v5091 = vunpack.c.l.b16 %v4828
  %v5092 = vunpack.c.l.b16 %v4829
  %v5093 = vunpack.c.l.b16 %v4830
  %v5094 = vunpack.c.l.b16 %v4831
  %v5095 = vunpack.c.l.b16 %v4832
  %v5096 = vunpack.c.l.b16 %v4833
  %v5097 = vunpack.c.l.b16 %v4834
  %v5098 = vunpack.c.l.b16 %v4835
  %v5099 = vunpack.c.l.b16 %v4836
  %v5100 = vunpack.c.l.b16 %v4837
  %v5101 = vunpack.c.l.b16 %v4838
  %v5102 = vunpack.c.l.b16 %v4839
  %v5103 = vunpack.c.l.b16 %v4840
  %v5104 = vunpack.c.l.b16 %v4841
  %v5105 = vunpack.c.l.b16 %v4842
  %v5106 = vunpack.c.l.b16 %v4843
  %v5107 = vunpack.c.l.b16 %v4844
  %v5108 = vunpack.c.l.b16 %v4845
  %v5109 = vunpack.c.l.b16 %v4846
  %v5110 = vpack.c.b16 %v4983, %v4982
  %v5111 = vpack.c.b16 %v4985, %v4984
  %v5112 = vpack.c.b16 %v4987, %v4986
  %v5113 = vpack.c.b16 %v4989, %v4988
  %v5114 = vpack.c.b16 %v4991, %v4990
  %v5115 = vpack.c.b16 %v4993, %v4992
  %v5116 = vpack.c.b16 %v4995, %v4994
  %v5117 = vpack.c.b16 %v4997, %v4996
  %v5118 = vpack.c.b16 %v4999, %v4998
  %v5119 = vpack.c.b16 %v5001, %v5000
  %v5120 = vpack.c.b16 %v5003, %v5002
  %v5121 = vpack.c.b16 %v5005, %v5004
  %v5122 = vpack.c.b16 %v5007, %v5006
  %v5123 = vpack.c.b16 %v5009, %v5008
  %v5124 = vpack.c.b16 %v5011, %v5010
  %v5125 = vpack.c.b16 %v5013, %v5012
  %v5126 = vpack.c.b16 %v5015, %v5014
  %v5127 = vpack.c.b16 %v5017, %v5016
  %v5128 = vpack.c.b16 %v5019, %v5018
  %v5129 = vpack.c.b16 %v5021, %v5020
  %v5130 = vpack.c.b16 %v5023, %v5022
  %v5131 = vpack.c.b16 %v5025, %v5024
  %v5132 = vpack.c.b16 %v5027, %v5026
  %v5133 = vpack.c.b16 %v5029, %v5028
  %v5134 = vpack.c.b16 %v5031, %v5030
  %v5135 = vpack.c.b16 %v5033, %v5032
  %v5136 = vpack.c.b16 %v5035, %v5034
  %v5137 = vpack.c.b16 %v5037, %v5036
  %v5138 = vpack.c.b16 %v5039, %v5038
  %v5139 = vpack.c.b16 %v5041, %v5040
  %v5140 = vpack.c.b16 %v5043, %v5042
  %v5141 = vpack.c.b16 %v5045, %v5044
  %v5142 = vpack.c.b16 %v5047, %v5046
  %v5143 = vpack.c.b16 %v5049, %v5048
  %v5144 = vpack.c.b16 %v5051, %v5050
  %v5145 = vpack.c.b16 %v5053, %v5052
  %v5146 = vpack.c.b16 %v5055, %v5054
  %v5147 = vpack.c.b16 %v5057, %v5056
  %v5148 = vpack.c.b16 %v5059, %v5058
  %v5149 = vpack.c.b16 %v5061, %v5060
  %v5150 = vpack.c.b16 %v5063, %v5062
  %v5151 = vpack.c.b16 %v5065, %v5064
  %v5152 = vpack.c.b16 %v5067, %v5066
  %v5153 = vpack.c.b16 %v5069, %v5068
  %v5154 = vpack.c.b16 %v5071, %v5070
  %v5155 = vpack.c.b16 %v5073, %v5072
  %v5156 = vpack.c.b16 %v5075, %v5074
  %v5157 = vpack.c.b16 %v5077, %v5076
  %v5158 = vpack.c.b16 %v5079, %v5078
  %v5159 = vpack.c.b16 %v5081, %v5080
  %v5160 = vpack.c.b16 %v5083, %v5082
  %v5161 = vpack.c.b16 %v5085, %v5084
  %v5162 = vpack.c.b16 %v5087, %v5086
  %v5163 = vpack.c.b16 %v5089, %v5088
  %v5164 = vpack.c.b16 %v5091, %v5090
  %v5165 = vpack.c.b16 %v5093, %v5092
  %v5166 = vpack.c.b16 %v5095, %v5094
  %v5167 = vpack.c.b16 %v5097, %v5096
  %v5168 = vpack.c.b16 %v5099, %v5098
  %v5169 = vpack.c.b16 %v5101, %v5100
  %v5170 = vpack.c.b16 %v5103, %v5102
  %v5171 = vpack.c.b16 %v5105, %v5104
  %v5172 = vpack.c.b16 %v5107, %v5106
  %v5173 = vpack.c.b16 %v5109, %v5108
  %5238 = vmatprep.subr.bf16.mxu0 0
  %5239 = vmatpush1.bf16.msra.mxu0 %v5117
  %5240 = vmatprep.subr.bf16.mxu0 0
  %5241 = vmatpush1.bf16.msra.mxu0 %v5116
  %5242 = vmatprep.subr.bf16.mxu0 0
  %5243 = vmatpush1.bf16.msra.mxu0 %v5115
  %5244 = vmatprep.subr.bf16.mxu0 0
  %5245 = vmatpush1.bf16.msra.mxu0 %v5114
  %5246 = vmatprep.subr.bf16.mxu0 0
  %5247 = vmatpush1.bf16.msra.mxu0 %v5113
  %5248 = vmatprep.subr.bf16.mxu0 0
  %5249 = vmatpush1.bf16.msra.mxu0 %v5112
  %5250 = vmatprep.subr.bf16.mxu0 0
  %5251 = vmatpush1.bf16.msra.mxu0 %v5111
  %5252 = vmatprep.subr.bf16.mxu0 0
  %5253 = vmatpush1.bf16.msra.mxu0 %v5110
  %5254 = vmatprep.subr.bf16.mxu0 0
  %5255 = vmatpush2.bf16.msra.mxu0 %v5125
  %5256 = vmatprep.subr.bf16.mxu0 0
  %5257 = vmatpush2.bf16.msra.mxu0 %v5124
  %5258 = vmatprep.subr.bf16.mxu0 0
  %5259 = vmatpush2.bf16.msra.mxu0 %v5123
  %5260 = vmatprep.subr.bf16.mxu0 0
  %5261 = vmatpush2.bf16.msra.mxu0 %v5122
  %5262 = vmatprep.subr.bf16.mxu0 0
  %5263 = vmatpush2.bf16.msra.mxu0 %v5121
  %5264 = vmatprep.subr.bf16.mxu0 0
  %5265 = vmatpush2.bf16.msra.mxu0 %v5120
  %5266 = vmatprep.subr.bf16.mxu0 0
  %5267 = vmatpush2.bf16.msra.mxu0 %v5119
  %5268 = vmatprep.subr.bf16.mxu0 0
  %5269 = vmatpush2.bf16.msra.mxu0 %v5118
  %5270 = vmatprep.mubr.bf16.mxu0 %v4712
  %5271 = vmatmul.mubr.bf16.gmra.mxu0 %v4711
  %v5272 = vpop.f32.mrf.mxu0
  %v5273 = vadd.f32 %v4852, %v5272
  %v5274 = vpop.f32.mrf.mxu0
  %v5275 = vpop.f32.mrf.mxu0
  %v5276 = vadd.f32 %v4852, %v5275
  %v5277 = vpop.f32.mrf.mxu0
  %5278 = vdwg.mxu0
  %5279 = vmatprep.subr.bf16.mxu0 0
  %5280 = vmatpush1.bf16.msra.mxu0 %v5133
  %5281 = vmatprep.subr.bf16.mxu0 0
  %5282 = vmatpush1.bf16.msra.mxu0 %v5132
  %5283 = vmatprep.subr.bf16.mxu0 0
  %5284 = vmatpush1.bf16.msra.mxu0 %v5131
  %5285 = vmatprep.subr.bf16.mxu0 0
  %5286 = vmatpush1.bf16.msra.mxu0 %v5130
  %5287 = vmatprep.subr.bf16.mxu0 0
  %5288 = vmatpush1.bf16.msra.mxu0 %v5129
  %5289 = vmatprep.subr.bf16.mxu0 0
  %5290 = vmatpush1.bf16.msra.mxu0 %v5128
  %5291 = vmatprep.subr.bf16.mxu0 0
  %5292 = vmatpush1.bf16.msra.mxu0 %v5127
  %5293 = vmatprep.subr.bf16.mxu0 0
  %5294 = vmatpush1.bf16.msra.mxu0 %v5126
  %5295 = vmatprep.subr.bf16.mxu0 0
  %5296 = vmatpush2.bf16.msra.mxu0 %v5141
  %5297 = vmatprep.subr.bf16.mxu0 0
  %5298 = vmatpush2.bf16.msra.mxu0 %v5140
  %5299 = vmatprep.subr.bf16.mxu0 0
  %5300 = vmatpush2.bf16.msra.mxu0 %v5139
  %5301 = vmatprep.subr.bf16.mxu0 0
  %5302 = vmatpush2.bf16.msra.mxu0 %v5138
  %5303 = vmatprep.subr.bf16.mxu0 0
  %5304 = vmatpush2.bf16.msra.mxu0 %v5137
  %5305 = vmatprep.subr.bf16.mxu0 0
  %5306 = vmatpush2.bf16.msra.mxu0 %v5136
  %5307 = vmatprep.subr.bf16.mxu0 0
  %5308 = vmatpush2.bf16.msra.mxu0 %v5135
  %5309 = vmatprep.subr.bf16.mxu0 0
  %5310 = vmatpush2.bf16.msra.mxu0 %v5134
  %5311 = vmatprep.mubr.bf16.mxu0 %v4714
  %5312 = vmatmul.mubr.bf16.gmra.mxu0 %v4713
  %v5313 = vpop.f32.mrf.mxu0
  %v5314 = vadd.f32 %v5273, %v5313
  %v5315 = vpop.f32.mrf.mxu0
  %v5316 = vpop.f32.mrf.mxu0
  %v5317 = vadd.f32 %v5276, %v5316
  %v5318 = vpop.f32.mrf.mxu0
  %5319 = vdwg.mxu0
  %5320 = vmatprep.subr.bf16.mxu0 0
  %5321 = vmatpush1.bf16.msra.mxu0 %v5149
  %5322 = vmatprep.subr.bf16.mxu0 0
  %5323 = vmatpush1.bf16.msra.mxu0 %v5148
  %5324 = vmatprep.subr.bf16.mxu0 0
  %5325 = vmatpush1.bf16.msra.mxu0 %v5147
  %5326 = vmatprep.subr.bf16.mxu0 0
  %5327 = vmatpush1.bf16.msra.mxu0 %v5146
  %5328 = vmatprep.subr.bf16.mxu0 0
  %5329 = vmatpush1.bf16.msra.mxu0 %v5145
  %5330 = vmatprep.subr.bf16.mxu0 0
  %5331 = vmatpush1.bf16.msra.mxu0 %v5144
  %5332 = vmatprep.subr.bf16.mxu0 0
  %5333 = vmatpush1.bf16.msra.mxu0 %v5143
  %5334 = vmatprep.subr.bf16.mxu0 0
  %5335 = vmatpush1.bf16.msra.mxu0 %v5142
  %5336 = vmatprep.subr.bf16.mxu0 0
  %5337 = vmatpush2.bf16.msra.mxu0 %v5157
  %5338 = vmatprep.subr.bf16.mxu0 0
  %5339 = vmatpush2.bf16.msra.mxu0 %v5156
  %5340 = vmatprep.subr.bf16.mxu0 0
  %5341 = vmatpush2.bf16.msra.mxu0 %v5155
  %5342 = vmatprep.subr.bf16.mxu0 0
  %5343 = vmatpush2.bf16.msra.mxu0 %v5154
  %5344 = vmatprep.subr.bf16.mxu0 0
  %5345 = vmatpush2.bf16.msra.mxu0 %v5153
  %5346 = vmatprep.subr.bf16.mxu0 0
  %5347 = vmatpush2.bf16.msra.mxu0 %v5152
  %5348 = vmatprep.subr.bf16.mxu0 0
  %5349 = vmatpush2.bf16.msra.mxu0 %v5151
  %5350 = vmatprep.subr.bf16.mxu0 0
  %5351 = vmatpush2.bf16.msra.mxu0 %v5150
  %5352 = vmatprep.mubr.bf16.mxu0 %v4716
  %5353 = vmatmul.mubr.bf16.gmra.mxu0 %v4715
  %v5354 = vpop.f32.mrf.mxu0
  %v5355 = vadd.f32 %v5314, %v5354
  %v5356 = vpop.f32.mrf.mxu0
  %v5357 = vpop.f32.mrf.mxu0
  %v5358 = vadd.f32 %v5317, %v5357
  %v5359 = vpop.f32.mrf.mxu0
  %5360 = vdwg.mxu0
  %5361 = vmatprep.subr.bf16.mxu0 0
  %5362 = vmatpush1.bf16.msra.mxu0 %v5165
  %5363 = vmatprep.subr.bf16.mxu0 0
  %5364 = vmatpush1.bf16.msra.mxu0 %v5164
  %5365 = vmatprep.subr.bf16.mxu0 0
  %5366 = vmatpush1.bf16.msra.mxu0 %v5163
  %5367 = vmatprep.subr.bf16.mxu0 0
  %5368 = vmatpush1.bf16.msra.mxu0 %v5162
  %5369 = vmatprep.subr.bf16.mxu0 0
  %5370 = vmatpush1.bf16.msra.mxu0 %v5161
  %5371 = vmatprep.subr.bf16.mxu0 0
  %5372 = vmatpush1.bf16.msra.mxu0 %v5160
  %5373 = vmatprep.subr.bf16.mxu0 0
  %5374 = vmatpush1.bf16.msra.mxu0 %v5159
  %5375 = vmatprep.subr.bf16.mxu0 0
  %5376 = vmatpush1.bf16.msra.mxu0 %v5158
  %5377 = vmatprep.subr.bf16.mxu0 0
  %5378 = vmatpush2.bf16.msra.mxu0 %v5173
  %5379 = vmatprep.subr.bf16.mxu0 0
  %5380 = vmatpush2.bf16.msra.mxu0 %v5172
  %5381 = vmatprep.subr.bf16.mxu0 0
  %5382 = vmatpush2.bf16.msra.mxu0 %v5171
  %5383 = vmatprep.subr.bf16.mxu0 0
  %5384 = vmatpush2.bf16.msra.mxu0 %v5170
  %5385 = vmatprep.subr.bf16.mxu0 0
  %5386 = vmatpush2.bf16.msra.mxu0 %v5169
  %5387 = vmatprep.subr.bf16.mxu0 0
  %5388 = vmatpush2.bf16.msra.mxu0 %v5168
  %5389 = vmatprep.subr.bf16.mxu0 0
  %5390 = vmatpush2.bf16.msra.mxu0 %v5167
  %5391 = vmatprep.subr.bf16.mxu0 0
  %5392 = vmatpush2.bf16.msra.mxu0 %v5166
  %5393 = vmatprep.mubr.bf16.mxu0 %v4718
  %5394 = vmatmul.mubr.bf16.gmra.mxu0 %v4717
  %v5395 = vpop.f32.mrf.mxu0
  %v5396 = vadd.f32 %v5355, %v5395
  %v5397 = vpop.f32.mrf.mxu0
  %v5398 = vpop.f32.mrf.mxu0
  %v5399 = vadd.f32 %v5358, %v5398
  %v5400 = vpop.f32.mrf.mxu0
  %5401 = vdwg.mxu0
  %v5402 = vsub.f32 0.0, %v4469
  %v5403 = vsub.f32 0.0, %v4472
  %v5404 = vmul.f32 %v5402, 1.442695
  %v5405 = vpow.pop %v5404
  %v5406 = vmul.f32 %v5403, 1.442695
  %v5407 = vpow.pop %v5406
  %v5408 = vadd.f32 %v5405, 1.0
  %v5409 = vadd.f32 %v5407, 1.0
  %v5410 = vrcp.pop %v5408
  %v5411 = vrcp.pop %v5409
  %v5412 = vsub.f32 0.0, %v4673
  %v5413 = vsub.f32 0.0, %v4676
  %v5414 = vmul.f32 %v5412, 1.442695
  %v5415 = vpow.pop %v5414
  %v5416 = vmul.f32 %v5413, 1.442695
  %v5417 = vpow.pop %v5416
  %v5418 = vadd.f32 %v5415, 1.0
  %v5419 = vadd.f32 %v5417, 1.0
  %v5420 = vrcp.pop %v5418
  %v5421 = vrcp.pop %v5419
  %v5422 = vmul.f32 %v5410, %v5420
  %v5423 = vmul.f32 %v5411, %v5421
  %v5424 = vsub.f32 0.0, %v5396
  %v5425 = vsub.f32 0.0, %v5399
  %v5426 = vmul.f32 %v5424, 1.442695
  %v5427 = vpow.pop %v5426
  %v5428 = vmul.f32 %v5425, 1.442695
  %v5429 = vpow.pop %v5428
  %v5430 = vadd.f32 %v5427, 1.0
  %v5431 = vadd.f32 %v5429, 1.0
  %v5432 = vrcp.pop %v5430
  %v5433 = vrcp.pop %v5431
  %v5434 = vmul.f32 %v5422, %v5432
  %v5435 = vmul.f32 %v5423, %v5433
  %5436 = vst [vmem:[%s17] sm:$0xff] %v5434
  %5437 = vst [vmem:[%s17 + $0x8] sm:$0xff] %v5435
  // Predicated region
  $region70: #{_spalan_forward_impl.1} parent=0 // pred_check
    _
  $region71: #{_spalan_forward_impl.1} parent=0 // pred_check_branch
    %5439 = sbr.rel (0) target = $region73
  $region72: #{_spalan_forward_impl.1} parent=0 // pred_region
    _
  $region73: #{_spalan_forward_impl.1} parent=0 // pred_fallthru
    _
  // Predicated region
  $region74: #{_spalan_forward_impl.1} parent=0 // pred_check
    _
  $region75: #{_spalan_forward_impl.1} parent=0 // pred_check_branch
    %5441 = sbr.rel (0) target = $region77
  $region76: #{_spalan_forward_impl.1} parent=0 // pred_region
    _
  $region77: #{_spalan_forward_impl.1} parent=0 // pred_fallthru
    _

</llo_original>
